<compile_context>
chip_gen: v7x
topology: tpu7x:2x2x1
jax: 0.10.0
libtpu: 0.0.40
codegen_flags: <defaults>
</compile_context>

<pallas_src>
import numpy as np
import jax
import jax.numpy as jnp
from jax.experimental import pallas as pl
from jax.experimental.pallas import tpu as pltpu


# ----------------------------------------------------------------------------
# weight packing: 2 operands instead of 20 (bf16 matmul weights + f32 biases).
# w1/w2 (and b1/b2) are pre-fused along the output-lane axis as 'w12'/'b12'.
# ----------------------------------------------------------------------------
_W_ORDER = ('w_ev', 'w_g1', 'w_g2', 'w12', 'wa1', 'wa2', 'wm1', 'wm2', 'wm3')
_B_ORDER = ('b_ev', 'b_g1', 'b_g2', 'b12', 'ba1', 'ba2', 'bm1', 'bm2', 'bm3')


def _pack_weights(params, align=16):
    """Row-stack all matmul weights (zero padded, 16-row aligned) as bf16."""
    assert align >= 8  # the 8-row wm3 read in the kernel relies on this padding
    cols = max(params[k].shape[1] for k in _W_ORDER)
    blocks, seg, off = [], {}, 0
    for k in _W_ORDER:
        r, c = params[k].shape
        seg[k] = off
        rp = -(-r // align) * align
        blocks.append(jnp.pad(params[k], ((0, rp - r), (0, cols - c))))
        off += rp
    return jnp.concatenate(blocks, axis=0).astype(jnp.bfloat16), seg


def _pack_biases(params, stride=8):
    """Row-stack all biases (one per 8-row slot, zero padded) as f32."""
    cols = max(params[k].shape[1] for k in _B_ORDER)
    rows, seg = [], {}
    for j, k in enumerate(_B_ORDER):
        c = params[k].shape[1]
        seg[k] = j * stride
        rows.append(jnp.pad(params[k], ((0, stride - 1), (0, cols - c))))
    return jnp.concatenate(rows, axis=0).astype(jnp.float32), seg


def _tpu_flavor():
    try:
        kind = jax.devices()[0].device_kind.lower()
    except Exception:
        return ''
    for f in ('v7', 'v6', 'v5'):
        if f in kind:
            return f
    return ''


def _pick_tile_b(B, flavor, max_tile=None):
    """Generation-aware tile pick (largest multiple of 128 dividing B).
    v5e/v6e: single TensorCore + 128 MiB VMEM -> grow TB (no B//2 cap).
    v7x / unknown: keep grid >= 2 so both TensorCores get work, smaller cap."""
    if flavor in ('v5', 'v6'):
        cap = min(max_tile or 1024, B)
    else:
        cap = min(max_tile or 512, max(128, B // 2))
    t = (cap // 128) * 128
    while t >= 128:
        if B % t == 0:
            return t
        t -= 128
    return B


# ----------------------------------------------------------------------------
# fused kernel
# ----------------------------------------------------------------------------
def _make_kernel(E, N, H, MLP, TB, wseg, bseg, ew_dtype):
    H2 = 2 * H
    f32, bf16 = jnp.float32, jnp.bfloat16

    def kernel(ev_ref, sf_ref, tf_ref, cat_ref, w_ref, b_ref, out_ref):
        def W(name, nr, nc):                     # static slice of packed weights (bf16)
            o = wseg[name]
            return w_ref[o:o + nr, :nc]

        def Bv(name, nc):                        # (1, nc) f32 bias row
            o = bseg[name]
            return b_ref[o:o + 1, :nc]

        def mm(x, w):
            return jnp.dot(x, w, preferred_element_type=f32)

        # ---- EventGCN: 3 walk positions x 2 directions batched --------------
        ev = ev_ref[...].reshape(3 * TB, E)                          # contiguous view
        ev_lin = mm(ev, W('w_ev', E, N)) + Bv('b_ev', N)             # (3TB, N) f32
        evl = ev_lin.astype(ew_dtype)
        s = sf_ref[...].reshape(3 * TB, N).astype(ew_dtype)
        t = tf_ref[...].reshape(3 * TB, N).astype(ew_dtype)
        gin = jnp.concatenate(
            [s + jnp.maximum(t + evl, 0.0),                          # src-direction
             t + jnp.maximum(s + evl, 0.0)], axis=0)                 # tgt-direction
        h = jnp.maximum(mm(gin.astype(bf16), W('w_g1', N, H)) + Bv('b_g1', H), 0.0)
        g = (mm(h.astype(bf16), W('w_g2', H, H)) + Bv('b_g2', H)).astype(bf16)
        # rows of g: [src-dir p0,p1,p2 | tgt-dir p0,p1,p2], TB rows per block

        # ---- u = [h_src | h_tgt]: single lane concat (2H = 64 lanes) --------
        u = jnp.concatenate([g[:3 * TB], g[3 * TB:]], axis=-1)       # (3TB, 2H) bf16

        # ---- Attention: one packed matmul u @ [w1|w2] (128 result lanes) ----
        P = mm(u, W('w12', H2, 2 * H2)) + Bv('b12', 2 * H2)          # (3TB, 4H) f32
        Wp = P[2 * TB:3 * TB, 0:H2]          # query (pos 2) @ w1 + b1
        wq0 = P[0:TB, H2:2 * H2]             # key   (pos 0) @ w2 + b2
        wq1 = P[TB:2 * TB, H2:2 * H2]        # key   (pos 1) @ w2 + b2
        s0 = jnp.sum(Wp * wq0, axis=-1, keepdims=True)
        s1 = jnp.sum(Wp * wq1, axis=-1, keepdims=True)
        m = jnp.maximum(s0, s1)
        e0, e1 = jnp.exp(s0 - m), jnp.exp(s1 - m)
        inv = 1.0 / (e0 + e1)                                        # exact; (TB,1) only
        v = (e0 * inv) * wq0 + (e1 * inv) * wq1                      # (TB, 2H) f32

        # attn = u_pos2 + v ; two small fc layers
        att_in = (u[2 * TB:3 * TB].astype(f32) + v).astype(bf16)     # (TB, 2H)
        h1 = jnp.maximum(mm(att_in, W('wa1', H2, H)) + Bv('ba1', H), 0.0)
        h2 = mm(h1.astype(bf16), W('wa2', H, H)) + Bv('ba2', H)      # (TB, H) f32

        # ---- final MLP on [attention feature | one-hot category] ------------
        # TODO(synk): nn.Dropout is identity in eval mode; training-mode dropout not implemented.
        x_cat = jnp.concatenate([h2.astype(bf16), cat_ref[...]], axis=-1)   # (TB, H+12)
        z1 = jnp.maximum(mm(x_cat, W('wm1', MLP, MLP)) + Bv('bm1', MLP), 0.0)
        z2 = jnp.maximum(mm(z1.astype(bf16), W('wm2', MLP, H)) + Bv('bm2', H), 0.0)

        # Linear(H -> 1) + sigmoid, emitted lane-dense as a (1, TB) row.
        # wm3's packed segment is zero-padded to >= 8 rows (asserted in packing),
        # so rows 1..7 contribute exactly 0.
        z3 = jax.lax.dot_general(
            W('wm3', 8, H), z2.astype(bf16),
            (((1,), (1,)), ((), ())), preferred_element_type=f32)    # (8, TB)
        out_ref[...] = jax.nn.sigmoid(z3[0:1, :] + Bv('bm3', 1))

    return kernel


# ----------------------------------------------------------------------------
# wrapper
# ----------------------------------------------------------------------------
def tempme_forward(params, ev_pm, src_pm, tgt_pm, cat_onehot, tile_b=None,
                   max_tile=None):
    """ev/src/tgt are position-major [3, B, D]; cat_onehot is [B, 12]."""
    L, B, E = ev_pm.shape
    N = src_pm.shape[-1]
    H = params['w_g2'].shape[0]
    MLP = params['wm1'].shape[1]
    assert L == 3 and MLP == H + 12

    flavor = _tpu_flavor()
    if tile_b is None:
        tile_b = _pick_tile_b(B, flavor, max_tile)
    assert B % tile_b == 0

    # fuse w1/w2 (and biases) along the output-lane axis -> one 128-lane matmul
    fused = dict(params)
    fused['w12'] = jnp.concatenate([params['w1'], params['w2']], axis=1)
    fused['b12'] = jnp.concatenate([params['b1'], params['b2']], axis=1)
    w_packed, wseg = _pack_weights(fused)
    b_packed, bseg = _pack_biases(fused)

    ev = ev_pm.astype(jnp.bfloat16)
    sf = src_pm.astype(jnp.bfloat16)
    tf = tgt_pm.astype(jnp.bfloat16)
    ct = cat_onehot.astype(jnp.bfloat16)

    # bf16 elementwise on v6e/v7x (native bf16 VPU); f32 on v5e / unknown.
    ew_dtype = jnp.bfloat16 if flavor in ('v6', 'v7') else jnp.float32
    kernel = _make_kernel(E, N, H, MLP, tile_b, wseg, bseg, ew_dtype)

    # TODO(synk): w_packed/b_packed are grid-invariant (constant block index, so
    # they are only DMA'd once); single-buffering them via pipeline_mode would
    # shave a little VMEM but is left out for portability.
    in_specs = [
        pl.BlockSpec((L, tile_b, E), lambda i: (0, i, 0)),
        pl.BlockSpec((L, tile_b, N), lambda i: (0, i, 0)),
        pl.BlockSpec((L, tile_b, N), lambda i: (0, i, 0)),
        pl.BlockSpec((tile_b, 12), lambda i: (i, 0)),
        pl.BlockSpec(w_packed.shape, lambda i: (0, 0)),   # constant blocks
        pl.BlockSpec(b_packed.shape, lambda i: (0, 0)),
    ]
    vmem_limit = (96 if flavor in ('v5', 'v6') else 32) * 1024 * 1024
    out = pl.pallas_call(
        kernel,
        out_shape=jax.ShapeDtypeStruct((1, B), jnp.float32),
        grid_spec=pltpu.PrefetchScalarGridSpec(
            num_scalar_prefetch=0,
            grid=(B // tile_b,),
            in_specs=in_specs,
            out_specs=pl.BlockSpec((1, tile_b), lambda i: (0, i)),
        ),
        compiler_params=pltpu.CompilerParams(
            dimension_semantics=("parallel",),
            vmem_limit_bytes=vmem_limit,
        ),
    )(ev, sf, tf, ct, w_packed, b_packed)
    return out.reshape(B, 1)


# ----------------------------------------------------------------------------
# params + pure-JAX reference (mirrors the PyTorch module, eval mode)
# ----------------------------------------------------------------------------
def init_params(key, edge_dim, node_dim, time_dim, hid_dim):
    event_dim = edge_dim + time_dim + 3
    mlp_dim = hid_dim + 12
    shapes = {
        'w_ev': (event_dim, node_dim), 'b_ev': (1, node_dim),
        'w_g1': (node_dim, hid_dim),   'b_g1': (1, hid_dim),
        'w_g2': (hid_dim, hid_dim),    'b_g2': (1, hid_dim),
        'w1': (2 * hid_dim, 2 * hid_dim), 'b1': (1, 2 * hid_dim),
        'w2': (2 * hid_dim, 2 * hid_dim), 'b2': (1, 2 * hid_dim),
        'wa1': (2 * hid_dim, hid_dim),    'ba1': (1, hid_dim),
        'wa2': (hid_dim, hid_dim),        'ba2': (1, hid_dim),
        'wm1': (mlp_dim, mlp_dim), 'bm1': (1, mlp_dim),
        'wm2': (mlp_dim, hid_dim), 'bm2': (1, hid_dim),
        'wm3': (1, hid_dim),       'bm3': (1, 1),
    }
    params = {}
    keys = jax.random.split(key, len(shapes))
    for k_, (name, shape) in zip(keys, shapes.items()):
        fan_in = shape[0] if name.startswith('w') else max(shape[-1], 1)
        scale = 1.0 / np.sqrt(fan_in)
        params[name] = jax.random.uniform(k_, shape, jnp.float32, -1.0, 1.0) * scale
    params['b2'] = jnp.full((1, 2 * hid_dim), 0.1, jnp.float32)  # Attention.init_weights
    return params


def tempme_reference(params, event_features, src_features, tgt_features, cat_onehot):
    def lin(x, w, b):
        return x @ w + b

    def gcn(ev, s, t):
        ev_lin = lin(ev, params['w_ev'], params['b_ev'])
        msg = jax.nn.relu(t + ev_lin)
        h = jax.nn.relu(lin(s + msg, params['w_g1'], params['b_g1']))
        return lin(h, params['w_g2'], params['b_g2'])

    h_src = gcn(event_features, src_features, tgt_features)
    h_tgt = gcn(event_features, tgt_features, src_features)
    u = jnp.concatenate([h_src, h_tgt], axis=-1)
    bsz, n_walk = u.shape[0], u.shape[1]
    src = u[:, :, 2:3, :].reshape(bsz * n_walk, 1, -1)
    tgt = u[:, :, 0:2, :].reshape(bsz * n_walk, 2, -1)
    Wp = lin(src, params['w1'], params['b1'])
    Wq = lin(tgt, params['w2'], params['b2'])
    scores = jnp.einsum('bik,bjk->bij', Wp, Wq)
    alpha = jax.nn.softmax(scores, axis=-1)
    output = jnp.einsum('bij,bjk->bik', alpha, Wq)
    output = src + output.sum(-2, keepdims=True)
    output = lin(jax.nn.relu(lin(output, params['wa1'], params['ba1'])),
                 params['wa2'], params['ba2'])
    attn = output.reshape(bsz, n_walk, -1)
    x = jnp.concatenate([attn, cat_onehot], axis=-1)
    z = jax.nn.relu(lin(x, params['wm1'], params['bm1']))
    z = jax.nn.relu(lin(z, params['wm2'], params['bm2']))
    z = jnp.sum(z * params['wm3'], axis=-1, keepdims=True) + params['bm3']
    return jax.nn.sigmoid(z)


if __name__ == "__main__":
    key = jax.random.PRNGKey(0)
    bsz, n_walk, L = 2, 128, 3
    edge_dim, node_dim, hid_dim = 16, 32, 32
    time_dim = node_dim                      # TempME sets time_dim = node_dim
    num_nodes, num_edges = 50, 60
    B = bsz * n_walk
    E = edge_dim + time_dim + 3

    ks = iter(jax.random.split(key, 16))
    params = init_params(next(ks), edge_dim, node_dim, time_dim, hid_dim)

    node_raw = jax.random.normal(next(ks), (num_nodes, node_dim), jnp.float32)
    edge_raw = jax.random.normal(next(ks), (num_edges, edge_dim), jnp.float32)

    # synthetic "walks" inputs
    node_idx = jax.random.randint(next(ks), (bsz, n_walk, 6), 0, num_nodes)
    edge_idx = jax.random.randint(next(ks), (bsz, n_walk, 3), 0, num_edges)
    time_idx = jax.random.uniform(next(ks), (bsz, n_walk, 3), jnp.float32, 0.0, 100.0)
    cat_feat = jax.random.randint(next(ks), (bsz, n_walk, 1), 0, 12)
    edge_identify = jax.random.uniform(next(ks), (bsz, n_walk, 3, 3), jnp.float32)

    # glue (plain JAX): gather walk features directly position-major [3, B, D]
    # so the kernel inputs need no extra full-HBM transpose pass.
    basis_freq = jnp.asarray(1.0 / 10 ** np.linspace(0, 9, time_dim), jnp.float32)
    ni = node_idx.reshape(B, 6)
    src_pm = node_raw[ni[:, jnp.array([0, 2, 4])].T]            # (3, B, node_dim)
    tgt_pm = node_raw[ni[:, jnp.array([1, 3, 5])].T]            # (3, B, node_dim)
    edge_pm = edge_raw[edge_idx.reshape(B, 3).T]                # (3, B, edge_dim)
    td_pm = (time_idx[..., -1:] - time_idx).reshape(B, 3).T     # (3, B)
    time_pm = jnp.cos(td_pm[..., None] * basis_freq)            # (3, B, time_dim)
    eid_pm = jnp.transpose(edge_identify.reshape(B, 3, 3), (1, 0, 2))   # (3, B, 3)
    ev_pm = jnp.concatenate([edge_pm, eid_pm, time_pm], axis=-1)        # (3, B, E)
    cat1h = jax.nn.one_hot(cat_feat[..., 0].reshape(B), 12, dtype=jnp.float32)

    out = tempme_forward(params, ev_pm, src_pm, tgt_pm, cat1h)
    out = jax.block_until_ready(out).reshape(bsz, n_walk, 1)
    assert out.shape == (bsz, n_walk, 1)

    # references (walk-major tensors only needed on the reference path)
    def to_wm(x_pm, d):
        return jnp.transpose(x_pm, (1, 0, 2)).reshape(bsz, n_walk, 3, d)

    ev_wm, src_wm, tgt_wm = to_wm(ev_pm, E), to_wm(src_pm, node_dim), to_wm(tgt_pm, node_dim)
    cat_wm = cat1h.reshape(bsz, n_walk, 12)

    ref_f32 = tempme_reference(params, ev_wm, src_wm, tgt_wm, cat_wm)

    # numerics-matched reference: same math with weights/inputs rounded to bf16
    # (the kernel additionally keeps some elementwise intermediates in bf16 on
    # v6e/v7x, hence the slightly looser tolerance vs. this reference).
    def _q(x):
        return x.astype(jnp.bfloat16).astype(jnp.float32)

    params_q = {k: (_q(v) if k.startswith('w') else v) for k, v in params.items()}
    ref_q = tempme_reference(params_q, _q(ev_wm), _q(src_wm), _q(tgt_wm), cat_wm)

    np.testing.assert_allclose(np.asarray(out), np.asarray(ref_q), rtol=2.5e-2, atol=2.5e-2)
    np.testing.assert_allclose(np.asarray(out), np.asarray(ref_f32), rtol=6e-2, atol=6e-2)
    print("KERNEL_OK")
</pallas_src>

<mosaic_0001>
module attributes {stable_mosaic.version = 11 : i64} {
  func.func @kernel(%arg0: i32, %arg1: memref<3x128x51xbf16, #tpu.memory_space<vmem>>, %arg2: memref<3x128x32xbf16, #tpu.memory_space<vmem>>, %arg3: memref<3x128x32xbf16, #tpu.memory_space<vmem>>, %arg4: memref<128x12xbf16, #tpu.memory_space<vmem>>, %arg5: memref<400x128xbf16, #tpu.memory_space<vmem>>, %arg6: memref<72x128xf32, #tpu.memory_space<vmem>>, %arg7: memref<1x128xf32, #tpu.memory_space<vmem>>) attributes {dimension_semantics = [#tpu.dimension_semantics<parallel>], iteration_bounds = array<i64: 2>, scalar_prefetch = 0 : i64, scratch_operands = 0 : i64, tpu.core_type = #tpu.core_type<tc>, window_params = [{transform_indices = @transform_0, window_bounds = array<i64: 3, 128, 51>}, {transform_indices = @transform_1, window_bounds = array<i64: 3, 128, 32>}, {transform_indices = @transform_2, window_bounds = array<i64: 3, 128, 32>}, {transform_indices = @transform_3, window_bounds = array<i64: 128, 12>}, {pipeline_mode = #tpu.pipeline_mode<synchronous>, transform_indices = @transform_4, window_bounds = array<i64: 400, 128>}, {pipeline_mode = #tpu.pipeline_mode<synchronous>, transform_indices = @transform_5, window_bounds = array<i64: 72, 128>}, {transform_indices = @transform_6, window_bounds = array<i64: 1, 128>}]} {
    %c0 = arith.constant 0 : index
    %c0_0 = arith.constant 0 : index
    %c0_1 = arith.constant 0 : index
    %0 = vector.load %arg1[%c0, %c0_0, %c0_1] : memref<3x128x51xbf16, #tpu.memory_space<vmem>>, vector<3x128x51xbf16>
    %1 = vector.shape_cast %0 : vector<3x128x51xbf16> to vector<384x51xbf16>
    %c0_2 = arith.constant 0 : index
    %c0_3 = arith.constant 0 : index
    %2 = vector.load %arg5[%c0_2, %c0_3] : memref<400x128xbf16, #tpu.memory_space<vmem>>, vector<51x32xbf16>
    %cst = arith.constant dense<0.000000e+00> : vector<384x32xf32>
    %3 = tpu.matmul %1, %2, %cst {dimension_numbers = #tpu.dot_dimension_numbers<[1], [0], [0], [1], [0, 0, 1, 1], [], []>} : vector<384x51xbf16>, vector<51x32xbf16>, vector<384x32xf32> -> vector<384x32xf32>
    %c0_4 = arith.constant 0 : index
    %c0_5 = arith.constant 0 : index
    %4 = vector.load %arg6[%c0_4, %c0_5] : memref<72x128xf32, #tpu.memory_space<vmem>>, vector<1x32xf32>
    %5 = vector.broadcast %4 : vector<1x32xf32> to vector<384x32xf32>
    %6 = arith.addf %3, %5 : vector<384x32xf32>
    %c0_6 = arith.constant 0 : index
    %c0_7 = arith.constant 0 : index
    %c0_8 = arith.constant 0 : index
    %7 = vector.load %arg2[%c0_6, %c0_7, %c0_8] : memref<3x128x32xbf16, #tpu.memory_space<vmem>>, vector<3x128x32xbf16>
    %8 = vector.shape_cast %7 : vector<3x128x32xbf16> to vector<384x32xbf16>
    %9 = arith.extf %8 : vector<384x32xbf16> to vector<384x32xf32>
    %c0_9 = arith.constant 0 : index
    %c0_10 = arith.constant 0 : index
    %c0_11 = arith.constant 0 : index
    %10 = vector.load %arg3[%c0_9, %c0_10, %c0_11] : memref<3x128x32xbf16, #tpu.memory_space<vmem>>, vector<3x128x32xbf16>
    %11 = vector.shape_cast %10 : vector<3x128x32xbf16> to vector<384x32xbf16>
    %12 = arith.extf %11 : vector<384x32xbf16> to vector<384x32xf32>
    %13 = arith.addf %12, %6 : vector<384x32xf32>
    %cst_12 = arith.constant 0.000000e+00 : f32
    %14 = vector.broadcast %cst_12 : f32 to vector<384x32xf32>
    %15 = arith.maximumf %13, %14 : vector<384x32xf32>
    %16 = arith.addf %9, %15 : vector<384x32xf32>
    %17 = arith.addf %9, %6 : vector<384x32xf32>
    %cst_13 = arith.constant 0.000000e+00 : f32
    %18 = vector.broadcast %cst_13 : f32 to vector<384x32xf32>
    %19 = arith.maximumf %17, %18 : vector<384x32xf32>
    %20 = arith.addf %12, %19 : vector<384x32xf32>
    %21 = tpu.concatenate %16, %20 in 0 : vector<384x32xf32>, vector<384x32xf32> -> vector<768x32xf32>
    %22 = arith.truncf %21 : vector<768x32xf32> to vector<768x32xbf16>
    %c64 = arith.constant 64 : index
    %c0_14 = arith.constant 0 : index
    %23 = vector.load %arg5[%c64, %c0_14] : memref<400x128xbf16, #tpu.memory_space<vmem>>, vector<32x32xbf16>
    %cst_15 = arith.constant dense<0.000000e+00> : vector<768x32xf32>
    %24 = tpu.matmul %22, %23, %cst_15 {dimension_numbers = #tpu.dot_dimension_numbers<[1], [0], [0], [1], [0, 0, 1, 1], [], []>} : vector<768x32xbf16>, vector<32x32xbf16>, vector<768x32xf32> -> vector<768x32xf32>
    %c8 = arith.constant 8 : index
    %c0_16 = arith.constant 0 : index
    %25 = vector.load %arg6[%c8, %c0_16] : memref<72x128xf32, #tpu.memory_space<vmem>>, vector<1x32xf32>
    %26 = vector.broadcast %25 : vector<1x32xf32> to vector<768x32xf32>
    %27 = arith.addf %24, %26 : vector<768x32xf32>
    %cst_17 = arith.constant 0.000000e+00 : f32
    %28 = vector.broadcast %cst_17 : f32 to vector<768x32xf32>
    %29 = arith.maximumf %27, %28 : vector<768x32xf32>
    %30 = arith.truncf %29 : vector<768x32xf32> to vector<768x32xbf16>
    %c96 = arith.constant 96 : index
    %c0_18 = arith.constant 0 : index
    %31 = vector.load %arg5[%c96, %c0_18] : memref<400x128xbf16, #tpu.memory_space<vmem>>, vector<32x32xbf16>
    %cst_19 = arith.constant dense<0.000000e+00> : vector<768x32xf32>
    %32 = tpu.matmul %30, %31, %cst_19 {dimension_numbers = #tpu.dot_dimension_numbers<[1], [0], [0], [1], [0, 0, 1, 1], [], []>} : vector<768x32xbf16>, vector<32x32xbf16>, vector<768x32xf32> -> vector<768x32xf32>
    %c16 = arith.constant 16 : index
    %c0_20 = arith.constant 0 : index
    %33 = vector.load %arg6[%c16, %c0_20] : memref<72x128xf32, #tpu.memory_space<vmem>>, vector<1x32xf32>
    %34 = vector.broadcast %33 : vector<1x32xf32> to vector<768x32xf32>
    %35 = arith.addf %32, %34 : vector<768x32xf32>
    %36 = arith.truncf %35 : vector<768x32xf32> to vector<768x32xbf16>
    %37 = vector.extract_strided_slice %36 {offsets = [0, 0], sizes = [384, 32], strides = [1, 1]} : vector<768x32xbf16> to vector<384x32xbf16>
    %38 = vector.extract_strided_slice %36 {offsets = [384, 0], sizes = [384, 32], strides = [1, 1]} : vector<768x32xbf16> to vector<384x32xbf16>
    %39 = tpu.concatenate %37, %38 in 1 : vector<384x32xbf16>, vector<384x32xbf16> -> vector<384x64xbf16>
    %c128 = arith.constant 128 : index
    %c0_21 = arith.constant 0 : index
    %40 = vector.load %arg5[%c128, %c0_21] : memref<400x128xbf16, #tpu.memory_space<vmem>>, vector<64x128xbf16>
    %cst_22 = arith.constant dense<0.000000e+00> : vector<384x128xf32>
    %41 = tpu.matmul %39, %40, %cst_22 {dimension_numbers = #tpu.dot_dimension_numbers<[1], [0], [0], [1], [0, 0, 1, 1], [], []>} : vector<384x64xbf16>, vector<64x128xbf16>, vector<384x128xf32> -> vector<384x128xf32>
    %c24 = arith.constant 24 : index
    %c0_23 = arith.constant 0 : index
    %42 = vector.load %arg6[%c24, %c0_23] : memref<72x128xf32, #tpu.memory_space<vmem>>, vector<1x128xf32>
    %43 = vector.broadcast %42 : vector<1x128xf32> to vector<384x128xf32>
    %44 = arith.addf %41, %43 : vector<384x128xf32>
    %45 = vector.extract_strided_slice %44 {offsets = [256, 0], sizes = [128, 64], strides = [1, 1]} : vector<384x128xf32> to vector<128x64xf32>
    %46 = vector.extract_strided_slice %44 {offsets = [0, 64], sizes = [128, 64], strides = [1, 1]} : vector<384x128xf32> to vector<128x64xf32>
    %47 = vector.extract_strided_slice %44 {offsets = [128, 64], sizes = [128, 64], strides = [1, 1]} : vector<384x128xf32> to vector<128x64xf32>
    %48 = arith.mulf %45, %46 : vector<128x64xf32>
    %cst_24 = arith.constant dense<0.000000e+00> : vector<128xf32>
    %49 = vector.multi_reduction <add>, %48, %cst_24 [1] : vector<128x64xf32> to vector<128xf32>
    %50 = vector.shape_cast %49 : vector<128xf32> to vector<128x1xf32>
    %51 = arith.mulf %45, %47 : vector<128x64xf32>
    %cst_25 = arith.constant dense<0.000000e+00> : vector<128xf32>
    %52 = vector.multi_reduction <add>, %51, %cst_25 [1] : vector<128x64xf32> to vector<128xf32>
    %53 = vector.shape_cast %52 : vector<128xf32> to vector<128x1xf32>
    %54 = arith.maximumf %50, %53 : vector<128x1xf32>
    %55 = arith.subf %50, %54 : vector<128x1xf32>
    %56 = math.exp %55 : vector<128x1xf32>
    %57 = arith.subf %53, %54 : vector<128x1xf32>
    %58 = math.exp %57 : vector<128x1xf32>
    %59 = arith.addf %56, %58 : vector<128x1xf32>
    %cst_26 = arith.constant 1.000000e+00 : f32
    %60 = vector.broadcast %cst_26 : f32 to vector<128x1xf32>
    %61 = arith.divf %60, %59 : vector<128x1xf32>
    %62 = arith.mulf %56, %61 : vector<128x1xf32>
    %63 = vector.broadcast %62 : vector<128x1xf32> to vector<128x64xf32>
    %64 = arith.mulf %63, %46 : vector<128x64xf32>
    %65 = arith.mulf %58, %61 : vector<128x1xf32>
    %66 = vector.broadcast %65 : vector<128x1xf32> to vector<128x64xf32>
    %67 = arith.mulf %66, %47 : vector<128x64xf32>
    %68 = arith.addf %64, %67 : vector<128x64xf32>
    %69 = vector.extract_strided_slice %39 {offsets = [256, 0], sizes = [128, 64], strides = [1, 1]} : vector<384x64xbf16> to vector<128x64xbf16>
    %70 = arith.extf %69 : vector<128x64xbf16> to vector<128x64xf32>
    %71 = arith.addf %70, %68 : vector<128x64xf32>
    %72 = arith.truncf %71 : vector<128x64xf32> to vector<128x64xbf16>
    %c192 = arith.constant 192 : index
    %c0_27 = arith.constant 0 : index
    %73 = vector.load %arg5[%c192, %c0_27] : memref<400x128xbf16, #tpu.memory_space<vmem>>, vector<64x32xbf16>
    %cst_28 = arith.constant dense<0.000000e+00> : vector<128x32xf32>
    %74 = tpu.matmul %72, %73, %cst_28 {dimension_numbers = #tpu.dot_dimension_numbers<[1], [0], [0], [1], [0, 0, 1, 1], [], []>} : vector<128x64xbf16>, vector<64x32xbf16>, vector<128x32xf32> -> vector<128x32xf32>
    %c32 = arith.constant 32 : index
    %c0_29 = arith.constant 0 : index
    %75 = vector.load %arg6[%c32, %c0_29] : memref<72x128xf32, #tpu.memory_space<vmem>>, vector<1x32xf32>
    %76 = vector.broadcast %75 : vector<1x32xf32> to vector<128x32xf32>
    %77 = arith.addf %74, %76 : vector<128x32xf32>
    %cst_30 = arith.constant 0.000000e+00 : f32
    %78 = vector.broadcast %cst_30 : f32 to vector<128x32xf32>
    %79 = arith.maximumf %77, %78 : vector<128x32xf32>
    %80 = arith.truncf %79 : vector<128x32xf32> to vector<128x32xbf16>
    %c256 = arith.constant 256 : index
    %c0_31 = arith.constant 0 : index
    %81 = vector.load %arg5[%c256, %c0_31] : memref<400x128xbf16, #tpu.memory_space<vmem>>, vector<32x32xbf16>
    %cst_32 = arith.constant dense<0.000000e+00> : vector<128x32xf32>
    %82 = tpu.matmul %80, %81, %cst_32 {dimension_numbers = #tpu.dot_dimension_numbers<[1], [0], [0], [1], [0, 0, 1, 1], [], []>} : vector<128x32xbf16>, vector<32x32xbf16>, vector<128x32xf32> -> vector<128x32xf32>
    %c40 = arith.constant 40 : index
    %c0_33 = arith.constant 0 : index
    %83 = vector.load %arg6[%c40, %c0_33] : memref<72x128xf32, #tpu.memory_space<vmem>>, vector<1x32xf32>
    %84 = vector.broadcast %83 : vector<1x32xf32> to vector<128x32xf32>
    %85 = arith.addf %82, %84 : vector<128x32xf32>
    %86 = arith.truncf %85 : vector<128x32xf32> to vector<128x32xbf16>
    %c0_34 = arith.constant 0 : index
    %c0_35 = arith.constant 0 : index
    %87 = vector.load %arg4[%c0_34, %c0_35] : memref<128x12xbf16, #tpu.memory_space<vmem>>, vector<128x12xbf16>
    %88 = tpu.concatenate %86, %87 in 1 : vector<128x32xbf16>, vector<128x12xbf16> -> vector<128x44xbf16>
    %c288 = arith.constant 288 : index
    %c0_36 = arith.constant 0 : index
    %89 = vector.load %arg5[%c288, %c0_36] : memref<400x128xbf16, #tpu.memory_space<vmem>>, vector<44x44xbf16>
    %cst_37 = arith.constant dense<0.000000e+00> : vector<128x44xf32>
    %90 = tpu.matmul %88, %89, %cst_37 {dimension_numbers = #tpu.dot_dimension_numbers<[1], [0], [0], [1], [0, 0, 1, 1], [], []>} : vector<128x44xbf16>, vector<44x44xbf16>, vector<128x44xf32> -> vector<128x44xf32>
    %c48 = arith.constant 48 : index
    %c0_38 = arith.constant 0 : index
    %91 = vector.load %arg6[%c48, %c0_38] : memref<72x128xf32, #tpu.memory_space<vmem>>, vector<1x44xf32>
    %92 = vector.broadcast %91 : vector<1x44xf32> to vector<128x44xf32>
    %93 = arith.addf %90, %92 : vector<128x44xf32>
    %cst_39 = arith.constant 0.000000e+00 : f32
    %94 = vector.broadcast %cst_39 : f32 to vector<128x44xf32>
    %95 = arith.maximumf %93, %94 : vector<128x44xf32>
    %96 = arith.truncf %95 : vector<128x44xf32> to vector<128x44xbf16>
    %c336 = arith.constant 336 : index
    %c0_40 = arith.constant 0 : index
    %97 = vector.load %arg5[%c336, %c0_40] : memref<400x128xbf16, #tpu.memory_space<vmem>>, vector<44x32xbf16>
    %cst_41 = arith.constant dense<0.000000e+00> : vector<128x32xf32>
    %98 = tpu.matmul %96, %97, %cst_41 {dimension_numbers = #tpu.dot_dimension_numbers<[1], [0], [0], [1], [0, 0, 1, 1], [], []>} : vector<128x44xbf16>, vector<44x32xbf16>, vector<128x32xf32> -> vector<128x32xf32>
    %c56 = arith.constant 56 : index
    %c0_42 = arith.constant 0 : index
    %99 = vector.load %arg6[%c56, %c0_42] : memref<72x128xf32, #tpu.memory_space<vmem>>, vector<1x32xf32>
    %100 = vector.broadcast %99 : vector<1x32xf32> to vector<128x32xf32>
    %101 = arith.addf %98, %100 : vector<128x32xf32>
    %cst_43 = arith.constant 0.000000e+00 : f32
    %102 = vector.broadcast %cst_43 : f32 to vector<128x32xf32>
    %103 = arith.maximumf %101, %102 : vector<128x32xf32>
    %c384 = arith.constant 384 : index
    %c0_44 = arith.constant 0 : index
    %104 = vector.load %arg5[%c384, %c0_44] : memref<400x128xbf16, #tpu.memory_space<vmem>>, vector<8x32xbf16>
    %105 = arith.truncf %103 : vector<128x32xf32> to vector<128x32xbf16>
    %cst_45 = arith.constant dense<0.000000e+00> : vector<8x128xf32>
    %106 = tpu.matmul %104, %105, %cst_45 {dimension_numbers = #tpu.dot_dimension_numbers<[1], [1], [0], [0], [0, 0, 1, 0], [], []>} : vector<8x32xbf16>, vector<128x32xbf16>, vector<8x128xf32> -> vector<8x128xf32>
    %107 = vector.extract_strided_slice %106 {offsets = [0, 0], sizes = [1, 128], strides = [1, 1]} : vector<8x128xf32> to vector<1x128xf32>
    %c64_46 = arith.constant 64 : index
    %c0_47 = arith.constant 0 : index
    %108 = vector.load %arg6[%c64_46, %c0_47] : memref<72x128xf32, #tpu.memory_space<vmem>>, vector<1x1xf32>
    %109 = vector.broadcast %108 : vector<1x1xf32> to vector<1x128xf32>
    %110 = arith.addf %107, %109 : vector<1x128xf32>
    %111 = arith.negf %110 : vector<1x128xf32>
    %112 = math.exp %111 : vector<1x128xf32>
    %cst_48 = arith.constant 1.000000e+00 : f32
    %113 = vector.broadcast %cst_48 : f32 to vector<1x128xf32>
    %114 = arith.addf %113, %112 : vector<1x128xf32>
    %115 = arith.divf %113, %114 : vector<1x128xf32>
    %c0_49 = arith.constant 0 : index
    %c0_50 = arith.constant 0 : index
    %116 = vector.load %arg7[%c0_49, %c0_50] : memref<1x128xf32, #tpu.memory_space<vmem>>, vector<1x128xf32>
    tpu.vector_store %arg7[%c0_49, %c0_50], %115 {strides = array<i32>} : memref<1x128xf32, #tpu.memory_space<vmem>>, vector<1x128xf32>,
    return
  }
  func.func @transform_0(%arg0: i32) -> (i32, i32, i32) {
    %c0_i32 = arith.constant 0 : i32
    %c0_i32_0 = arith.constant 0 : i32
    %c0_i32_1 = arith.constant 0 : i32
    return %c0_i32, %arg0, %c0_i32_0 : i32, i32, i32
  }
  func.func @transform_1(%arg0: i32) -> (i32, i32, i32) {
    %c0_i32 = arith.constant 0 : i32
    %c0_i32_0 = arith.constant 0 : i32
    %c0_i32_1 = arith.constant 0 : i32
    return %c0_i32, %arg0, %c0_i32_0 : i32, i32, i32
  }
  func.func @transform_2(%arg0: i32) -> (i32, i32, i32) {
    %c0_i32 = arith.constant 0 : i32
    %c0_i32_0 = arith.constant 0 : i32
    %c0_i32_1 = arith.constant 0 : i32
    return %c0_i32, %arg0, %c0_i32_0 : i32, i32, i32
  }
  func.func @transform_3(%arg0: i32) -> (i32, i32) {
    %c0_i32 = arith.constant 0 : i32
    %c0_i32_0 = arith.constant 0 : i32
    return %arg0, %c0_i32 : i32, i32
  }
  func.func @transform_4(%arg0: i32) -> (i32, i32) {
    %c0_i32 = arith.constant 0 : i32
    %c0_i32_0 = arith.constant 0 : i32
    %c0_i32_1 = arith.constant 0 : i32
    return %c0_i32, %c0_i32_0 : i32, i32
  }
  func.func @transform_5(%arg0: i32) -> (i32, i32) {
    %c0_i32 = arith.constant 0 : i32
    %c0_i32_0 = arith.constant 0 : i32
    %c0_i32_1 = arith.constant 0 : i32
    return %c0_i32, %c0_i32_0 : i32, i32
  }
  func.func @transform_6(%arg0: i32) -> (i32, i32) {
    %c0_i32 = arith.constant 0 : i32
    %c0_i32_0 = arith.constant 0 : i32
    return %c0_i32, %arg0 : i32, i32
  }
}

</mosaic_0001>

<llo_original>
// kernel: tpu_custom_call.1
$region0: #{tpu_custom_call.1}
  #allocation0 [shape = 'u32[]', space=smem, size = 0x4, offset = 0x4, fixed_abs, tag = 'smem constant byte address 0x4 - core index']
  #allocation1 [shape = 'u32[144,128]{1,0:T(1,128)}', space=vmem, size = 0x12000, scoped, tag = 'internal scratch']
  %s0 = inlined_call_operand.vmem [shape: bf16[3,256,51], index: 0, kind: input, shape index: {}]
  %s1 = inlined_call_operand.vmem [shape: bf16[3,256,32], index: 1, kind: input, shape index: {}]
  %s2 = inlined_call_operand.vmem [shape: bf16[3,256,32], index: 2, kind: input, shape index: {}]
  %s3 = inlined_call_operand.vmem [shape: bf16[256,12], index: 3, kind: input, shape index: {}]
  %s4 = inlined_call_operand.vmem [shape: bf16[400,128], index: 4, kind: input, shape index: {}]
  %s5 = inlined_call_operand.vmem [shape: f32[72,128], index: 5, kind: input, shape index: {}]
  %s6 = inlined_call_operand.hbm [shape: f32[1,256], index: 6, kind: output, shape index: {}]
  %s7 = sld [smem:[#allocation0]]
  $region180: #{tpu_custom_call.1} parent=0
    _
  %s9 = ssub.s32 1, %s7
  %s10 = scalar_select 0, %s9, %s7
  $region1: #{tpu_custom_call.1} parent=0
    #allocation2 [shape = 'u8[196608]{0}', space=vmem, size = 0x30000, scoped, tag = 'input window, operand 0']
    #allocation3 [shape = 'u8[196608]{0}', space=vmem, size = 0x30000, scoped, tag = 'input window, operand 1']
    #allocation4 [shape = 'u8[196608]{0}', space=vmem, size = 0x30000, scoped, tag = 'input window, operand 2']
    #allocation5 [shape = 'u8[1024]{0}', space=vmem, size = 0x400, scoped, tag = 'output window, operand 0']
    #allocation6 [shape = 's32[2]{0}', space=sflag, size = 0x8, scoped, tag = 'scoped memory for tpu_custom_call.1']
    %11 = vsyncpa [#allocation6], 0
    %s12 = scalar_lea.sflag [#allocation6], 1
    %13 = vsyncpa %s12, 0
    loop: start=0, step=1, limit=4
    $region2: #{tpu_custom_call.1} parent=1 // loop_pre_header
      _
    $region3: #{tpu_custom_call.1} parent=1 // loop_header
      %s15 = sphi 0, %s19
      %p16 = scmp.ge.s32.totalorder %s15, 4
      %s25 = sphi 0, %s27
      %s28 = sphi 0, %s25
      %s29 = sphi 0, %s28
      %s45 = sphi 0, %s29
      %s51 = sphi 0, %s53
      %s54 = sphi 0, %s51
      %s55 = sphi 0, %s54
      %s71 = sphi 0, %s55
      %s77 = sphi 0, %s79
      %s80 = sphi 0, %s77
      %s81 = sphi 0, %s80
      %s97 = sphi 0, %s81
      %s103 = sphi 0, %s105
      %s106 = sphi 0, %s103
      %s107 = sphi 0, %s106
      %s123 = sphi 0, %s107
      %s127 = sphi 0, %s127
      %s129 = sphi 0, %s127
      %s130 = sphi 0, %s129
      %s144 = sphi 0, %s130
      %s148 = sphi 0, %s148
      %s150 = sphi 0, %s148
      %s151 = sphi 0, %s150
      %s165 = sphi 0, %s151
      %s171 = sphi 0, %s173
      %s174 = sphi 0, %s171
      %s175 = sphi 0, %s174
      %s191 = sphi 0, %s175
    $region4: #{tpu_custom_call.1} parent=1 // loop_header_branch
      %18 = sbr.rel (%p16) target = $region8
    $region5: #{tpu_custom_call.1} parent=1 // loop_body
      %s20 = ssub.s32 %s15, 1
      %s21 = ssub.s32 %s15, 2
      %s22 = sadd.s32 %s15, 1
      %s23 = ssub.s32 %s15, %s22
      %p24 = scmp.eq.s32.totalorder %s23, 0
      %s26 = sadd.s32 %s25, 1
      %s27 = scalar_select %p24, %s25, %s26
      %p30 = pneg %p24
      %p31 = scmp.eq.s32.totalorder %s15, 1
      %p32 = por %p30, %p31
      %p33 = scmp.ne.s32.totalorder %s25, %s28
      %p34 = scmp.eq.s32.totalorder %s15, 0
      %p35 = por %p33, %p34
      %p36 = scmp.ne.s32.totalorder %s25, %s28
      %p37 = scmp.eq.s32.totalorder %s20, 1
      %p38 = por %p36, %p37
      %p39 = scmp.ne.s32.totalorder %s28, %s29
      %p40 = scmp.eq.s32.totalorder %s20, 0
      %p41 = por %p39, %p40
      %p42 = scmp.ne.s32.totalorder %s28, %s29
      %p43 = scmp.eq.s32.totalorder %s21, 1
      %p44 = por %p42, %p43
      %p46 = scmp.ne.s32.totalorder %s29, %s45
      %p47 = scmp.eq.s32.totalorder %s21, 0
      %p48 = por %p46, %p47
      %s49 = ssub.s32 %s15, %s22
      %p50 = scmp.eq.s32.totalorder %s49, 0
      %s52 = sadd.s32 %s51, 1
      %s53 = scalar_select %p50, %s51, %s52
      %p56 = pneg %p50
      %p57 = scmp.eq.s32.totalorder %s15, 1
      %p58 = por %p56, %p57
      %p59 = scmp.ne.s32.totalorder %s51, %s54
      %p60 = scmp.eq.s32.totalorder %s15, 0
      %p61 = por %p59, %p60
      %p62 = scmp.ne.s32.totalorder %s51, %s54
      %p63 = scmp.eq.s32.totalorder %s20, 1
      %p64 = por %p62, %p63
      %p65 = scmp.ne.s32.totalorder %s54, %s55
      %p66 = scmp.eq.s32.totalorder %s20, 0
      %p67 = por %p65, %p66
      %p68 = scmp.ne.s32.totalorder %s54, %s55
      %p69 = scmp.eq.s32.totalorder %s21, 1
      %p70 = por %p68, %p69
      %p72 = scmp.ne.s32.totalorder %s55, %s71
      %p73 = scmp.eq.s32.totalorder %s21, 0
      %p74 = por %p72, %p73
      %s75 = ssub.s32 %s15, %s22
      %p76 = scmp.eq.s32.totalorder %s75, 0
      %s78 = sadd.s32 %s77, 1
      %s79 = scalar_select %p76, %s77, %s78
      %p82 = pneg %p76
      %p83 = scmp.eq.s32.totalorder %s15, 1
      %p84 = por %p82, %p83
      %p85 = scmp.ne.s32.totalorder %s77, %s80
      %p86 = scmp.eq.s32.totalorder %s15, 0
      %p87 = por %p85, %p86
      %p88 = scmp.ne.s32.totalorder %s77, %s80
      %p89 = scmp.eq.s32.totalorder %s20, 1
      %p90 = por %p88, %p89
      %p91 = scmp.ne.s32.totalorder %s80, %s81
      %p92 = scmp.eq.s32.totalorder %s20, 0
      %p93 = por %p91, %p92
      %p94 = scmp.ne.s32.totalorder %s80, %s81
      %p95 = scmp.eq.s32.totalorder %s21, 1
      %p96 = por %p94, %p95
      %p98 = scmp.ne.s32.totalorder %s81, %s97
      %p99 = scmp.eq.s32.totalorder %s21, 0
      %p100 = por %p98, %p99
      %s101 = ssub.s32 %s15, %s22
      %p102 = scmp.eq.s32.totalorder %s101, 0
      %s104 = sadd.s32 %s103, 1
      %s105 = scalar_select %p102, %s103, %s104
      %p108 = pneg %p102
      %p109 = scmp.eq.s32.totalorder %s15, 1
      %p110 = por %p108, %p109
      %p111 = scmp.ne.s32.totalorder %s103, %s106
      %p112 = scmp.eq.s32.totalorder %s15, 0
      %p113 = por %p111, %p112
      %p114 = scmp.ne.s32.totalorder %s103, %s106
      %p115 = scmp.eq.s32.totalorder %s20, 1
      %p116 = por %p114, %p115
      %p117 = scmp.ne.s32.totalorder %s106, %s107
      %p118 = scmp.eq.s32.totalorder %s20, 0
      %p119 = por %p117, %p118
      %p120 = scmp.ne.s32.totalorder %s106, %s107
      %p121 = scmp.eq.s32.totalorder %s21, 1
      %p122 = por %p120, %p121
      %p124 = scmp.ne.s32.totalorder %s107, %s123
      %p125 = scmp.eq.s32.totalorder %s21, 0
      %p126 = por %p124, %p125
      %s128 = sadd.s32 %s127, 1
      %p131 = scmp.eq.s32.totalorder %s15, 1
      %p132 = scmp.ne.s32.totalorder %s127, %s129
      %p133 = scmp.eq.s32.totalorder %s15, 0
      %p134 = por %p132, %p133
      %p135 = scmp.ne.s32.totalorder %s127, %s129
      %p136 = scmp.eq.s32.totalorder %s20, 1
      %p137 = por %p135, %p136
      %p138 = scmp.ne.s32.totalorder %s129, %s130
      %p139 = scmp.eq.s32.totalorder %s20, 0
      %p140 = por %p138, %p139
      %p141 = scmp.ne.s32.totalorder %s129, %s130
      %p142 = scmp.eq.s32.totalorder %s21, 1
      %p143 = por %p141, %p142
      %p145 = scmp.ne.s32.totalorder %s130, %s144
      %p146 = scmp.eq.s32.totalorder %s21, 0
      %p147 = por %p145, %p146
      %s149 = sadd.s32 %s148, 1
      %p152 = scmp.eq.s32.totalorder %s15, 1
      %p153 = scmp.ne.s32.totalorder %s148, %s150
      %p154 = scmp.eq.s32.totalorder %s15, 0
      %p155 = por %p153, %p154
      %p156 = scmp.ne.s32.totalorder %s148, %s150
      %p157 = scmp.eq.s32.totalorder %s20, 1
      %p158 = por %p156, %p157
      %p159 = scmp.ne.s32.totalorder %s150, %s151
      %p160 = scmp.eq.s32.totalorder %s20, 0
      %p161 = por %p159, %p160
      %p162 = scmp.ne.s32.totalorder %s150, %s151
      %p163 = scmp.eq.s32.totalorder %s21, 1
      %p164 = por %p162, %p163
      %p166 = scmp.ne.s32.totalorder %s151, %s165
      %p167 = scmp.eq.s32.totalorder %s21, 0
      %p168 = por %p166, %p167
      %s169 = ssub.s32 %s15, %s22
      %p170 = scmp.eq.s32.totalorder %s169, 0
      %s172 = sadd.s32 %s171, 1
      %s173 = scalar_select %p170, %s171, %s172
      %p176 = pneg %p170
      %p177 = scmp.eq.s32.totalorder %s15, 1
      %p178 = por %p176, %p177
      %p179 = scmp.ne.s32.totalorder %s171, %s174
      %p180 = scmp.eq.s32.totalorder %s15, 0
      %p181 = por %p179, %p180
      %p182 = scmp.ne.s32.totalorder %s171, %s174
      %p183 = scmp.eq.s32.totalorder %s20, 1
      %p184 = por %p182, %p183
      %p185 = scmp.ne.s32.totalorder %s174, %s175
      %p186 = scmp.eq.s32.totalorder %s20, 0
      %p187 = por %p185, %p186
      %p188 = scmp.ne.s32.totalorder %s174, %s175
      %p189 = scmp.eq.s32.totalorder %s21, 1
      %p190 = por %p188, %p189
      %p192 = scmp.ne.s32.totalorder %s175, %s191
      %p193 = scmp.eq.s32.totalorder %s21, 0
      %p194 = por %p192, %p193
      %p195 = scmp.le.s32.totalorder 1, %s15
      %p196 = scmp.lt.s32.totalorder %s15, 3
      %p197 = pnand %p195, %p196
      %p198 = pneg %p197
      // Predicated region
      $region9: #{tpu_custom_call.1} parent=5 // pred_check
        _
      $region10: #{tpu_custom_call.1} parent=5 // pred_check_branch
        %200 = sbr.rel (%p197) target = $region12
      $region11: #{tpu_custom_call.1} parent=5 // pred_region
        %s201 = ssub.s32 %s15, 1
        // Predicated region
        $region13: #{tpu_custom_call.1} parent=11 // pred_check
          %p202 = pneg %p140
        $region14: #{tpu_custom_call.1} parent=11 // pred_check_branch
          %204 = sbr.rel (%p202) target = $region16
        $region15: #{tpu_custom_call.1} parent=11 // pred_region
          _
        $region16: #{tpu_custom_call.1} parent=11 // pred_fallthru
          _
        // Predicated region
        $region17: #{tpu_custom_call.1} parent=11 // pred_check
          %p205 = pneg %p161
        $region18: #{tpu_custom_call.1} parent=11 // pred_check_branch
          %207 = sbr.rel (%p205) target = $region20
        $region19: #{tpu_custom_call.1} parent=11 // pred_region
          _
        $region20: #{tpu_custom_call.1} parent=11 // pred_fallthru
          _
      $region12: #{tpu_custom_call.1} parent=5 // pred_fallthru
        _
      %p208 = scmp.lt.s32.totalorder %s15, 2
      // Predicated region
      $region21: #{tpu_custom_call.1} parent=5 // pred_check
        %p209 = pneg %p208
      $region22: #{tpu_custom_call.1} parent=5 // pred_check_branch
        %211 = sbr.rel (%p209) target = $region24
      $region23: #{tpu_custom_call.1} parent=5 // pred_region
        // Predicated region
        $region25: #{tpu_custom_call.1} parent=23 // pred_check
          %p212 = pneg %p35
        $region26: #{tpu_custom_call.1} parent=23 // pred_check_branch
          %214 = sbr.rel (%p212) target = $region28
        $region27: #{tpu_custom_call.1} parent=23 // pred_region
          %s215 = sand.u32 %s25, 1
          %s216 = sand.u32 %s25, 1
          %s217 = smul.addr %s216, 192
          %s218 = scalar_lea.vmem [#allocation2], %s217
          %s219 = smul.u32 16, %s15
          %s220 = smul.addr %s219, 4
          %s221 = scalar_lea.vmem %s0, %s220
          // Predicated region
          $region29: #{tpu_custom_call.1} parent=27 // pred_check
            _
          $region30: #{tpu_custom_call.1} parent=27 // pred_check_branch
            %223 = sbr.rel (0) target = $region32
          $region31: #{tpu_custom_call.1} parent=27 // pred_region
            // Predicated region
            $region33: #{tpu_custom_call.1} parent=31 // pred_check
              _
            $region34: #{tpu_custom_call.1} parent=31 // pred_check_branch
              %225 = sbr.rel target = $region36
            $region35: #{tpu_custom_call.1} parent=31 // pred_region
              // Predicated region
              $region48: #{tpu_custom_call.1} parent=35 // pred_check
                _
              $region49: #{tpu_custom_call.1} parent=35 // pred_check_branch
                %334 = sbr.rel (0) target = $region51
              $region50: #{tpu_custom_call.1} parent=35 // pred_region
                loop: start=0, step=1, limit=1
                $region52: #{tpu_custom_call.1} parent=50 // loop_pre_header
                  _
                $region53: #{tpu_custom_call.1} parent=50 // loop_header
                  %s336 = sphi 0, %s340
                  %p337 = scmp.ge.s32.totalorder %s336, 1
                  %s341 = sphi %s221, %s221
                  %s342 = sphi %s218, %s218
                $region54: #{tpu_custom_call.1} parent=50 // loop_header_branch
                  %339 = sbr.rel (%p337) target = $region58
                $region55: #{tpu_custom_call.1} parent=50 // loop_body
                  _
                $region56: #{tpu_custom_call.1} parent=50 // loop_footer
                  %s340 = sadd.s32 1, %s336
                $region57: #{tpu_custom_call.1} parent=50 // loop_footer_branch
                  %335 = sbr.rel target = $region53
                $region58: #{tpu_custom_call.1} parent=50 // loop_exit
                  _
                loop: start=0, step=1, limit=1
                $region59: #{tpu_custom_call.1} parent=50 // loop_pre_header
                  _
                $region60: #{tpu_custom_call.1} parent=50 // loop_header
                  %s345 = sphi 0, %s349
                  %p346 = scmp.ge.s32.totalorder %s345, 1
                  %s350 = sphi %s221, %s221
                  %s351 = sphi %s218, %s218
                $region61: #{tpu_custom_call.1} parent=50 // loop_header_branch
                  %348 = sbr.rel (%p346) target = $region65
                $region62: #{tpu_custom_call.1} parent=50 // loop_body
                  %v352 = vld [vmem:[%s350] sm:$0xf]
                  %353 = vst [vmem:[%s351] sm:$0xf] %v352
                  %v354 = vld [vmem:[%s350 + $0x4] sm:$0xf]
                  %355 = vst [vmem:[%s351 + $0x4] sm:$0xf] %v354
                  %v356 = vld [vmem:[%s350 + $0x8] sm:$0xf]
                  %357 = vst [vmem:[%s351 + $0x8] sm:$0xf] %v356
                  %v358 = vld [vmem:[%s350 + $0xc] sm:$0xf]
                  %359 = vst [vmem:[%s351 + $0xc] sm:$0xf] %v358
                  %v360 = vld [vmem:[%s350 + $0x10] sm:$0xf]
                  %361 = vst [vmem:[%s351 + $0x10] sm:$0xf] %v360
                  %v362 = vld [vmem:[%s350 + $0x14] sm:$0xf]
                  %363 = vst [vmem:[%s351 + $0x14] sm:$0xf] %v362
                  %v364 = vld [vmem:[%s350 + $0x18] sm:$0xf]
                  %365 = vst [vmem:[%s351 + $0x18] sm:$0xf] %v364
                  %v366 = vld [vmem:[%s350 + $0x1c] sm:$0xf]
                  %367 = vst [vmem:[%s351 + $0x1c] sm:$0xf] %v366
                  %v368 = vld [vmem:[%s350 + $0x20] sm:$0xf]
                  %369 = vst [vmem:[%s351 + $0x20] sm:$0xf] %v368
                  %v370 = vld [vmem:[%s350 + $0x24] sm:$0xf]
                  %371 = vst [vmem:[%s351 + $0x24] sm:$0xf] %v370
                  %v372 = vld [vmem:[%s350 + $0x28] sm:$0xf]
                  %373 = vst [vmem:[%s351 + $0x28] sm:$0xf] %v372
                  %v374 = vld [vmem:[%s350 + $0x2c] sm:$0xf]
                  %375 = vst [vmem:[%s351 + $0x2c] sm:$0xf] %v374
                  %v376 = vld [vmem:[%s350 + $0x30] sm:$0xf]
                  %377 = vst [vmem:[%s351 + $0x30] sm:$0xf] %v376
                  %v378 = vld [vmem:[%s350 + $0x34] sm:$0xf]
                  %379 = vst [vmem:[%s351 + $0x34] sm:$0xf] %v378
                  %v380 = vld [vmem:[%s350 + $0x38] sm:$0xf]
                  %381 = vst [vmem:[%s351 + $0x38] sm:$0xf] %v380
                  %v382 = vld [vmem:[%s350 + $0x3c] sm:$0xf]
                  %383 = vst [vmem:[%s351 + $0x3c] sm:$0xf] %v382
                  %v384 = vld [vmem:[%s350 + $0x80] sm:$0xf]
                  %385 = vst [vmem:[%s351 + $0x40] sm:$0xf] %v384
                  %v386 = vld [vmem:[%s350 + $0x84] sm:$0xf]
                  %387 = vst [vmem:[%s351 + $0x44] sm:$0xf] %v386
                  %v388 = vld [vmem:[%s350 + $0x88] sm:$0xf]
                  %389 = vst [vmem:[%s351 + $0x48] sm:$0xf] %v388
                  %v390 = vld [vmem:[%s350 + $0x8c] sm:$0xf]
                  %391 = vst [vmem:[%s351 + $0x4c] sm:$0xf] %v390
                  %v392 = vld [vmem:[%s350 + $0x90] sm:$0xf]
                  %393 = vst [vmem:[%s351 + $0x50] sm:$0xf] %v392
                  %v394 = vld [vmem:[%s350 + $0x94] sm:$0xf]
                  %395 = vst [vmem:[%s351 + $0x54] sm:$0xf] %v394
                  %v396 = vld [vmem:[%s350 + $0x98] sm:$0xf]
                  %397 = vst [vmem:[%s351 + $0x58] sm:$0xf] %v396
                  %v398 = vld [vmem:[%s350 + $0x9c] sm:$0xf]
                  %399 = vst [vmem:[%s351 + $0x5c] sm:$0xf] %v398
                  %v400 = vld [vmem:[%s350 + $0xa0] sm:$0xf]
                  %401 = vst [vmem:[%s351 + $0x60] sm:$0xf] %v400
                  %v402 = vld [vmem:[%s350 + $0xa4] sm:$0xf]
                  %403 = vst [vmem:[%s351 + $0x64] sm:$0xf] %v402
                  %v404 = vld [vmem:[%s350 + $0xa8] sm:$0xf]
                  %405 = vst [vmem:[%s351 + $0x68] sm:$0xf] %v404
                  %v406 = vld [vmem:[%s350 + $0xac] sm:$0xf]
                  %407 = vst [vmem:[%s351 + $0x6c] sm:$0xf] %v406
                  %v408 = vld [vmem:[%s350 + $0xb0] sm:$0xf]
                  %409 = vst [vmem:[%s351 + $0x70] sm:$0xf] %v408
                  %v410 = vld [vmem:[%s350 + $0xb4] sm:$0xf]
                  %411 = vst [vmem:[%s351 + $0x74] sm:$0xf] %v410
                  %v412 = vld [vmem:[%s350 + $0xb8] sm:$0xf]
                  %413 = vst [vmem:[%s351 + $0x78] sm:$0xf] %v412
                  %v414 = vld [vmem:[%s350 + $0xbc] sm:$0xf]
                  %415 = vst [vmem:[%s351 + $0x7c] sm:$0xf] %v414
                  %v416 = vld [vmem:[%s350 + $0x100] sm:$0xf]
                  %417 = vst [vmem:[%s351 + $0x80] sm:$0xf] %v416
                  %v418 = vld [vmem:[%s350 + $0x104] sm:$0xf]
                  %419 = vst [vmem:[%s351 + $0x84] sm:$0xf] %v418
                  %v420 = vld [vmem:[%s350 + $0x108] sm:$0xf]
                  %421 = vst [vmem:[%s351 + $0x88] sm:$0xf] %v420
                  %v422 = vld [vmem:[%s350 + $0x10c] sm:$0xf]
                  %423 = vst [vmem:[%s351 + $0x8c] sm:$0xf] %v422
                  %v424 = vld [vmem:[%s350 + $0x110] sm:$0xf]
                  %425 = vst [vmem:[%s351 + $0x90] sm:$0xf] %v424
                  %v426 = vld [vmem:[%s350 + $0x114] sm:$0xf]
                  %427 = vst [vmem:[%s351 + $0x94] sm:$0xf] %v426
                  %v428 = vld [vmem:[%s350 + $0x118] sm:$0xf]
                  %429 = vst [vmem:[%s351 + $0x98] sm:$0xf] %v428
                  %v430 = vld [vmem:[%s350 + $0x11c] sm:$0xf]
                  %431 = vst [vmem:[%s351 + $0x9c] sm:$0xf] %v430
                  %v432 = vld [vmem:[%s350 + $0x120] sm:$0xf]
                  %433 = vst [vmem:[%s351 + $0xa0] sm:$0xf] %v432
                  %v434 = vld [vmem:[%s350 + $0x124] sm:$0xf]
                  %435 = vst [vmem:[%s351 + $0xa4] sm:$0xf] %v434
                  %v436 = vld [vmem:[%s350 + $0x128] sm:$0xf]
                  %437 = vst [vmem:[%s351 + $0xa8] sm:$0xf] %v436
                  %v438 = vld [vmem:[%s350 + $0x12c] sm:$0xf]
                  %439 = vst [vmem:[%s351 + $0xac] sm:$0xf] %v438
                  %v440 = vld [vmem:[%s350 + $0x130] sm:$0xf]
                  %441 = vst [vmem:[%s351 + $0xb0] sm:$0xf] %v440
                  %v442 = vld [vmem:[%s350 + $0x134] sm:$0xf]
                  %443 = vst [vmem:[%s351 + $0xb4] sm:$0xf] %v442
                  %v444 = vld [vmem:[%s350 + $0x138] sm:$0xf]
                  %445 = vst [vmem:[%s351 + $0xb8] sm:$0xf] %v444
                  %v446 = vld [vmem:[%s350 + $0x13c] sm:$0xf]
                  %447 = vst [vmem:[%s351 + $0xbc] sm:$0xf] %v446
                $region63: #{tpu_custom_call.1} parent=50 // loop_footer
                  %s349 = sadd.s32 1, %s345
                $region64: #{tpu_custom_call.1} parent=50 // loop_footer_branch
                  %344 = sbr.rel target = $region60
                $region65: #{tpu_custom_call.1} parent=50 // loop_exit
                  _
              $region51: #{tpu_custom_call.1} parent=35 // pred_fallthru
                _
            $region36: #{tpu_custom_call.1} parent=31 // pred_fallthru
              _
            // Predicated region
            $region37: #{tpu_custom_call.1} parent=31 // pred_check
              _
            $region38: #{tpu_custom_call.1} parent=31 // pred_check_branch
              %227 = sbr.rel (0) target = $region40
            $region39: #{tpu_custom_call.1} parent=31 // pred_region
              loop: start=0, step=1, limit=1
              $region41: #{tpu_custom_call.1} parent=39 // loop_pre_header
                _
              $region42: #{tpu_custom_call.1} parent=39 // loop_header
                %s230 = sphi 0, %s234
                %p231 = scmp.ge.s32.totalorder %s230, 1
                %s235 = sphi %s221, %s221
                %s236 = sphi %s218, %s218
              $region43: #{tpu_custom_call.1} parent=39 // loop_header_branch
                %233 = sbr.rel (%p231) target = $region47
              $region44: #{tpu_custom_call.1} parent=39 // loop_body
                %v237 = vld [vmem:[%s235] sm:$0xf]
                %238 = vst [vmem:[%s236] sm:$0xf] %v237
                %v239 = vld [vmem:[%s235 + $0x4] sm:$0xf]
                %240 = vst [vmem:[%s236 + $0x4] sm:$0xf] %v239
                %v241 = vld [vmem:[%s235 + $0x8] sm:$0xf]
                %242 = vst [vmem:[%s236 + $0x8] sm:$0xf] %v241
                %v243 = vld [vmem:[%s235 + $0xc] sm:$0xf]
                %244 = vst [vmem:[%s236 + $0xc] sm:$0xf] %v243
                %v245 = vld [vmem:[%s235 + $0x10] sm:$0xf]
                %246 = vst [vmem:[%s236 + $0x10] sm:$0xf] %v245
                %v247 = vld [vmem:[%s235 + $0x14] sm:$0xf]
                %248 = vst [vmem:[%s236 + $0x14] sm:$0xf] %v247
                %v249 = vld [vmem:[%s235 + $0x18] sm:$0xf]
                %250 = vst [vmem:[%s236 + $0x18] sm:$0xf] %v249
                %v251 = vld [vmem:[%s235 + $0x1c] sm:$0xf]
                %252 = vst [vmem:[%s236 + $0x1c] sm:$0xf] %v251
                %v253 = vld [vmem:[%s235 + $0x20] sm:$0xf]
                %254 = vst [vmem:[%s236 + $0x20] sm:$0xf] %v253
                %v255 = vld [vmem:[%s235 + $0x24] sm:$0xf]
                %256 = vst [vmem:[%s236 + $0x24] sm:$0xf] %v255
                %v257 = vld [vmem:[%s235 + $0x28] sm:$0xf]
                %258 = vst [vmem:[%s236 + $0x28] sm:$0xf] %v257
                %v259 = vld [vmem:[%s235 + $0x2c] sm:$0xf]
                %260 = vst [vmem:[%s236 + $0x2c] sm:$0xf] %v259
                %v261 = vld [vmem:[%s235 + $0x30] sm:$0xf]
                %262 = vst [vmem:[%s236 + $0x30] sm:$0xf] %v261
                %v263 = vld [vmem:[%s235 + $0x34] sm:$0xf]
                %264 = vst [vmem:[%s236 + $0x34] sm:$0xf] %v263
                %v265 = vld [vmem:[%s235 + $0x38] sm:$0xf]
                %266 = vst [vmem:[%s236 + $0x38] sm:$0xf] %v265
                %v267 = vld [vmem:[%s235 + $0x3c] sm:$0xf]
                %268 = vst [vmem:[%s236 + $0x3c] sm:$0xf] %v267
                %v269 = vld [vmem:[%s235 + $0x80] sm:$0xf]
                %270 = vst [vmem:[%s236 + $0x40] sm:$0xf] %v269
                %v271 = vld [vmem:[%s235 + $0x84] sm:$0xf]
                %272 = vst [vmem:[%s236 + $0x44] sm:$0xf] %v271
                %v273 = vld [vmem:[%s235 + $0x88] sm:$0xf]
                %274 = vst [vmem:[%s236 + $0x48] sm:$0xf] %v273
                %v275 = vld [vmem:[%s235 + $0x8c] sm:$0xf]
                %276 = vst [vmem:[%s236 + $0x4c] sm:$0xf] %v275
                %v277 = vld [vmem:[%s235 + $0x90] sm:$0xf]
                %278 = vst [vmem:[%s236 + $0x50] sm:$0xf] %v277
                %v279 = vld [vmem:[%s235 + $0x94] sm:$0xf]
                %280 = vst [vmem:[%s236 + $0x54] sm:$0xf] %v279
                %v281 = vld [vmem:[%s235 + $0x98] sm:$0xf]
                %282 = vst [vmem:[%s236 + $0x58] sm:$0xf] %v281
                %v283 = vld [vmem:[%s235 + $0x9c] sm:$0xf]
                %284 = vst [vmem:[%s236 + $0x5c] sm:$0xf] %v283
                %v285 = vld [vmem:[%s235 + $0xa0] sm:$0xf]
                %286 = vst [vmem:[%s236 + $0x60] sm:$0xf] %v285
                %v287 = vld [vmem:[%s235 + $0xa4] sm:$0xf]
                %288 = vst [vmem:[%s236 + $0x64] sm:$0xf] %v287
                %v289 = vld [vmem:[%s235 + $0xa8] sm:$0xf]
                %290 = vst [vmem:[%s236 + $0x68] sm:$0xf] %v289
                %v291 = vld [vmem:[%s235 + $0xac] sm:$0xf]
                %292 = vst [vmem:[%s236 + $0x6c] sm:$0xf] %v291
                %v293 = vld [vmem:[%s235 + $0xb0] sm:$0xf]
                %294 = vst [vmem:[%s236 + $0x70] sm:$0xf] %v293
                %v295 = vld [vmem:[%s235 + $0xb4] sm:$0xf]
                %296 = vst [vmem:[%s236 + $0x74] sm:$0xf] %v295
                %v297 = vld [vmem:[%s235 + $0xb8] sm:$0xf]
                %298 = vst [vmem:[%s236 + $0x78] sm:$0xf] %v297
                %v299 = vld [vmem:[%s235 + $0xbc] sm:$0xf]
                %300 = vst [vmem:[%s236 + $0x7c] sm:$0xf] %v299
                %v301 = vld [vmem:[%s235 + $0x100] sm:$0xf]
                %302 = vst [vmem:[%s236 + $0x80] sm:$0xf] %v301
                %v303 = vld [vmem:[%s235 + $0x104] sm:$0xf]
                %304 = vst [vmem:[%s236 + $0x84] sm:$0xf] %v303
                %v305 = vld [vmem:[%s235 + $0x108] sm:$0xf]
                %306 = vst [vmem:[%s236 + $0x88] sm:$0xf] %v305
                %v307 = vld [vmem:[%s235 + $0x10c] sm:$0xf]
                %308 = vst [vmem:[%s236 + $0x8c] sm:$0xf] %v307
                %v309 = vld [vmem:[%s235 + $0x110] sm:$0xf]
                %310 = vst [vmem:[%s236 + $0x90] sm:$0xf] %v309
                %v311 = vld [vmem:[%s235 + $0x114] sm:$0xf]
                %312 = vst [vmem:[%s236 + $0x94] sm:$0xf] %v311
                %v313 = vld [vmem:[%s235 + $0x118] sm:$0xf]
                %314 = vst [vmem:[%s236 + $0x98] sm:$0xf] %v313
                %v315 = vld [vmem:[%s235 + $0x11c] sm:$0xf]
                %316 = vst [vmem:[%s236 + $0x9c] sm:$0xf] %v315
                %v317 = vld [vmem:[%s235 + $0x120] sm:$0xf]
                %318 = vst [vmem:[%s236 + $0xa0] sm:$0xf] %v317
                %v319 = vld [vmem:[%s235 + $0x124] sm:$0xf]
                %320 = vst [vmem:[%s236 + $0xa4] sm:$0xf] %v319
                %v321 = vld [vmem:[%s235 + $0x128] sm:$0xf]
                %322 = vst [vmem:[%s236 + $0xa8] sm:$0xf] %v321
                %v323 = vld [vmem:[%s235 + $0x12c] sm:$0xf]
                %324 = vst [vmem:[%s236 + $0xac] sm:$0xf] %v323
                %v325 = vld [vmem:[%s235 + $0x130] sm:$0xf]
                %326 = vst [vmem:[%s236 + $0xb0] sm:$0xf] %v325
                %v327 = vld [vmem:[%s235 + $0x134] sm:$0xf]
                %328 = vst [vmem:[%s236 + $0xb4] sm:$0xf] %v327
                %v329 = vld [vmem:[%s235 + $0x138] sm:$0xf]
                %330 = vst [vmem:[%s236 + $0xb8] sm:$0xf] %v329
                %v331 = vld [vmem:[%s235 + $0x13c] sm:$0xf]
                %332 = vst [vmem:[%s236 + $0xbc] sm:$0xf] %v331
              $region45: #{tpu_custom_call.1} parent=39 // loop_footer
                %s234 = sadd.s32 1, %s230
              $region46: #{tpu_custom_call.1} parent=39 // loop_footer_branch
                %229 = sbr.rel target = $region42
              $region47: #{tpu_custom_call.1} parent=39 // loop_exit
                _
            $region40: #{tpu_custom_call.1} parent=31 // pred_fallthru
              _
          $region32: #{tpu_custom_call.1} parent=27 // pred_fallthru
            _
          %448 = vnop
        $region28: #{tpu_custom_call.1} parent=23 // pred_fallthru
          _
        // Predicated region
        $region66: #{tpu_custom_call.1} parent=23 // pred_check
          %p449 = pneg %p61
        $region67: #{tpu_custom_call.1} parent=23 // pred_check_branch
          %451 = sbr.rel (%p449) target = $region69
        $region68: #{tpu_custom_call.1} parent=23 // pred_region
          %s452 = sand.u32 %s51, 1
          %s453 = sand.u32 %s51, 1
          %s454 = smul.addr %s453, 192
          %s455 = scalar_lea.vmem [#allocation3], %s454
          %s456 = smul.u32 16, %s15
          %s457 = smul.addr %s456, 4
          %s458 = scalar_lea.vmem %s1, %s457
          // Predicated region
          $region70: #{tpu_custom_call.1} parent=68 // pred_check
            _
          $region71: #{tpu_custom_call.1} parent=68 // pred_check_branch
            %460 = sbr.rel (0) target = $region73
          $region72: #{tpu_custom_call.1} parent=68 // pred_region
            // Predicated region
            $region74: #{tpu_custom_call.1} parent=72 // pred_check
              _
            $region75: #{tpu_custom_call.1} parent=72 // pred_check_branch
              %462 = sbr.rel target = $region77
            $region76: #{tpu_custom_call.1} parent=72 // pred_region
              // Predicated region
              $region89: #{tpu_custom_call.1} parent=76 // pred_check
                _
              $region90: #{tpu_custom_call.1} parent=76 // pred_check_branch
                %571 = sbr.rel (0) target = $region92
              $region91: #{tpu_custom_call.1} parent=76 // pred_region
                loop: start=0, step=1, limit=1
                $region93: #{tpu_custom_call.1} parent=91 // loop_pre_header
                  _
                $region94: #{tpu_custom_call.1} parent=91 // loop_header
                  %s573 = sphi 0, %s577
                  %p574 = scmp.ge.s32.totalorder %s573, 1
                  %s578 = sphi %s458, %s458
                  %s579 = sphi %s455, %s455
                $region95: #{tpu_custom_call.1} parent=91 // loop_header_branch
                  %576 = sbr.rel (%p574) target = $region99
                $region96: #{tpu_custom_call.1} parent=91 // loop_body
                  _
                $region97: #{tpu_custom_call.1} parent=91 // loop_footer
                  %s577 = sadd.s32 1, %s573
                $region98: #{tpu_custom_call.1} parent=91 // loop_footer_branch
                  %572 = sbr.rel target = $region94
                $region99: #{tpu_custom_call.1} parent=91 // loop_exit
                  _
                loop: start=0, step=1, limit=1
                $region100: #{tpu_custom_call.1} parent=91 // loop_pre_header
                  _
                $region101: #{tpu_custom_call.1} parent=91 // loop_header
                  %s582 = sphi 0, %s586
                  %p583 = scmp.ge.s32.totalorder %s582, 1
                  %s587 = sphi %s458, %s458
                  %s588 = sphi %s455, %s455
                $region102: #{tpu_custom_call.1} parent=91 // loop_header_branch
                  %585 = sbr.rel (%p583) target = $region106
                $region103: #{tpu_custom_call.1} parent=91 // loop_body
                  %v589 = vld [vmem:[%s587] sm:$0xf]
                  %590 = vst [vmem:[%s588] sm:$0xf] %v589
                  %v591 = vld [vmem:[%s587 + $0x4] sm:$0xf]
                  %592 = vst [vmem:[%s588 + $0x4] sm:$0xf] %v591
                  %v593 = vld [vmem:[%s587 + $0x8] sm:$0xf]
                  %594 = vst [vmem:[%s588 + $0x8] sm:$0xf] %v593
                  %v595 = vld [vmem:[%s587 + $0xc] sm:$0xf]
                  %596 = vst [vmem:[%s588 + $0xc] sm:$0xf] %v595
                  %v597 = vld [vmem:[%s587 + $0x10] sm:$0xf]
                  %598 = vst [vmem:[%s588 + $0x10] sm:$0xf] %v597
                  %v599 = vld [vmem:[%s587 + $0x14] sm:$0xf]
                  %600 = vst [vmem:[%s588 + $0x14] sm:$0xf] %v599
                  %v601 = vld [vmem:[%s587 + $0x18] sm:$0xf]
                  %602 = vst [vmem:[%s588 + $0x18] sm:$0xf] %v601
                  %v603 = vld [vmem:[%s587 + $0x1c] sm:$0xf]
                  %604 = vst [vmem:[%s588 + $0x1c] sm:$0xf] %v603
                  %v605 = vld [vmem:[%s587 + $0x20] sm:$0xf]
                  %606 = vst [vmem:[%s588 + $0x20] sm:$0xf] %v605
                  %v607 = vld [vmem:[%s587 + $0x24] sm:$0xf]
                  %608 = vst [vmem:[%s588 + $0x24] sm:$0xf] %v607
                  %v609 = vld [vmem:[%s587 + $0x28] sm:$0xf]
                  %610 = vst [vmem:[%s588 + $0x28] sm:$0xf] %v609
                  %v611 = vld [vmem:[%s587 + $0x2c] sm:$0xf]
                  %612 = vst [vmem:[%s588 + $0x2c] sm:$0xf] %v611
                  %v613 = vld [vmem:[%s587 + $0x30] sm:$0xf]
                  %614 = vst [vmem:[%s588 + $0x30] sm:$0xf] %v613
                  %v615 = vld [vmem:[%s587 + $0x34] sm:$0xf]
                  %616 = vst [vmem:[%s588 + $0x34] sm:$0xf] %v615
                  %v617 = vld [vmem:[%s587 + $0x38] sm:$0xf]
                  %618 = vst [vmem:[%s588 + $0x38] sm:$0xf] %v617
                  %v619 = vld [vmem:[%s587 + $0x3c] sm:$0xf]
                  %620 = vst [vmem:[%s588 + $0x3c] sm:$0xf] %v619
                  %v621 = vld [vmem:[%s587 + $0x80] sm:$0xf]
                  %622 = vst [vmem:[%s588 + $0x40] sm:$0xf] %v621
                  %v623 = vld [vmem:[%s587 + $0x84] sm:$0xf]
                  %624 = vst [vmem:[%s588 + $0x44] sm:$0xf] %v623
                  %v625 = vld [vmem:[%s587 + $0x88] sm:$0xf]
                  %626 = vst [vmem:[%s588 + $0x48] sm:$0xf] %v625
                  %v627 = vld [vmem:[%s587 + $0x8c] sm:$0xf]
                  %628 = vst [vmem:[%s588 + $0x4c] sm:$0xf] %v627
                  %v629 = vld [vmem:[%s587 + $0x90] sm:$0xf]
                  %630 = vst [vmem:[%s588 + $0x50] sm:$0xf] %v629
                  %v631 = vld [vmem:[%s587 + $0x94] sm:$0xf]
                  %632 = vst [vmem:[%s588 + $0x54] sm:$0xf] %v631
                  %v633 = vld [vmem:[%s587 + $0x98] sm:$0xf]
                  %634 = vst [vmem:[%s588 + $0x58] sm:$0xf] %v633
                  %v635 = vld [vmem:[%s587 + $0x9c] sm:$0xf]
                  %636 = vst [vmem:[%s588 + $0x5c] sm:$0xf] %v635
                  %v637 = vld [vmem:[%s587 + $0xa0] sm:$0xf]
                  %638 = vst [vmem:[%s588 + $0x60] sm:$0xf] %v637
                  %v639 = vld [vmem:[%s587 + $0xa4] sm:$0xf]
                  %640 = vst [vmem:[%s588 + $0x64] sm:$0xf] %v639
                  %v641 = vld [vmem:[%s587 + $0xa8] sm:$0xf]
                  %642 = vst [vmem:[%s588 + $0x68] sm:$0xf] %v641
                  %v643 = vld [vmem:[%s587 + $0xac] sm:$0xf]
                  %644 = vst [vmem:[%s588 + $0x6c] sm:$0xf] %v643
                  %v645 = vld [vmem:[%s587 + $0xb0] sm:$0xf]
                  %646 = vst [vmem:[%s588 + $0x70] sm:$0xf] %v645
                  %v647 = vld [vmem:[%s587 + $0xb4] sm:$0xf]
                  %648 = vst [vmem:[%s588 + $0x74] sm:$0xf] %v647
                  %v649 = vld [vmem:[%s587 + $0xb8] sm:$0xf]
                  %650 = vst [vmem:[%s588 + $0x78] sm:$0xf] %v649
                  %v651 = vld [vmem:[%s587 + $0xbc] sm:$0xf]
                  %652 = vst [vmem:[%s588 + $0x7c] sm:$0xf] %v651
                  %v653 = vld [vmem:[%s587 + $0x100] sm:$0xf]
                  %654 = vst [vmem:[%s588 + $0x80] sm:$0xf] %v653
                  %v655 = vld [vmem:[%s587 + $0x104] sm:$0xf]
                  %656 = vst [vmem:[%s588 + $0x84] sm:$0xf] %v655
                  %v657 = vld [vmem:[%s587 + $0x108] sm:$0xf]
                  %658 = vst [vmem:[%s588 + $0x88] sm:$0xf] %v657
                  %v659 = vld [vmem:[%s587 + $0x10c] sm:$0xf]
                  %660 = vst [vmem:[%s588 + $0x8c] sm:$0xf] %v659
                  %v661 = vld [vmem:[%s587 + $0x110] sm:$0xf]
                  %662 = vst [vmem:[%s588 + $0x90] sm:$0xf] %v661
                  %v663 = vld [vmem:[%s587 + $0x114] sm:$0xf]
                  %664 = vst [vmem:[%s588 + $0x94] sm:$0xf] %v663
                  %v665 = vld [vmem:[%s587 + $0x118] sm:$0xf]
                  %666 = vst [vmem:[%s588 + $0x98] sm:$0xf] %v665
                  %v667 = vld [vmem:[%s587 + $0x11c] sm:$0xf]
                  %668 = vst [vmem:[%s588 + $0x9c] sm:$0xf] %v667
                  %v669 = vld [vmem:[%s587 + $0x120] sm:$0xf]
                  %670 = vst [vmem:[%s588 + $0xa0] sm:$0xf] %v669
                  %v671 = vld [vmem:[%s587 + $0x124] sm:$0xf]
                  %672 = vst [vmem:[%s588 + $0xa4] sm:$0xf] %v671
                  %v673 = vld [vmem:[%s587 + $0x128] sm:$0xf]
                  %674 = vst [vmem:[%s588 + $0xa8] sm:$0xf] %v673
                  %v675 = vld [vmem:[%s587 + $0x12c] sm:$0xf]
                  %676 = vst [vmem:[%s588 + $0xac] sm:$0xf] %v675
                  %v677 = vld [vmem:[%s587 + $0x130] sm:$0xf]
                  %678 = vst [vmem:[%s588 + $0xb0] sm:$0xf] %v677
                  %v679 = vld [vmem:[%s587 + $0x134] sm:$0xf]
                  %680 = vst [vmem:[%s588 + $0xb4] sm:$0xf] %v679
                  %v681 = vld [vmem:[%s587 + $0x138] sm:$0xf]
                  %682 = vst [vmem:[%s588 + $0xb8] sm:$0xf] %v681
                  %v683 = vld [vmem:[%s587 + $0x13c] sm:$0xf]
                  %684 = vst [vmem:[%s588 + $0xbc] sm:$0xf] %v683
                $region104: #{tpu_custom_call.1} parent=91 // loop_footer
                  %s586 = sadd.s32 1, %s582
                $region105: #{tpu_custom_call.1} parent=91 // loop_footer_branch
                  %581 = sbr.rel target = $region101
                $region106: #{tpu_custom_call.1} parent=91 // loop_exit
                  _
              $region92: #{tpu_custom_call.1} parent=76 // pred_fallthru
                _
            $region77: #{tpu_custom_call.1} parent=72 // pred_fallthru
              _
            // Predicated region
            $region78: #{tpu_custom_call.1} parent=72 // pred_check
              _
            $region79: #{tpu_custom_call.1} parent=72 // pred_check_branch
              %464 = sbr.rel (0) target = $region81
            $region80: #{tpu_custom_call.1} parent=72 // pred_region
              loop: start=0, step=1, limit=1
              $region82: #{tpu_custom_call.1} parent=80 // loop_pre_header
                _
              $region83: #{tpu_custom_call.1} parent=80 // loop_header
                %s467 = sphi 0, %s471
                %p468 = scmp.ge.s32.totalorder %s467, 1
                %s472 = sphi %s458, %s458
                %s473 = sphi %s455, %s455
              $region84: #{tpu_custom_call.1} parent=80 // loop_header_branch
                %470 = sbr.rel (%p468) target = $region88
              $region85: #{tpu_custom_call.1} parent=80 // loop_body
                %v474 = vld [vmem:[%s472] sm:$0xf]
                %475 = vst [vmem:[%s473] sm:$0xf] %v474
                %v476 = vld [vmem:[%s472 + $0x4] sm:$0xf]
                %477 = vst [vmem:[%s473 + $0x4] sm:$0xf] %v476
                %v478 = vld [vmem:[%s472 + $0x8] sm:$0xf]
                %479 = vst [vmem:[%s473 + $0x8] sm:$0xf] %v478
                %v480 = vld [vmem:[%s472 + $0xc] sm:$0xf]
                %481 = vst [vmem:[%s473 + $0xc] sm:$0xf] %v480
                %v482 = vld [vmem:[%s472 + $0x10] sm:$0xf]
                %483 = vst [vmem:[%s473 + $0x10] sm:$0xf] %v482
                %v484 = vld [vmem:[%s472 + $0x14] sm:$0xf]
                %485 = vst [vmem:[%s473 + $0x14] sm:$0xf] %v484
                %v486 = vld [vmem:[%s472 + $0x18] sm:$0xf]
                %487 = vst [vmem:[%s473 + $0x18] sm:$0xf] %v486
                %v488 = vld [vmem:[%s472 + $0x1c] sm:$0xf]
                %489 = vst [vmem:[%s473 + $0x1c] sm:$0xf] %v488
                %v490 = vld [vmem:[%s472 + $0x20] sm:$0xf]
                %491 = vst [vmem:[%s473 + $0x20] sm:$0xf] %v490
                %v492 = vld [vmem:[%s472 + $0x24] sm:$0xf]
                %493 = vst [vmem:[%s473 + $0x24] sm:$0xf] %v492
                %v494 = vld [vmem:[%s472 + $0x28] sm:$0xf]
                %495 = vst [vmem:[%s473 + $0x28] sm:$0xf] %v494
                %v496 = vld [vmem:[%s472 + $0x2c] sm:$0xf]
                %497 = vst [vmem:[%s473 + $0x2c] sm:$0xf] %v496
                %v498 = vld [vmem:[%s472 + $0x30] sm:$0xf]
                %499 = vst [vmem:[%s473 + $0x30] sm:$0xf] %v498
                %v500 = vld [vmem:[%s472 + $0x34] sm:$0xf]
                %501 = vst [vmem:[%s473 + $0x34] sm:$0xf] %v500
                %v502 = vld [vmem:[%s472 + $0x38] sm:$0xf]
                %503 = vst [vmem:[%s473 + $0x38] sm:$0xf] %v502
                %v504 = vld [vmem:[%s472 + $0x3c] sm:$0xf]
                %505 = vst [vmem:[%s473 + $0x3c] sm:$0xf] %v504
                %v506 = vld [vmem:[%s472 + $0x80] sm:$0xf]
                %507 = vst [vmem:[%s473 + $0x40] sm:$0xf] %v506
                %v508 = vld [vmem:[%s472 + $0x84] sm:$0xf]
                %509 = vst [vmem:[%s473 + $0x44] sm:$0xf] %v508
                %v510 = vld [vmem:[%s472 + $0x88] sm:$0xf]
                %511 = vst [vmem:[%s473 + $0x48] sm:$0xf] %v510
                %v512 = vld [vmem:[%s472 + $0x8c] sm:$0xf]
                %513 = vst [vmem:[%s473 + $0x4c] sm:$0xf] %v512
                %v514 = vld [vmem:[%s472 + $0x90] sm:$0xf]
                %515 = vst [vmem:[%s473 + $0x50] sm:$0xf] %v514
                %v516 = vld [vmem:[%s472 + $0x94] sm:$0xf]
                %517 = vst [vmem:[%s473 + $0x54] sm:$0xf] %v516
                %v518 = vld [vmem:[%s472 + $0x98] sm:$0xf]
                %519 = vst [vmem:[%s473 + $0x58] sm:$0xf] %v518
                %v520 = vld [vmem:[%s472 + $0x9c] sm:$0xf]
                %521 = vst [vmem:[%s473 + $0x5c] sm:$0xf] %v520
                %v522 = vld [vmem:[%s472 + $0xa0] sm:$0xf]
                %523 = vst [vmem:[%s473 + $0x60] sm:$0xf] %v522
                %v524 = vld [vmem:[%s472 + $0xa4] sm:$0xf]
                %525 = vst [vmem:[%s473 + $0x64] sm:$0xf] %v524
                %v526 = vld [vmem:[%s472 + $0xa8] sm:$0xf]
                %527 = vst [vmem:[%s473 + $0x68] sm:$0xf] %v526
                %v528 = vld [vmem:[%s472 + $0xac] sm:$0xf]
                %529 = vst [vmem:[%s473 + $0x6c] sm:$0xf] %v528
                %v530 = vld [vmem:[%s472 + $0xb0] sm:$0xf]
                %531 = vst [vmem:[%s473 + $0x70] sm:$0xf] %v530
                %v532 = vld [vmem:[%s472 + $0xb4] sm:$0xf]
                %533 = vst [vmem:[%s473 + $0x74] sm:$0xf] %v532
                %v534 = vld [vmem:[%s472 + $0xb8] sm:$0xf]
                %535 = vst [vmem:[%s473 + $0x78] sm:$0xf] %v534
                %v536 = vld [vmem:[%s472 + $0xbc] sm:$0xf]
                %537 = vst [vmem:[%s473 + $0x7c] sm:$0xf] %v536
                %v538 = vld [vmem:[%s472 + $0x100] sm:$0xf]
                %539 = vst [vmem:[%s473 + $0x80] sm:$0xf] %v538
                %v540 = vld [vmem:[%s472 + $0x104] sm:$0xf]
                %541 = vst [vmem:[%s473 + $0x84] sm:$0xf] %v540
                %v542 = vld [vmem:[%s472 + $0x108] sm:$0xf]
                %543 = vst [vmem:[%s473 + $0x88] sm:$0xf] %v542
                %v544 = vld [vmem:[%s472 + $0x10c] sm:$0xf]
                %545 = vst [vmem:[%s473 + $0x8c] sm:$0xf] %v544
                %v546 = vld [vmem:[%s472 + $0x110] sm:$0xf]
                %547 = vst [vmem:[%s473 + $0x90] sm:$0xf] %v546
                %v548 = vld [vmem:[%s472 + $0x114] sm:$0xf]
                %549 = vst [vmem:[%s473 + $0x94] sm:$0xf] %v548
                %v550 = vld [vmem:[%s472 + $0x118] sm:$0xf]
                %551 = vst [vmem:[%s473 + $0x98] sm:$0xf] %v550
                %v552 = vld [vmem:[%s472 + $0x11c] sm:$0xf]
                %553 = vst [vmem:[%s473 + $0x9c] sm:$0xf] %v552
                %v554 = vld [vmem:[%s472 + $0x120] sm:$0xf]
                %555 = vst [vmem:[%s473 + $0xa0] sm:$0xf] %v554
                %v556 = vld [vmem:[%s472 + $0x124] sm:$0xf]
                %557 = vst [vmem:[%s473 + $0xa4] sm:$0xf] %v556
                %v558 = vld [vmem:[%s472 + $0x128] sm:$0xf]
                %559 = vst [vmem:[%s473 + $0xa8] sm:$0xf] %v558
                %v560 = vld [vmem:[%s472 + $0x12c] sm:$0xf]
                %561 = vst [vmem:[%s473 + $0xac] sm:$0xf] %v560
                %v562 = vld [vmem:[%s472 + $0x130] sm:$0xf]
                %563 = vst [vmem:[%s473 + $0xb0] sm:$0xf] %v562
                %v564 = vld [vmem:[%s472 + $0x134] sm:$0xf]
                %565 = vst [vmem:[%s473 + $0xb4] sm:$0xf] %v564
                %v566 = vld [vmem:[%s472 + $0x138] sm:$0xf]
                %567 = vst [vmem:[%s473 + $0xb8] sm:$0xf] %v566
                %v568 = vld [vmem:[%s472 + $0x13c] sm:$0xf]
                %569 = vst [vmem:[%s473 + $0xbc] sm:$0xf] %v568
              $region86: #{tpu_custom_call.1} parent=80 // loop_footer
                %s471 = sadd.s32 1, %s467
              $region87: #{tpu_custom_call.1} parent=80 // loop_footer_branch
                %466 = sbr.rel target = $region83
              $region88: #{tpu_custom_call.1} parent=80 // loop_exit
                _
            $region81: #{tpu_custom_call.1} parent=72 // pred_fallthru
              _
          $region73: #{tpu_custom_call.1} parent=68 // pred_fallthru
            _
          %685 = vnop
        $region69: #{tpu_custom_call.1} parent=23 // pred_fallthru
          _
        // Predicated region
        $region107: #{tpu_custom_call.1} parent=23 // pred_check
          %p686 = pneg %p87
        $region108: #{tpu_custom_call.1} parent=23 // pred_check_branch
          %688 = sbr.rel (%p686) target = $region110
        $region109: #{tpu_custom_call.1} parent=23 // pred_region
          %s689 = sand.u32 %s77, 1
          %s690 = sand.u32 %s77, 1
          %s691 = smul.addr %s690, 192
          %s692 = scalar_lea.vmem [#allocation4], %s691
          %s693 = smul.u32 16, %s15
          %s694 = smul.addr %s693, 4
          %s695 = scalar_lea.vmem %s2, %s694
          // Predicated region
          $region111: #{tpu_custom_call.1} parent=109 // pred_check
            _
          $region112: #{tpu_custom_call.1} parent=109 // pred_check_branch
            %697 = sbr.rel (0) target = $region114
          $region113: #{tpu_custom_call.1} parent=109 // pred_region
            // Predicated region
            $region115: #{tpu_custom_call.1} parent=113 // pred_check
              _
            $region116: #{tpu_custom_call.1} parent=113 // pred_check_branch
              %699 = sbr.rel target = $region118
            $region117: #{tpu_custom_call.1} parent=113 // pred_region
              // Predicated region
              $region130: #{tpu_custom_call.1} parent=117 // pred_check
                _
              $region131: #{tpu_custom_call.1} parent=117 // pred_check_branch
                %808 = sbr.rel (0) target = $region133
              $region132: #{tpu_custom_call.1} parent=117 // pred_region
                loop: start=0, step=1, limit=1
                $region134: #{tpu_custom_call.1} parent=132 // loop_pre_header
                  _
                $region135: #{tpu_custom_call.1} parent=132 // loop_header
                  %s810 = sphi 0, %s814
                  %p811 = scmp.ge.s32.totalorder %s810, 1
                  %s815 = sphi %s695, %s695
                  %s816 = sphi %s692, %s692
                $region136: #{tpu_custom_call.1} parent=132 // loop_header_branch
                  %813 = sbr.rel (%p811) target = $region140
                $region137: #{tpu_custom_call.1} parent=132 // loop_body
                  _
                $region138: #{tpu_custom_call.1} parent=132 // loop_footer
                  %s814 = sadd.s32 1, %s810
                $region139: #{tpu_custom_call.1} parent=132 // loop_footer_branch
                  %809 = sbr.rel target = $region135
                $region140: #{tpu_custom_call.1} parent=132 // loop_exit
                  _
                loop: start=0, step=1, limit=1
                $region141: #{tpu_custom_call.1} parent=132 // loop_pre_header
                  _
                $region142: #{tpu_custom_call.1} parent=132 // loop_header
                  %s819 = sphi 0, %s823
                  %p820 = scmp.ge.s32.totalorder %s819, 1
                  %s824 = sphi %s695, %s695
                  %s825 = sphi %s692, %s692
                $region143: #{tpu_custom_call.1} parent=132 // loop_header_branch
                  %822 = sbr.rel (%p820) target = $region147
                $region144: #{tpu_custom_call.1} parent=132 // loop_body
                  %v826 = vld [vmem:[%s824] sm:$0xf]
                  %827 = vst [vmem:[%s825] sm:$0xf] %v826
                  %v828 = vld [vmem:[%s824 + $0x4] sm:$0xf]
                  %829 = vst [vmem:[%s825 + $0x4] sm:$0xf] %v828
                  %v830 = vld [vmem:[%s824 + $0x8] sm:$0xf]
                  %831 = vst [vmem:[%s825 + $0x8] sm:$0xf] %v830
                  %v832 = vld [vmem:[%s824 + $0xc] sm:$0xf]
                  %833 = vst [vmem:[%s825 + $0xc] sm:$0xf] %v832
                  %v834 = vld [vmem:[%s824 + $0x10] sm:$0xf]
                  %835 = vst [vmem:[%s825 + $0x10] sm:$0xf] %v834
                  %v836 = vld [vmem:[%s824 + $0x14] sm:$0xf]
                  %837 = vst [vmem:[%s825 + $0x14] sm:$0xf] %v836
                  %v838 = vld [vmem:[%s824 + $0x18] sm:$0xf]
                  %839 = vst [vmem:[%s825 + $0x18] sm:$0xf] %v838
                  %v840 = vld [vmem:[%s824 + $0x1c] sm:$0xf]
                  %841 = vst [vmem:[%s825 + $0x1c] sm:$0xf] %v840
                  %v842 = vld [vmem:[%s824 + $0x20] sm:$0xf]
                  %843 = vst [vmem:[%s825 + $0x20] sm:$0xf] %v842
                  %v844 = vld [vmem:[%s824 + $0x24] sm:$0xf]
                  %845 = vst [vmem:[%s825 + $0x24] sm:$0xf] %v844
                  %v846 = vld [vmem:[%s824 + $0x28] sm:$0xf]
                  %847 = vst [vmem:[%s825 + $0x28] sm:$0xf] %v846
                  %v848 = vld [vmem:[%s824 + $0x2c] sm:$0xf]
                  %849 = vst [vmem:[%s825 + $0x2c] sm:$0xf] %v848
                  %v850 = vld [vmem:[%s824 + $0x30] sm:$0xf]
                  %851 = vst [vmem:[%s825 + $0x30] sm:$0xf] %v850
                  %v852 = vld [vmem:[%s824 + $0x34] sm:$0xf]
                  %853 = vst [vmem:[%s825 + $0x34] sm:$0xf] %v852
                  %v854 = vld [vmem:[%s824 + $0x38] sm:$0xf]
                  %855 = vst [vmem:[%s825 + $0x38] sm:$0xf] %v854
                  %v856 = vld [vmem:[%s824 + $0x3c] sm:$0xf]
                  %857 = vst [vmem:[%s825 + $0x3c] sm:$0xf] %v856
                  %v858 = vld [vmem:[%s824 + $0x80] sm:$0xf]
                  %859 = vst [vmem:[%s825 + $0x40] sm:$0xf] %v858
                  %v860 = vld [vmem:[%s824 + $0x84] sm:$0xf]
                  %861 = vst [vmem:[%s825 + $0x44] sm:$0xf] %v860
                  %v862 = vld [vmem:[%s824 + $0x88] sm:$0xf]
                  %863 = vst [vmem:[%s825 + $0x48] sm:$0xf] %v862
                  %v864 = vld [vmem:[%s824 + $0x8c] sm:$0xf]
                  %865 = vst [vmem:[%s825 + $0x4c] sm:$0xf] %v864
                  %v866 = vld [vmem:[%s824 + $0x90] sm:$0xf]
                  %867 = vst [vmem:[%s825 + $0x50] sm:$0xf] %v866
                  %v868 = vld [vmem:[%s824 + $0x94] sm:$0xf]
                  %869 = vst [vmem:[%s825 + $0x54] sm:$0xf] %v868
                  %v870 = vld [vmem:[%s824 + $0x98] sm:$0xf]
                  %871 = vst [vmem:[%s825 + $0x58] sm:$0xf] %v870
                  %v872 = vld [vmem:[%s824 + $0x9c] sm:$0xf]
                  %873 = vst [vmem:[%s825 + $0x5c] sm:$0xf] %v872
                  %v874 = vld [vmem:[%s824 + $0xa0] sm:$0xf]
                  %875 = vst [vmem:[%s825 + $0x60] sm:$0xf] %v874
                  %v876 = vld [vmem:[%s824 + $0xa4] sm:$0xf]
                  %877 = vst [vmem:[%s825 + $0x64] sm:$0xf] %v876
                  %v878 = vld [vmem:[%s824 + $0xa8] sm:$0xf]
                  %879 = vst [vmem:[%s825 + $0x68] sm:$0xf] %v878
                  %v880 = vld [vmem:[%s824 + $0xac] sm:$0xf]
                  %881 = vst [vmem:[%s825 + $0x6c] sm:$0xf] %v880
                  %v882 = vld [vmem:[%s824 + $0xb0] sm:$0xf]
                  %883 = vst [vmem:[%s825 + $0x70] sm:$0xf] %v882
                  %v884 = vld [vmem:[%s824 + $0xb4] sm:$0xf]
                  %885 = vst [vmem:[%s825 + $0x74] sm:$0xf] %v884
                  %v886 = vld [vmem:[%s824 + $0xb8] sm:$0xf]
                  %887 = vst [vmem:[%s825 + $0x78] sm:$0xf] %v886
                  %v888 = vld [vmem:[%s824 + $0xbc] sm:$0xf]
                  %889 = vst [vmem:[%s825 + $0x7c] sm:$0xf] %v888
                  %v890 = vld [vmem:[%s824 + $0x100] sm:$0xf]
                  %891 = vst [vmem:[%s825 + $0x80] sm:$0xf] %v890
                  %v892 = vld [vmem:[%s824 + $0x104] sm:$0xf]
                  %893 = vst [vmem:[%s825 + $0x84] sm:$0xf] %v892
                  %v894 = vld [vmem:[%s824 + $0x108] sm:$0xf]
                  %895 = vst [vmem:[%s825 + $0x88] sm:$0xf] %v894
                  %v896 = vld [vmem:[%s824 + $0x10c] sm:$0xf]
                  %897 = vst [vmem:[%s825 + $0x8c] sm:$0xf] %v896
                  %v898 = vld [vmem:[%s824 + $0x110] sm:$0xf]
                  %899 = vst [vmem:[%s825 + $0x90] sm:$0xf] %v898
                  %v900 = vld [vmem:[%s824 + $0x114] sm:$0xf]
                  %901 = vst [vmem:[%s825 + $0x94] sm:$0xf] %v900
                  %v902 = vld [vmem:[%s824 + $0x118] sm:$0xf]
                  %903 = vst [vmem:[%s825 + $0x98] sm:$0xf] %v902
                  %v904 = vld [vmem:[%s824 + $0x11c] sm:$0xf]
                  %905 = vst [vmem:[%s825 + $0x9c] sm:$0xf] %v904
                  %v906 = vld [vmem:[%s824 + $0x120] sm:$0xf]
                  %907 = vst [vmem:[%s825 + $0xa0] sm:$0xf] %v906
                  %v908 = vld [vmem:[%s824 + $0x124] sm:$0xf]
                  %909 = vst [vmem:[%s825 + $0xa4] sm:$0xf] %v908
                  %v910 = vld [vmem:[%s824 + $0x128] sm:$0xf]
                  %911 = vst [vmem:[%s825 + $0xa8] sm:$0xf] %v910
                  %v912 = vld [vmem:[%s824 + $0x12c] sm:$0xf]
                  %913 = vst [vmem:[%s825 + $0xac] sm:$0xf] %v912
                  %v914 = vld [vmem:[%s824 + $0x130] sm:$0xf]
                  %915 = vst [vmem:[%s825 + $0xb0] sm:$0xf] %v914
                  %v916 = vld [vmem:[%s824 + $0x134] sm:$0xf]
                  %917 = vst [vmem:[%s825 + $0xb4] sm:$0xf] %v916
                  %v918 = vld [vmem:[%s824 + $0x138] sm:$0xf]
                  %919 = vst [vmem:[%s825 + $0xb8] sm:$0xf] %v918
                  %v920 = vld [vmem:[%s824 + $0x13c] sm:$0xf]
                  %921 = vst [vmem:[%s825 + $0xbc] sm:$0xf] %v920
                $region145: #{tpu_custom_call.1} parent=132 // loop_footer
                  %s823 = sadd.s32 1, %s819
                $region146: #{tpu_custom_call.1} parent=132 // loop_footer_branch
                  %818 = sbr.rel target = $region142
                $region147: #{tpu_custom_call.1} parent=132 // loop_exit
                  _
              $region133: #{tpu_custom_call.1} parent=117 // pred_fallthru
                _
            $region118: #{tpu_custom_call.1} parent=113 // pred_fallthru
              _
            // Predicated region
            $region119: #{tpu_custom_call.1} parent=113 // pred_check
              _
            $region120: #{tpu_custom_call.1} parent=113 // pred_check_branch
              %701 = sbr.rel (0) target = $region122
            $region121: #{tpu_custom_call.1} parent=113 // pred_region
              loop: start=0, step=1, limit=1
              $region123: #{tpu_custom_call.1} parent=121 // loop_pre_header
                _
              $region124: #{tpu_custom_call.1} parent=121 // loop_header
                %s704 = sphi 0, %s708
                %p705 = scmp.ge.s32.totalorder %s704, 1
                %s709 = sphi %s695, %s695
                %s710 = sphi %s692, %s692
              $region125: #{tpu_custom_call.1} parent=121 // loop_header_branch
                %707 = sbr.rel (%p705) target = $region129
              $region126: #{tpu_custom_call.1} parent=121 // loop_body
                %v711 = vld [vmem:[%s709] sm:$0xf]
                %712 = vst [vmem:[%s710] sm:$0xf] %v711
                %v713 = vld [vmem:[%s709 + $0x4] sm:$0xf]
                %714 = vst [vmem:[%s710 + $0x4] sm:$0xf] %v713
                %v715 = vld [vmem:[%s709 + $0x8] sm:$0xf]
                %716 = vst [vmem:[%s710 + $0x8] sm:$0xf] %v715
                %v717 = vld [vmem:[%s709 + $0xc] sm:$0xf]
                %718 = vst [vmem:[%s710 + $0xc] sm:$0xf] %v717
                %v719 = vld [vmem:[%s709 + $0x10] sm:$0xf]
                %720 = vst [vmem:[%s710 + $0x10] sm:$0xf] %v719
                %v721 = vld [vmem:[%s709 + $0x14] sm:$0xf]
                %722 = vst [vmem:[%s710 + $0x14] sm:$0xf] %v721
                %v723 = vld [vmem:[%s709 + $0x18] sm:$0xf]
                %724 = vst [vmem:[%s710 + $0x18] sm:$0xf] %v723
                %v725 = vld [vmem:[%s709 + $0x1c] sm:$0xf]
                %726 = vst [vmem:[%s710 + $0x1c] sm:$0xf] %v725
                %v727 = vld [vmem:[%s709 + $0x20] sm:$0xf]
                %728 = vst [vmem:[%s710 + $0x20] sm:$0xf] %v727
                %v729 = vld [vmem:[%s709 + $0x24] sm:$0xf]
                %730 = vst [vmem:[%s710 + $0x24] sm:$0xf] %v729
                %v731 = vld [vmem:[%s709 + $0x28] sm:$0xf]
                %732 = vst [vmem:[%s710 + $0x28] sm:$0xf] %v731
                %v733 = vld [vmem:[%s709 + $0x2c] sm:$0xf]
                %734 = vst [vmem:[%s710 + $0x2c] sm:$0xf] %v733
                %v735 = vld [vmem:[%s709 + $0x30] sm:$0xf]
                %736 = vst [vmem:[%s710 + $0x30] sm:$0xf] %v735
                %v737 = vld [vmem:[%s709 + $0x34] sm:$0xf]
                %738 = vst [vmem:[%s710 + $0x34] sm:$0xf] %v737
                %v739 = vld [vmem:[%s709 + $0x38] sm:$0xf]
                %740 = vst [vmem:[%s710 + $0x38] sm:$0xf] %v739
                %v741 = vld [vmem:[%s709 + $0x3c] sm:$0xf]
                %742 = vst [vmem:[%s710 + $0x3c] sm:$0xf] %v741
                %v743 = vld [vmem:[%s709 + $0x80] sm:$0xf]
                %744 = vst [vmem:[%s710 + $0x40] sm:$0xf] %v743
                %v745 = vld [vmem:[%s709 + $0x84] sm:$0xf]
                %746 = vst [vmem:[%s710 + $0x44] sm:$0xf] %v745
                %v747 = vld [vmem:[%s709 + $0x88] sm:$0xf]
                %748 = vst [vmem:[%s710 + $0x48] sm:$0xf] %v747
                %v749 = vld [vmem:[%s709 + $0x8c] sm:$0xf]
                %750 = vst [vmem:[%s710 + $0x4c] sm:$0xf] %v749
                %v751 = vld [vmem:[%s709 + $0x90] sm:$0xf]
                %752 = vst [vmem:[%s710 + $0x50] sm:$0xf] %v751
                %v753 = vld [vmem:[%s709 + $0x94] sm:$0xf]
                %754 = vst [vmem:[%s710 + $0x54] sm:$0xf] %v753
                %v755 = vld [vmem:[%s709 + $0x98] sm:$0xf]
                %756 = vst [vmem:[%s710 + $0x58] sm:$0xf] %v755
                %v757 = vld [vmem:[%s709 + $0x9c] sm:$0xf]
                %758 = vst [vmem:[%s710 + $0x5c] sm:$0xf] %v757
                %v759 = vld [vmem:[%s709 + $0xa0] sm:$0xf]
                %760 = vst [vmem:[%s710 + $0x60] sm:$0xf] %v759
                %v761 = vld [vmem:[%s709 + $0xa4] sm:$0xf]
                %762 = vst [vmem:[%s710 + $0x64] sm:$0xf] %v761
                %v763 = vld [vmem:[%s709 + $0xa8] sm:$0xf]
                %764 = vst [vmem:[%s710 + $0x68] sm:$0xf] %v763
                %v765 = vld [vmem:[%s709 + $0xac] sm:$0xf]
                %766 = vst [vmem:[%s710 + $0x6c] sm:$0xf] %v765
                %v767 = vld [vmem:[%s709 + $0xb0] sm:$0xf]
                %768 = vst [vmem:[%s710 + $0x70] sm:$0xf] %v767
                %v769 = vld [vmem:[%s709 + $0xb4] sm:$0xf]
                %770 = vst [vmem:[%s710 + $0x74] sm:$0xf] %v769
                %v771 = vld [vmem:[%s709 + $0xb8] sm:$0xf]
                %772 = vst [vmem:[%s710 + $0x78] sm:$0xf] %v771
                %v773 = vld [vmem:[%s709 + $0xbc] sm:$0xf]
                %774 = vst [vmem:[%s710 + $0x7c] sm:$0xf] %v773
                %v775 = vld [vmem:[%s709 + $0x100] sm:$0xf]
                %776 = vst [vmem:[%s710 + $0x80] sm:$0xf] %v775
                %v777 = vld [vmem:[%s709 + $0x104] sm:$0xf]
                %778 = vst [vmem:[%s710 + $0x84] sm:$0xf] %v777
                %v779 = vld [vmem:[%s709 + $0x108] sm:$0xf]
                %780 = vst [vmem:[%s710 + $0x88] sm:$0xf] %v779
                %v781 = vld [vmem:[%s709 + $0x10c] sm:$0xf]
                %782 = vst [vmem:[%s710 + $0x8c] sm:$0xf] %v781
                %v783 = vld [vmem:[%s709 + $0x110] sm:$0xf]
                %784 = vst [vmem:[%s710 + $0x90] sm:$0xf] %v783
                %v785 = vld [vmem:[%s709 + $0x114] sm:$0xf]
                %786 = vst [vmem:[%s710 + $0x94] sm:$0xf] %v785
                %v787 = vld [vmem:[%s709 + $0x118] sm:$0xf]
                %788 = vst [vmem:[%s710 + $0x98] sm:$0xf] %v787
                %v789 = vld [vmem:[%s709 + $0x11c] sm:$0xf]
                %790 = vst [vmem:[%s710 + $0x9c] sm:$0xf] %v789
                %v791 = vld [vmem:[%s709 + $0x120] sm:$0xf]
                %792 = vst [vmem:[%s710 + $0xa0] sm:$0xf] %v791
                %v793 = vld [vmem:[%s709 + $0x124] sm:$0xf]
                %794 = vst [vmem:[%s710 + $0xa4] sm:$0xf] %v793
                %v795 = vld [vmem:[%s709 + $0x128] sm:$0xf]
                %796 = vst [vmem:[%s710 + $0xa8] sm:$0xf] %v795
                %v797 = vld [vmem:[%s709 + $0x12c] sm:$0xf]
                %798 = vst [vmem:[%s710 + $0xac] sm:$0xf] %v797
                %v799 = vld [vmem:[%s709 + $0x130] sm:$0xf]
                %800 = vst [vmem:[%s710 + $0xb0] sm:$0xf] %v799
                %v801 = vld [vmem:[%s709 + $0x134] sm:$0xf]
                %802 = vst [vmem:[%s710 + $0xb4] sm:$0xf] %v801
                %v803 = vld [vmem:[%s709 + $0x138] sm:$0xf]
                %804 = vst [vmem:[%s710 + $0xb8] sm:$0xf] %v803
                %v805 = vld [vmem:[%s709 + $0x13c] sm:$0xf]
                %806 = vst [vmem:[%s710 + $0xbc] sm:$0xf] %v805
              $region127: #{tpu_custom_call.1} parent=121 // loop_footer
                %s708 = sadd.s32 1, %s704
              $region128: #{tpu_custom_call.1} parent=121 // loop_footer_branch
                %703 = sbr.rel target = $region124
              $region129: #{tpu_custom_call.1} parent=121 // loop_exit
                _
            $region122: #{tpu_custom_call.1} parent=113 // pred_fallthru
              _
          $region114: #{tpu_custom_call.1} parent=109 // pred_fallthru
            _
          %922 = vnop
        $region110: #{tpu_custom_call.1} parent=23 // pred_fallthru
          _
        // Predicated region
        $region148: #{tpu_custom_call.1} parent=23 // pred_check
          %p923 = pneg %p113
        $region149: #{tpu_custom_call.1} parent=23 // pred_check_branch
          %925 = sbr.rel (%p923) target = $region151
        $region150: #{tpu_custom_call.1} parent=23 // pred_region
          %s926 = smul.u32 16, %s15
          %p927 = scmp.lt.s32.totalorder %s926, 31
          %s928 = scalar_select %p927, %s926, 31
          %s929 = smul.addr %s928, 4
          %s930 = scalar_lea.vmem %s3, %s929
          %s931 = smul.u32 16, %s15
        $region151: #{tpu_custom_call.1} parent=23 // pred_fallthru
          _
      $region24: #{tpu_custom_call.1} parent=5 // pred_fallthru
        _
      %p932 = scmp.le.s32.totalorder 1, %s15
      %p933 = scmp.lt.s32.totalorder %s15, 3
      %p934 = pnand %p932, %p933
      %p935 = pneg %p934
      // Predicated region
      $region152: #{tpu_custom_call.1} parent=5 // pred_check
        _
      $region153: #{tpu_custom_call.1} parent=5 // pred_check_branch
        %937 = sbr.rel (%p934) target = $region155
      $region154: #{tpu_custom_call.1} parent=5 // pred_region
        %s938 = ssub.s32 %s15, 1
        %s939 = sand.u32 %s28, 1
        %s940 = sand.u32 %s28, 1
        %s941 = smul.addr %s940, 192
        %s942 = scalar_lea.vmem [#allocation2], %s941
        // Predicated region
        $region156: #{tpu_custom_call.1} parent=154 // pred_check
          %p943 = pneg %p41
        $region157: #{tpu_custom_call.1} parent=154 // pred_check_branch
          %945 = sbr.rel (%p943) target = $region159
        $region158: #{tpu_custom_call.1} parent=154 // pred_region
          _
        $region159: #{tpu_custom_call.1} parent=154 // pred_fallthru
          _
        %s946 = sand.u32 %s54, 1
        %s947 = sand.u32 %s54, 1
        %s948 = smul.addr %s947, 192
        %s949 = scalar_lea.vmem [#allocation3], %s948
        // Predicated region
        $region160: #{tpu_custom_call.1} parent=154 // pred_check
          %p950 = pneg %p67
        $region161: #{tpu_custom_call.1} parent=154 // pred_check_branch
          %952 = sbr.rel (%p950) target = $region163
        $region162: #{tpu_custom_call.1} parent=154 // pred_region
          _
        $region163: #{tpu_custom_call.1} parent=154 // pred_fallthru
          _
        %s953 = sand.u32 %s80, 1
        %s954 = sand.u32 %s80, 1
        %s955 = smul.addr %s954, 192
        %s956 = scalar_lea.vmem [#allocation4], %s955
        // Predicated region
        $region164: #{tpu_custom_call.1} parent=154 // pred_check
          %p957 = pneg %p93
        $region165: #{tpu_custom_call.1} parent=154 // pred_check_branch
          %959 = sbr.rel (%p957) target = $region167
        $region166: #{tpu_custom_call.1} parent=154 // pred_region
          _
        $region167: #{tpu_custom_call.1} parent=154 // pred_fallthru
          _
        %s960 = sand.u32 %s28, 1
        %s961 = sand.u32 %s28, 1
        %s962 = smul.addr %s961, 192
        %s963 = scalar_lea.vmem [#allocation2], %s962
        %p964 = pneg %p41
        %p965 = pneg %p38
        %s966 = sand.u32 %s54, 1
        %s967 = sand.u32 %s54, 1
        %s968 = smul.addr %s967, 192
        %s969 = scalar_lea.vmem [#allocation3], %s968
        %p970 = pneg %p67
        %p971 = pneg %p64
        %s972 = sand.u32 %s80, 1
        %s973 = sand.u32 %s80, 1
        %s974 = smul.addr %s973, 192
        %s975 = scalar_lea.vmem [#allocation4], %s974
        %p976 = pneg %p93
        %p977 = pneg %p90
        %s978 = smul.u32 16, %s20
        %p979 = scmp.lt.s32.totalorder %s978, 31
        %s980 = scalar_select %p979, %s978, 31
        %s981 = smul.addr %s980, 4
        %s982 = scalar_lea.vmem %s3, %s981
        %p983 = pneg %p119
        %p984 = pneg %p116
        %p985 = pneg %p140
        %p986 = pneg %p137
        %p987 = pneg %p161
        %p988 = pneg %p158
        %p989 = pneg %p187
        %p990 = pneg %p184
        %s991 = sand.u32 %s174, 1
        %s992 = scalar_lea.sflag [#allocation6], %s991
        %s993 = sand.u32 %s174, 1
        %s994 = scalar_lea.vmem [#allocation5], %s993
        %s995 = smul.u32 16, %s20
        %s996 = smul.u32 16, %s20
        %s997 = smul.u32 16, %s20
        %s998 = smul.u32 16, %s20
        %p999 = scmp.lt.s32.totalorder %s998, 31
        %s1000 = scalar_select %p999, %s998, 31
        %s1001 = smul.addr %s1000, 4
        %s1002 = scalar_lea.vmem %s3, %s1001
        %s1003 = smul.u32 16, %s20
        %v1005 = vld [vmem:[%s942] sm:$0xf]
        %v1006 = vld [vmem:[%s942 + $0x4] sm:$0xf]
        %v1007 = vld [vmem:[%s942 + $0x8] sm:$0xf]
        %v1008 = vld [vmem:[%s942 + $0xc] sm:$0xf]
        %v1009 = vld [vmem:[%s942 + $0x10] sm:$0xf]
        %v1010 = vld [vmem:[%s942 + $0x14] sm:$0xf]
        %v1011 = vld [vmem:[%s942 + $0x18] sm:$0xf]
        %v1012 = vld [vmem:[%s942 + $0x1c] sm:$0xf]
        %v1013 = vld [vmem:[%s942 + $0x20] sm:$0xf]
        %v1014 = vld [vmem:[%s942 + $0x24] sm:$0xf]
        %v1015 = vld [vmem:[%s942 + $0x28] sm:$0xf]
        %v1016 = vld [vmem:[%s942 + $0x2c] sm:$0xf]
        %v1017 = vld [vmem:[%s942 + $0x30] sm:$0xf]
        %v1018 = vld [vmem:[%s942 + $0x34] sm:$0xf]
        %v1019 = vld [vmem:[%s942 + $0x38] sm:$0xf]
        %v1020 = vld [vmem:[%s942 + $0x3c] sm:$0xf]
        %v1021 = vld [vmem:[%s942 + $0x40] sm:$0xf]
        %v1022 = vld [vmem:[%s942 + $0x44] sm:$0xf]
        %v1023 = vld [vmem:[%s942 + $0x48] sm:$0xf]
        %v1024 = vld [vmem:[%s942 + $0x4c] sm:$0xf]
        %v1025 = vld [vmem:[%s942 + $0x50] sm:$0xf]
        %v1026 = vld [vmem:[%s942 + $0x54] sm:$0xf]
        %v1027 = vld [vmem:[%s942 + $0x58] sm:$0xf]
        %v1028 = vld [vmem:[%s942 + $0x5c] sm:$0xf]
        %v1029 = vld [vmem:[%s942 + $0x60] sm:$0xf]
        %v1030 = vld [vmem:[%s942 + $0x64] sm:$0xf]
        %v1031 = vld [vmem:[%s942 + $0x68] sm:$0xf]
        %v1032 = vld [vmem:[%s942 + $0x6c] sm:$0xf]
        %v1033 = vld [vmem:[%s942 + $0x70] sm:$0xf]
        %v1034 = vld [vmem:[%s942 + $0x74] sm:$0xf]
        %v1035 = vld [vmem:[%s942 + $0x78] sm:$0xf]
        %v1036 = vld [vmem:[%s942 + $0x7c] sm:$0xf]
        %v1037 = vld [vmem:[%s942 + $0x80] sm:$0xf]
        %v1038 = vld [vmem:[%s942 + $0x84] sm:$0xf]
        %v1039 = vld [vmem:[%s942 + $0x88] sm:$0xf]
        %v1040 = vld [vmem:[%s942 + $0x8c] sm:$0xf]
        %v1041 = vld [vmem:[%s942 + $0x90] sm:$0xf]
        %v1042 = vld [vmem:[%s942 + $0x94] sm:$0xf]
        %v1043 = vld [vmem:[%s942 + $0x98] sm:$0xf]
        %v1044 = vld [vmem:[%s942 + $0x9c] sm:$0xf]
        %v1045 = vld [vmem:[%s942 + $0xa0] sm:$0xf]
        %v1046 = vld [vmem:[%s942 + $0xa4] sm:$0xf]
        %v1047 = vld [vmem:[%s942 + $0xa8] sm:$0xf]
        %v1048 = vld [vmem:[%s942 + $0xac] sm:$0xf]
        %v1049 = vld [vmem:[%s942 + $0xb0] sm:$0xf]
        %v1050 = vld [vmem:[%s942 + $0xb4] sm:$0xf]
        %v1051 = vld [vmem:[%s942 + $0xb8] sm:$0xf]
        %v1052 = vld [vmem:[%s942 + $0xbc] sm:$0xf]
        %v1053 = vld [vmem:[%s4] sm:$0xf]
        %v1054 = vld [vmem:[%s4 + $0x4] sm:$0xf]
        %v1055 = vld [vmem:[%s4 + $0x8] sm:$0xf]
        %v1056 = vld [vmem:[%s4 + $0xc] sm:$0xf]
        %v1057 = vld [vmem:[%s4 + $0x10] sm:$0xf]
        %v1058 = vld [vmem:[%s4 + $0x14] sm:$0xf]
        %v1059 = vld [vmem:[%s4 + $0x18] sm:$0x3]
        %v1060 = vld [vmem:[%s5] sm:$0x1]
        %v1061 = vlaneseq
        %v1062 = vshrl.u32 %v1061, 7
        %v1063 = vsub.s32 0, %v1062
        %v1064 = vrot.slane %v1060, %v1063
        %v1113 = vunpack.c.l.b16 %v1005
        %v1114 = vunpack.c.l.b16 %v1006
        %v1115 = vunpack.c.l.b16 %v1007
        %v1116 = vunpack.c.l.b16 %v1008
        %v1117 = vunpack.c.l.b16 %v1009
        %v1118 = vunpack.c.l.b16 %v1010
        %v1119 = vunpack.c.l.b16 %v1011
        %v1120 = vunpack.c.l.b16 %v1012
        %v1121 = vunpack.c.l.b16 %v1013
        %v1122 = vunpack.c.l.b16 %v1014
        %v1123 = vunpack.c.l.b16 %v1015
        %v1124 = vunpack.c.l.b16 %v1016
        %v1125 = vunpack.c.l.b16 %v1017
        %v1126 = vunpack.c.l.b16 %v1018
        %v1127 = vunpack.c.l.b16 %v1019
        %v1128 = vunpack.c.l.b16 %v1020
        %v1129 = vunpack.c.l.b16 %v1021
        %v1130 = vunpack.c.l.b16 %v1022
        %v1131 = vunpack.c.l.b16 %v1023
        %v1132 = vunpack.c.l.b16 %v1024
        %v1133 = vunpack.c.l.b16 %v1025
        %v1134 = vunpack.c.l.b16 %v1026
        %v1135 = vunpack.c.l.b16 %v1027
        %v1136 = vunpack.c.l.b16 %v1028
        %v1137 = vunpack.c.l.b16 %v1029
        %v1138 = vunpack.c.l.b16 %v1030
        %v1139 = vunpack.c.l.b16 %v1031
        %v1140 = vunpack.c.l.b16 %v1032
        %v1141 = vunpack.c.l.b16 %v1033
        %v1142 = vunpack.c.l.b16 %v1034
        %v1143 = vunpack.c.l.b16 %v1035
        %v1144 = vunpack.c.l.b16 %v1036
        %v1145 = vunpack.c.l.b16 %v1037
        %v1146 = vunpack.c.l.b16 %v1038
        %v1147 = vunpack.c.l.b16 %v1039
        %v1148 = vunpack.c.l.b16 %v1040
        %v1149 = vunpack.c.l.b16 %v1041
        %v1150 = vunpack.c.l.b16 %v1042
        %v1151 = vunpack.c.l.b16 %v1043
        %v1152 = vunpack.c.l.b16 %v1044
        %v1153 = vunpack.c.l.b16 %v1045
        %v1154 = vunpack.c.l.b16 %v1046
        %v1155 = vunpack.c.l.b16 %v1047
        %v1156 = vunpack.c.l.b16 %v1048
        %v1157 = vunpack.c.l.b16 %v1049
        %v1158 = vunpack.c.l.b16 %v1050
        %v1159 = vunpack.c.l.b16 %v1051
        %v1160 = vunpack.c.l.b16 %v1052
        %v1161 = vpack.c.b16 %v1114, %v1113
        %v1162 = vpack.c.b16 %v1116, %v1115
        %v1163 = vpack.c.b16 %v1118, %v1117
        %v1164 = vpack.c.b16 %v1120, %v1119
        %v1165 = vpack.c.b16 %v1122, %v1121
        %v1166 = vpack.c.b16 %v1124, %v1123
        %v1167 = vpack.c.b16 %v1126, %v1125
        %v1168 = vpack.c.b16 %v1128, %v1127
        %v1169 = vpack.c.b16 %v1130, %v1129
        %v1170 = vpack.c.b16 %v1132, %v1131
        %v1171 = vpack.c.b16 %v1134, %v1133
        %v1172 = vpack.c.b16 %v1136, %v1135
        %v1173 = vpack.c.b16 %v1138, %v1137
        %v1174 = vpack.c.b16 %v1140, %v1139
        %v1175 = vpack.c.b16 %v1142, %v1141
        %v1176 = vpack.c.b16 %v1144, %v1143
        %v1177 = vpack.c.b16 %v1146, %v1145
        %v1178 = vpack.c.b16 %v1148, %v1147
        %v1179 = vpack.c.b16 %v1150, %v1149
        %v1180 = vpack.c.b16 %v1152, %v1151
        %v1181 = vpack.c.b16 %v1154, %v1153
        %v1182 = vpack.c.b16 %v1156, %v1155
        %v1183 = vpack.c.b16 %v1158, %v1157
        %v1184 = vpack.c.b16 %v1160, %v1159
        %v1192 = vunpack.c.l.b16 %v1053
        %v1193 = vunpack.c.l.b16 %v1054
        %v1194 = vunpack.c.l.b16 %v1055
        %v1195 = vunpack.c.l.b16 %v1056
        %v1196 = vunpack.c.l.b16 %v1057
        %v1197 = vunpack.c.l.b16 %v1058
        %v1198 = vunpack.c.l.b16 %v1059
        %v1199 = vpack.c.b16 %v1193, %v1192
        %v1200 = vpack.c.b16 %v1195, %v1194
        %v1201 = vpack.c.b16 %v1197, %v1196
        %v1202 = vpack.c.b16 %v1198, %v1198
        %vm1206 = vcmask 416768
        %v1208 = vsel %vm1206, %v1161, 0
        %v1211 = vsel %vm1206, %v1162, 0
        %v1214 = vsel %vm1206, %v1163, 0
        %v1217 = vsel %vm1206, %v1164, 0
        %v1220 = vsel %vm1206, %v1165, 0
        %v1223 = vsel %vm1206, %v1166, 0
        %v1226 = vsel %vm1206, %v1167, 0
        %v1229 = vsel %vm1206, %v1168, 0
        %v1232 = vsel %vm1206, %v1169, 0
        %v1235 = vsel %vm1206, %v1170, 0
        %v1238 = vsel %vm1206, %v1171, 0
        %v1241 = vsel %vm1206, %v1172, 0
        %v1244 = vsel %vm1206, %v1173, 0
        %v1247 = vsel %vm1206, %v1174, 0
        %v1250 = vsel %vm1206, %v1175, 0
        %v1253 = vsel %vm1206, %v1176, 0
        %v1256 = vsel %vm1206, %v1177, 0
        %v1259 = vsel %vm1206, %v1178, 0
        %v1262 = vsel %vm1206, %v1179, 0
        %v1265 = vsel %vm1206, %v1180, 0
        %v1268 = vsel %vm1206, %v1181, 0
        %v1271 = vsel %vm1206, %v1182, 0
        %v1274 = vsel %vm1206, %v1183, 0
        %v1277 = vsel %vm1206, %v1184, 0
        %vm1279 = vcmask 1040384
        %vm1280 = vcmask 1041408
        %v1281 = vsel %vm1279, 4294967295, 65535
        %v1282 = vsel %vm1280, %v1281, 0
        %v1284 = vand.u32 %v1202, %v1282
        %1286 = vmatprep.subr.bf16.mxu0 0
        %1287 = vmatpush1.bf16.msra.mxu0 %v1199
        %1288 = vmatprep.subr.bf16.mxu0 0
        %1289 = vmatpush1.bf16.msra.mxu0 %v1200
        %1290 = vmatprep.subr.bf16.mxu0 0
        %1291 = vmatpush1.bf16.msra.mxu0 %v1201
        %1292 = vmatprep.subr.bf16.mxu0 0
        %1293 = vmatpush1.bf16.msra.mxu0 %v1284
        %1294 = vmatprep.subr.bf16.mxu0 0
        %1295 = vmatpush1.bf16.msra.mxu0 0
        %1296 = vmatprep.subr.bf16.mxu0 0
        %1297 = vmatpush1.bf16.msra.mxu0 0
        %1298 = vmatprep.subr.bf16.mxu0 0
        %1299 = vmatpush1.bf16.msra.mxu0 0
        %1300 = vmatprep.subr.bf16.mxu0 0
        %1301 = vmatpush1.bf16.msra.mxu0 0
        %1302 = vmatprep.subr.bf16.mxu0 0
        %1303 = vmatpush1.bf16.msra.mxu0 0
        %1304 = vmatprep.subr.bf16.mxu0 0
        %1305 = vmatpush1.bf16.msra.mxu0 0
        %1306 = vmatprep.subr.bf16.mxu0 0
        %1307 = vmatpush1.bf16.msra.mxu0 0
        %1308 = vmatprep.subr.bf16.mxu0 0
        %1309 = vmatpush1.bf16.msra.mxu0 0
        %1310 = vmatprep.subr.bf16.mxu0 0
        %1311 = vmatpush1.bf16.msra.mxu0 0
        %1312 = vmatprep.subr.bf16.mxu0 0
        %1313 = vmatpush1.bf16.msra.mxu0 0
        %1314 = vmatprep.subr.bf16.mxu0 0
        %1315 = vmatpush1.bf16.msra.mxu0 0
        %1316 = vmatprep.subr.bf16.mxu0 0
        %1317 = vmatpush1.bf16.msra.mxu0 0
        %1318 = vmatprep.mubr.bf16.mxu0 0
        %1319 = vmatmul.mubr.bf16.gmra.mrb[0].mxu0 %v1208
        %v1320 = vpop.f32.mrb[0].mxu0
        %v1321 = vadd.f32 %v1064, %v1320
        %v1322 = vpop.f32.mrb[0].mxu0
        %v1323 = vpop.f32.mrb[0].mxu0
        %v1324 = vadd.f32 %v1064, %v1323
        %v1325 = vpop.f32.mrb[0].mxu0
        %1326 = vmatprep.mubr.bf16.mxu0 0
        %1327 = vmatmul.mubr.bf16.gmra.mrb[0].mxu0 %v1211
        %v1328 = vpop.f32.mrb[0].mxu0
        %v1329 = vadd.f32 %v1064, %v1328
        %v1330 = vpop.f32.mrb[0].mxu0
        %v1331 = vpop.f32.mrb[0].mxu0
        %v1332 = vadd.f32 %v1064, %v1331
        %v1333 = vpop.f32.mrb[0].mxu0
        %1334 = vmatprep.mubr.bf16.mxu0 0
        %1335 = vmatmul.mubr.bf16.gmra.mrb[0].mxu0 %v1214
        %v1336 = vpop.f32.mrb[0].mxu0
        %v1337 = vadd.f32 %v1064, %v1336
        %v1338 = vpop.f32.mrb[0].mxu0
        %v1339 = vpop.f32.mrb[0].mxu0
        %v1340 = vadd.f32 %v1064, %v1339
        %v1341 = vpop.f32.mrb[0].mxu0
        %1342 = vmatprep.mubr.bf16.mxu0 0
        %1343 = vmatmul.mubr.bf16.gmra.mrb[0].mxu0 %v1217
        %v1344 = vpop.f32.mrb[0].mxu0
        %v1345 = vadd.f32 %v1064, %v1344
        %v1346 = vpop.f32.mrb[0].mxu0
        %v1347 = vpop.f32.mrb[0].mxu0
        %v1348 = vadd.f32 %v1064, %v1347
        %v1349 = vpop.f32.mrb[0].mxu0
        %1350 = vmatprep.mubr.bf16.mxu0 0
        %1351 = vmatmul.mubr.bf16.gmra.mrb[0].mxu0 %v1220
        %v1352 = vpop.f32.mrb[0].mxu0
        %v1353 = vadd.f32 %v1064, %v1352
        %v1354 = vpop.f32.mrb[0].mxu0
        %v1355 = vpop.f32.mrb[0].mxu0
        %v1356 = vadd.f32 %v1064, %v1355
        %v1357 = vpop.f32.mrb[0].mxu0
        %1358 = vmatprep.mubr.bf16.mxu0 0
        %1359 = vmatmul.mubr.bf16.gmra.mrb[0].mxu0 %v1223
        %v1360 = vpop.f32.mrb[0].mxu0
        %v1361 = vadd.f32 %v1064, %v1360
        %v1362 = vpop.f32.mrb[0].mxu0
        %v1363 = vpop.f32.mrb[0].mxu0
        %v1364 = vadd.f32 %v1064, %v1363
        %v1365 = vpop.f32.mrb[0].mxu0
        %1366 = vmatprep.mubr.bf16.mxu0 0
        %1367 = vmatmul.mubr.bf16.gmra.mrb[0].mxu0 %v1226
        %v1368 = vpop.f32.mrb[0].mxu0
        %v1369 = vadd.f32 %v1064, %v1368
        %v1370 = vpop.f32.mrb[0].mxu0
        %v1371 = vpop.f32.mrb[0].mxu0
        %v1372 = vadd.f32 %v1064, %v1371
        %v1373 = vpop.f32.mrb[0].mxu0
        %1374 = vmatprep.mubr.bf16.mxu0 0
        %1375 = vmatmul.mubr.bf16.gmra.mrb[0].mxu0 %v1229
        %v1376 = vpop.f32.mrb[0].mxu0
        %v1377 = vadd.f32 %v1064, %v1376
        %v1378 = vpop.f32.mrb[0].mxu0
        %v1379 = vpop.f32.mrb[0].mxu0
        %v1380 = vadd.f32 %v1064, %v1379
        %v1381 = vpop.f32.mrb[0].mxu0
        %1382 = vmatprep.mubr.bf16.mxu0 0
        %1383 = vmatmul.mubr.bf16.gmra.mrb[0].mxu0 %v1232
        %v1384 = vpop.f32.mrb[0].mxu0
        %v1385 = vadd.f32 %v1064, %v1384
        %v1386 = vpop.f32.mrb[0].mxu0
        %v1387 = vpop.f32.mrb[0].mxu0
        %v1388 = vadd.f32 %v1064, %v1387
        %v1389 = vpop.f32.mrb[0].mxu0
        %1390 = vmatprep.mubr.bf16.mxu0 0
        %1391 = vmatmul.mubr.bf16.gmra.mrb[0].mxu0 %v1235
        %v1392 = vpop.f32.mrb[0].mxu0
        %v1393 = vadd.f32 %v1064, %v1392
        %v1394 = vpop.f32.mrb[0].mxu0
        %v1395 = vpop.f32.mrb[0].mxu0
        %v1396 = vadd.f32 %v1064, %v1395
        %v1397 = vpop.f32.mrb[0].mxu0
        %1398 = vmatprep.mubr.bf16.mxu0 0
        %1399 = vmatmul.mubr.bf16.gmra.mrb[0].mxu0 %v1238
        %v1400 = vpop.f32.mrb[0].mxu0
        %v1401 = vadd.f32 %v1064, %v1400
        %v1402 = vpop.f32.mrb[0].mxu0
        %v1403 = vpop.f32.mrb[0].mxu0
        %v1404 = vadd.f32 %v1064, %v1403
        %v1405 = vpop.f32.mrb[0].mxu0
        %1406 = vmatprep.mubr.bf16.mxu0 0
        %1407 = vmatmul.mubr.bf16.gmra.mrb[0].mxu0 %v1241
        %v1408 = vpop.f32.mrb[0].mxu0
        %v1409 = vadd.f32 %v1064, %v1408
        %v1410 = vpop.f32.mrb[0].mxu0
        %v1411 = vpop.f32.mrb[0].mxu0
        %v1412 = vadd.f32 %v1064, %v1411
        %v1413 = vpop.f32.mrb[0].mxu0
        %1414 = vmatprep.mubr.bf16.mxu0 0
        %1415 = vmatmul.mubr.bf16.gmra.mrb[0].mxu0 %v1244
        %v1416 = vpop.f32.mrb[0].mxu0
        %v1417 = vadd.f32 %v1064, %v1416
        %v1418 = vpop.f32.mrb[0].mxu0
        %v1419 = vpop.f32.mrb[0].mxu0
        %v1420 = vadd.f32 %v1064, %v1419
        %v1421 = vpop.f32.mrb[0].mxu0
        %1422 = vmatprep.mubr.bf16.mxu0 0
        %1423 = vmatmul.mubr.bf16.gmra.mrb[0].mxu0 %v1247
        %v1424 = vpop.f32.mrb[0].mxu0
        %v1425 = vadd.f32 %v1064, %v1424
        %v1426 = vpop.f32.mrb[0].mxu0
        %v1427 = vpop.f32.mrb[0].mxu0
        %v1428 = vadd.f32 %v1064, %v1427
        %v1429 = vpop.f32.mrb[0].mxu0
        %1430 = vmatprep.mubr.bf16.mxu0 0
        %1431 = vmatmul.mubr.bf16.gmra.mrb[0].mxu0 %v1250
        %v1432 = vpop.f32.mrb[0].mxu0
        %v1433 = vadd.f32 %v1064, %v1432
        %v1434 = vpop.f32.mrb[0].mxu0
        %v1435 = vpop.f32.mrb[0].mxu0
        %v1436 = vadd.f32 %v1064, %v1435
        %v1437 = vpop.f32.mrb[0].mxu0
        %1438 = vmatprep.mubr.bf16.mxu0 0
        %1439 = vmatmul.mubr.bf16.gmra.mrb[0].mxu0 %v1253
        %v1440 = vpop.f32.mrb[0].mxu0
        %v1441 = vadd.f32 %v1064, %v1440
        %v1442 = vpop.f32.mrb[0].mxu0
        %v1443 = vpop.f32.mrb[0].mxu0
        %v1444 = vadd.f32 %v1064, %v1443
        %v1445 = vpop.f32.mrb[0].mxu0
        %1446 = vmatprep.mubr.bf16.mxu0 0
        %1447 = vmatmul.mubr.bf16.gmra.mrb[0].mxu0 %v1256
        %v1448 = vpop.f32.mrb[0].mxu0
        %v1449 = vadd.f32 %v1064, %v1448
        %v1450 = vpop.f32.mrb[0].mxu0
        %v1451 = vpop.f32.mrb[0].mxu0
        %v1452 = vadd.f32 %v1064, %v1451
        %v1453 = vpop.f32.mrb[0].mxu0
        %1454 = vmatprep.mubr.bf16.mxu0 0
        %1455 = vmatmul.mubr.bf16.gmra.mrb[0].mxu0 %v1259
        %v1456 = vpop.f32.mrb[0].mxu0
        %v1457 = vadd.f32 %v1064, %v1456
        %v1458 = vpop.f32.mrb[0].mxu0
        %v1459 = vpop.f32.mrb[0].mxu0
        %v1460 = vadd.f32 %v1064, %v1459
        %v1461 = vpop.f32.mrb[0].mxu0
        %1462 = vmatprep.mubr.bf16.mxu0 0
        %1463 = vmatmul.mubr.bf16.gmra.mrb[0].mxu0 %v1262
        %v1464 = vpop.f32.mrb[0].mxu0
        %v1465 = vadd.f32 %v1064, %v1464
        %v1466 = vpop.f32.mrb[0].mxu0
        %v1467 = vpop.f32.mrb[0].mxu0
        %v1468 = vadd.f32 %v1064, %v1467
        %v1469 = vpop.f32.mrb[0].mxu0
        %1470 = vmatprep.mubr.bf16.mxu0 0
        %1471 = vmatmul.mubr.bf16.gmra.mrb[0].mxu0 %v1265
        %v1472 = vpop.f32.mrb[0].mxu0
        %v1473 = vadd.f32 %v1064, %v1472
        %v1474 = vpop.f32.mrb[0].mxu0
        %v1475 = vpop.f32.mrb[0].mxu0
        %v1476 = vadd.f32 %v1064, %v1475
        %v1477 = vpop.f32.mrb[0].mxu0
        %1478 = vmatprep.mubr.bf16.mxu0 0
        %1479 = vmatmul.mubr.bf16.gmra.mrb[0].mxu0 %v1268
        %v1480 = vpop.f32.mrb[0].mxu0
        %v1481 = vadd.f32 %v1064, %v1480
        %v1482 = vpop.f32.mrb[0].mxu0
        %v1483 = vpop.f32.mrb[0].mxu0
        %v1484 = vadd.f32 %v1064, %v1483
        %v1485 = vpop.f32.mrb[0].mxu0
        %1486 = vmatprep.mubr.bf16.mxu0 0
        %1487 = vmatmul.mubr.bf16.gmra.mrb[0].mxu0 %v1271
        %v1488 = vpop.f32.mrb[0].mxu0
        %v1489 = vadd.f32 %v1064, %v1488
        %v1490 = vpop.f32.mrb[0].mxu0
        %v1491 = vpop.f32.mrb[0].mxu0
        %v1492 = vadd.f32 %v1064, %v1491
        %v1493 = vpop.f32.mrb[0].mxu0
        %1494 = vmatprep.mubr.bf16.mxu0 0
        %1495 = vmatmul.mubr.bf16.gmra.mrb[0].mxu0 %v1274
        %v1496 = vpop.f32.mrb[0].mxu0
        %v1497 = vadd.f32 %v1064, %v1496
        %v1498 = vpop.f32.mrb[0].mxu0
        %v1499 = vpop.f32.mrb[0].mxu0
        %v1500 = vadd.f32 %v1064, %v1499
        %v1501 = vpop.f32.mrb[0].mxu0
        %1502 = vmatprep.mubr.bf16.mxu0 0
        %1503 = vmatmul.mubr.bf16.gmra.mrb[0].mxu0 %v1277
        %v1504 = vpop.f32.mrb[0].mxu0
        %v1505 = vadd.f32 %v1064, %v1504
        %v1506 = vpop.f32.mrb[0].mxu0
        %v1507 = vpop.f32.mrb[0].mxu0
        %v1508 = vadd.f32 %v1064, %v1507
        %v1509 = vpop.f32.mrb[0].mxu0
        %1510 = vdwg.mxu0
        %v1511 = vld [vmem:[%s949] sm:$0xf]
        %v1512 = vld [vmem:[%s949 + $0x4] sm:$0xf]
        %v1513 = vld [vmem:[%s949 + $0x8] sm:$0xf]
        %v1514 = vld [vmem:[%s949 + $0xc] sm:$0xf]
        %v1515 = vld [vmem:[%s949 + $0x10] sm:$0xf]
        %v1516 = vld [vmem:[%s949 + $0x14] sm:$0xf]
        %v1517 = vld [vmem:[%s949 + $0x18] sm:$0xf]
        %v1518 = vld [vmem:[%s949 + $0x1c] sm:$0xf]
        %v1519 = vld [vmem:[%s949 + $0x20] sm:$0xf]
        %v1520 = vld [vmem:[%s949 + $0x24] sm:$0xf]
        %v1521 = vld [vmem:[%s949 + $0x28] sm:$0xf]
        %v1522 = vld [vmem:[%s949 + $0x2c] sm:$0xf]
        %v1523 = vld [vmem:[%s949 + $0x30] sm:$0xf]
        %v1524 = vld [vmem:[%s949 + $0x34] sm:$0xf]
        %v1525 = vld [vmem:[%s949 + $0x38] sm:$0xf]
        %v1526 = vld [vmem:[%s949 + $0x3c] sm:$0xf]
        %v1527 = vld [vmem:[%s949 + $0x40] sm:$0xf]
        %v1528 = vld [vmem:[%s949 + $0x44] sm:$0xf]
        %v1529 = vld [vmem:[%s949 + $0x48] sm:$0xf]
        %v1530 = vld [vmem:[%s949 + $0x4c] sm:$0xf]
        %v1531 = vld [vmem:[%s949 + $0x50] sm:$0xf]
        %v1532 = vld [vmem:[%s949 + $0x54] sm:$0xf]
        %v1533 = vld [vmem:[%s949 + $0x58] sm:$0xf]
        %v1534 = vld [vmem:[%s949 + $0x5c] sm:$0xf]
        %v1535 = vld [vmem:[%s949 + $0x60] sm:$0xf]
        %v1536 = vld [vmem:[%s949 + $0x64] sm:$0xf]
        %v1537 = vld [vmem:[%s949 + $0x68] sm:$0xf]
        %v1538 = vld [vmem:[%s949 + $0x6c] sm:$0xf]
        %v1539 = vld [vmem:[%s949 + $0x70] sm:$0xf]
        %v1540 = vld [vmem:[%s949 + $0x74] sm:$0xf]
        %v1541 = vld [vmem:[%s949 + $0x78] sm:$0xf]
        %v1542 = vld [vmem:[%s949 + $0x7c] sm:$0xf]
        %v1543 = vld [vmem:[%s949 + $0x80] sm:$0xf]
        %v1544 = vld [vmem:[%s949 + $0x84] sm:$0xf]
        %v1545 = vld [vmem:[%s949 + $0x88] sm:$0xf]
        %v1546 = vld [vmem:[%s949 + $0x8c] sm:$0xf]
        %v1547 = vld [vmem:[%s949 + $0x90] sm:$0xf]
        %v1548 = vld [vmem:[%s949 + $0x94] sm:$0xf]
        %v1549 = vld [vmem:[%s949 + $0x98] sm:$0xf]
        %v1550 = vld [vmem:[%s949 + $0x9c] sm:$0xf]
        %v1551 = vld [vmem:[%s949 + $0xa0] sm:$0xf]
        %v1552 = vld [vmem:[%s949 + $0xa4] sm:$0xf]
        %v1553 = vld [vmem:[%s949 + $0xa8] sm:$0xf]
        %v1554 = vld [vmem:[%s949 + $0xac] sm:$0xf]
        %v1555 = vld [vmem:[%s949 + $0xb0] sm:$0xf]
        %v1556 = vld [vmem:[%s949 + $0xb4] sm:$0xf]
        %v1557 = vld [vmem:[%s949 + $0xb8] sm:$0xf]
        %v1558 = vld [vmem:[%s949 + $0xbc] sm:$0xf]
        %v1559 = vunpack.c.l.bf16 %v1511
        %v1560 = vunpack.c.l.bf16 %v1512
        %v1561 = vunpack.c.l.bf16 %v1513
        %v1562 = vunpack.c.l.bf16 %v1514
        %v1563 = vunpack.c.l.bf16 %v1515
        %v1564 = vunpack.c.l.bf16 %v1516
        %v1565 = vunpack.c.l.bf16 %v1517
        %v1566 = vunpack.c.l.bf16 %v1518
        %v1567 = vunpack.c.l.bf16 %v1519
        %v1568 = vunpack.c.l.bf16 %v1520
        %v1569 = vunpack.c.l.bf16 %v1521
        %v1570 = vunpack.c.l.bf16 %v1522
        %v1571 = vunpack.c.l.bf16 %v1523
        %v1572 = vunpack.c.l.bf16 %v1524
        %v1573 = vunpack.c.l.bf16 %v1525
        %v1574 = vunpack.c.l.bf16 %v1526
        %v1575 = vunpack.c.l.bf16 %v1527
        %v1576 = vunpack.c.l.bf16 %v1528
        %v1577 = vunpack.c.l.bf16 %v1529
        %v1578 = vunpack.c.l.bf16 %v1530
        %v1579 = vunpack.c.l.bf16 %v1531
        %v1580 = vunpack.c.l.bf16 %v1532
        %v1581 = vunpack.c.l.bf16 %v1533
        %v1582 = vunpack.c.l.bf16 %v1534
        %v1583 = vunpack.c.l.bf16 %v1535
        %v1584 = vunpack.c.l.bf16 %v1536
        %v1585 = vunpack.c.l.bf16 %v1537
        %v1586 = vunpack.c.l.bf16 %v1538
        %v1587 = vunpack.c.l.bf16 %v1539
        %v1588 = vunpack.c.l.bf16 %v1540
        %v1589 = vunpack.c.l.bf16 %v1541
        %v1590 = vunpack.c.l.bf16 %v1542
        %v1591 = vunpack.c.l.bf16 %v1543
        %v1592 = vunpack.c.l.bf16 %v1544
        %v1593 = vunpack.c.l.bf16 %v1545
        %v1594 = vunpack.c.l.bf16 %v1546
        %v1595 = vunpack.c.l.bf16 %v1547
        %v1596 = vunpack.c.l.bf16 %v1548
        %v1597 = vunpack.c.l.bf16 %v1549
        %v1598 = vunpack.c.l.bf16 %v1550
        %v1599 = vunpack.c.l.bf16 %v1551
        %v1600 = vunpack.c.l.bf16 %v1552
        %v1601 = vunpack.c.l.bf16 %v1553
        %v1602 = vunpack.c.l.bf16 %v1554
        %v1603 = vunpack.c.l.bf16 %v1555
        %v1604 = vunpack.c.l.bf16 %v1556
        %v1605 = vunpack.c.l.bf16 %v1557
        %v1606 = vunpack.c.l.bf16 %v1558
        %v1607 = vld [vmem:[%s956] sm:$0xf]
        %v1608 = vld [vmem:[%s956 + $0x4] sm:$0xf]
        %v1609 = vld [vmem:[%s956 + $0x8] sm:$0xf]
        %v1610 = vld [vmem:[%s956 + $0xc] sm:$0xf]
        %v1611 = vld [vmem:[%s956 + $0x10] sm:$0xf]
        %v1612 = vld [vmem:[%s956 + $0x14] sm:$0xf]
        %v1613 = vld [vmem:[%s956 + $0x18] sm:$0xf]
        %v1614 = vld [vmem:[%s956 + $0x1c] sm:$0xf]
        %v1615 = vld [vmem:[%s956 + $0x20] sm:$0xf]
        %v1616 = vld [vmem:[%s956 + $0x24] sm:$0xf]
        %v1617 = vld [vmem:[%s956 + $0x28] sm:$0xf]
        %v1618 = vld [vmem:[%s956 + $0x2c] sm:$0xf]
        %v1619 = vld [vmem:[%s956 + $0x30] sm:$0xf]
        %v1620 = vld [vmem:[%s956 + $0x34] sm:$0xf]
        %v1621 = vld [vmem:[%s956 + $0x38] sm:$0xf]
        %v1622 = vld [vmem:[%s956 + $0x3c] sm:$0xf]
        %v1623 = vld [vmem:[%s956 + $0x40] sm:$0xf]
        %v1624 = vld [vmem:[%s956 + $0x44] sm:$0xf]
        %v1625 = vld [vmem:[%s956 + $0x48] sm:$0xf]
        %v1626 = vld [vmem:[%s956 + $0x4c] sm:$0xf]
        %v1627 = vld [vmem:[%s956 + $0x50] sm:$0xf]
        %v1628 = vld [vmem:[%s956 + $0x54] sm:$0xf]
        %v1629 = vld [vmem:[%s956 + $0x58] sm:$0xf]
        %v1630 = vld [vmem:[%s956 + $0x5c] sm:$0xf]
        %v1631 = vld [vmem:[%s956 + $0x60] sm:$0xf]
        %v1632 = vld [vmem:[%s956 + $0x64] sm:$0xf]
        %v1633 = vld [vmem:[%s956 + $0x68] sm:$0xf]
        %v1634 = vld [vmem:[%s956 + $0x6c] sm:$0xf]
        %v1635 = vld [vmem:[%s956 + $0x70] sm:$0xf]
        %v1636 = vld [vmem:[%s956 + $0x74] sm:$0xf]
        %v1637 = vld [vmem:[%s956 + $0x78] sm:$0xf]
        %v1638 = vld [vmem:[%s956 + $0x7c] sm:$0xf]
        %v1639 = vld [vmem:[%s956 + $0x80] sm:$0xf]
        %v1640 = vld [vmem:[%s956 + $0x84] sm:$0xf]
        %v1641 = vld [vmem:[%s956 + $0x88] sm:$0xf]
        %v1642 = vld [vmem:[%s956 + $0x8c] sm:$0xf]
        %v1643 = vld [vmem:[%s956 + $0x90] sm:$0xf]
        %v1644 = vld [vmem:[%s956 + $0x94] sm:$0xf]
        %v1645 = vld [vmem:[%s956 + $0x98] sm:$0xf]
        %v1646 = vld [vmem:[%s956 + $0x9c] sm:$0xf]
        %v1647 = vld [vmem:[%s956 + $0xa0] sm:$0xf]
        %v1648 = vld [vmem:[%s956 + $0xa4] sm:$0xf]
        %v1649 = vld [vmem:[%s956 + $0xa8] sm:$0xf]
        %v1650 = vld [vmem:[%s956 + $0xac] sm:$0xf]
        %v1651 = vld [vmem:[%s956 + $0xb0] sm:$0xf]
        %v1652 = vld [vmem:[%s956 + $0xb4] sm:$0xf]
        %v1653 = vld [vmem:[%s956 + $0xb8] sm:$0xf]
        %v1654 = vld [vmem:[%s956 + $0xbc] sm:$0xf]
        %v1655 = vunpack.c.l.bf16 %v1607
        %v1656 = vunpack.c.l.bf16 %v1608
        %v1657 = vunpack.c.l.bf16 %v1609
        %v1658 = vunpack.c.l.bf16 %v1610
        %v1659 = vunpack.c.l.bf16 %v1611
        %v1660 = vunpack.c.l.bf16 %v1612
        %v1661 = vunpack.c.l.bf16 %v1613
        %v1662 = vunpack.c.l.bf16 %v1614
        %v1663 = vunpack.c.l.bf16 %v1615
        %v1664 = vunpack.c.l.bf16 %v1616
        %v1665 = vunpack.c.l.bf16 %v1617
        %v1666 = vunpack.c.l.bf16 %v1618
        %v1667 = vunpack.c.l.bf16 %v1619
        %v1668 = vunpack.c.l.bf16 %v1620
        %v1669 = vunpack.c.l.bf16 %v1621
        %v1670 = vunpack.c.l.bf16 %v1622
        %v1671 = vunpack.c.l.bf16 %v1623
        %v1672 = vunpack.c.l.bf16 %v1624
        %v1673 = vunpack.c.l.bf16 %v1625
        %v1674 = vunpack.c.l.bf16 %v1626
        %v1675 = vunpack.c.l.bf16 %v1627
        %v1676 = vunpack.c.l.bf16 %v1628
        %v1677 = vunpack.c.l.bf16 %v1629
        %v1678 = vunpack.c.l.bf16 %v1630
        %v1679 = vunpack.c.l.bf16 %v1631
        %v1680 = vunpack.c.l.bf16 %v1632
        %v1681 = vunpack.c.l.bf16 %v1633
        %v1682 = vunpack.c.l.bf16 %v1634
        %v1683 = vunpack.c.l.bf16 %v1635
        %v1684 = vunpack.c.l.bf16 %v1636
        %v1685 = vunpack.c.l.bf16 %v1637
        %v1686 = vunpack.c.l.bf16 %v1638
        %v1687 = vunpack.c.l.bf16 %v1639
        %v1688 = vunpack.c.l.bf16 %v1640
        %v1689 = vunpack.c.l.bf16 %v1641
        %v1690 = vunpack.c.l.bf16 %v1642
        %v1691 = vunpack.c.l.bf16 %v1643
        %v1692 = vunpack.c.l.bf16 %v1644
        %v1693 = vunpack.c.l.bf16 %v1645
        %v1694 = vunpack.c.l.bf16 %v1646
        %v1695 = vunpack.c.l.bf16 %v1647
        %v1696 = vunpack.c.l.bf16 %v1648
        %v1697 = vunpack.c.l.bf16 %v1649
        %v1698 = vunpack.c.l.bf16 %v1650
        %v1699 = vunpack.c.l.bf16 %v1651
        %v1700 = vunpack.c.l.bf16 %v1652
        %v1701 = vunpack.c.l.bf16 %v1653
        %v1702 = vunpack.c.l.bf16 %v1654
        %v1703 = vadd.f32 %v1655, %v1321
        %v1704 = vadd.f32 %v1656, %v1324
        %v1705 = vadd.f32 %v1657, %v1329
        %v1706 = vadd.f32 %v1658, %v1332
        %v1707 = vadd.f32 %v1659, %v1337
        %v1708 = vadd.f32 %v1660, %v1340
        %v1709 = vadd.f32 %v1661, %v1345
        %v1710 = vadd.f32 %v1662, %v1348
        %v1711 = vadd.f32 %v1663, %v1353
        %v1712 = vadd.f32 %v1664, %v1356
        %v1713 = vadd.f32 %v1665, %v1361
        %v1714 = vadd.f32 %v1666, %v1364
        %v1715 = vadd.f32 %v1667, %v1369
        %v1716 = vadd.f32 %v1668, %v1372
        %v1717 = vadd.f32 %v1669, %v1377
        %v1718 = vadd.f32 %v1670, %v1380
        %v1719 = vadd.f32 %v1671, %v1385
        %v1720 = vadd.f32 %v1672, %v1388
        %v1721 = vadd.f32 %v1673, %v1393
        %v1722 = vadd.f32 %v1674, %v1396
        %v1723 = vadd.f32 %v1675, %v1401
        %v1724 = vadd.f32 %v1676, %v1404
        %v1725 = vadd.f32 %v1677, %v1409
        %v1726 = vadd.f32 %v1678, %v1412
        %v1727 = vadd.f32 %v1679, %v1417
        %v1728 = vadd.f32 %v1680, %v1420
        %v1729 = vadd.f32 %v1681, %v1425
        %v1730 = vadd.f32 %v1682, %v1428
        %v1731 = vadd.f32 %v1683, %v1433
        %v1732 = vadd.f32 %v1684, %v1436
        %v1733 = vadd.f32 %v1685, %v1441
        %v1734 = vadd.f32 %v1686, %v1444
        %v1735 = vadd.f32 %v1687, %v1449
        %v1736 = vadd.f32 %v1688, %v1452
        %v1737 = vadd.f32 %v1689, %v1457
        %v1738 = vadd.f32 %v1690, %v1460
        %v1739 = vadd.f32 %v1691, %v1465
        %v1740 = vadd.f32 %v1692, %v1468
        %v1741 = vadd.f32 %v1693, %v1473
        %v1742 = vadd.f32 %v1694, %v1476
        %v1743 = vadd.f32 %v1695, %v1481
        %v1744 = vadd.f32 %v1696, %v1484
        %v1745 = vadd.f32 %v1697, %v1489
        %v1746 = vadd.f32 %v1698, %v1492
        %v1747 = vadd.f32 %v1699, %v1497
        %v1748 = vadd.f32 %v1700, %v1500
        %v1749 = vadd.f32 %v1701, %v1505
        %v1750 = vadd.f32 %v1702, %v1508
        %v1751 = vmax.f32 %v1703, 0.0
        %v1752 = vmax.f32 %v1704, 0.0
        %v1753 = vmax.f32 %v1705, 0.0
        %v1754 = vmax.f32 %v1706, 0.0
        %v1755 = vmax.f32 %v1707, 0.0
        %v1756 = vmax.f32 %v1708, 0.0
        %v1757 = vmax.f32 %v1709, 0.0
        %v1758 = vmax.f32 %v1710, 0.0
        %v1759 = vmax.f32 %v1711, 0.0
        %v1760 = vmax.f32 %v1712, 0.0
        %v1761 = vmax.f32 %v1713, 0.0
        %v1762 = vmax.f32 %v1714, 0.0
        %v1763 = vmax.f32 %v1715, 0.0
        %v1764 = vmax.f32 %v1716, 0.0
        %v1765 = vmax.f32 %v1717, 0.0
        %v1766 = vmax.f32 %v1718, 0.0
        %v1767 = vmax.f32 %v1719, 0.0
        %v1768 = vmax.f32 %v1720, 0.0
        %v1769 = vmax.f32 %v1721, 0.0
        %v1770 = vmax.f32 %v1722, 0.0
        %v1771 = vmax.f32 %v1723, 0.0
        %v1772 = vmax.f32 %v1724, 0.0
        %v1773 = vmax.f32 %v1725, 0.0
        %v1774 = vmax.f32 %v1726, 0.0
        %v1775 = vmax.f32 %v1727, 0.0
        %v1776 = vmax.f32 %v1728, 0.0
        %v1777 = vmax.f32 %v1729, 0.0
        %v1778 = vmax.f32 %v1730, 0.0
        %v1779 = vmax.f32 %v1731, 0.0
        %v1780 = vmax.f32 %v1732, 0.0
        %v1781 = vmax.f32 %v1733, 0.0
        %v1782 = vmax.f32 %v1734, 0.0
        %v1783 = vmax.f32 %v1735, 0.0
        %v1784 = vmax.f32 %v1736, 0.0
        %v1785 = vmax.f32 %v1737, 0.0
        %v1786 = vmax.f32 %v1738, 0.0
        %v1787 = vmax.f32 %v1739, 0.0
        %v1788 = vmax.f32 %v1740, 0.0
        %v1789 = vmax.f32 %v1741, 0.0
        %v1790 = vmax.f32 %v1742, 0.0
        %v1791 = vmax.f32 %v1743, 0.0
        %v1792 = vmax.f32 %v1744, 0.0
        %v1793 = vmax.f32 %v1745, 0.0
        %v1794 = vmax.f32 %v1746, 0.0
        %v1795 = vmax.f32 %v1747, 0.0
        %v1796 = vmax.f32 %v1748, 0.0
        %v1797 = vmax.f32 %v1749, 0.0
        %v1798 = vmax.f32 %v1750, 0.0
        %v1799 = vadd.f32 %v1559, %v1751
        %v1800 = vadd.f32 %v1560, %v1752
        %v1801 = vadd.f32 %v1561, %v1753
        %v1802 = vadd.f32 %v1562, %v1754
        %v1803 = vadd.f32 %v1563, %v1755
        %v1804 = vadd.f32 %v1564, %v1756
        %v1805 = vadd.f32 %v1565, %v1757
        %v1806 = vadd.f32 %v1566, %v1758
        %v1807 = vadd.f32 %v1567, %v1759
        %v1808 = vadd.f32 %v1568, %v1760
        %v1809 = vadd.f32 %v1569, %v1761
        %v1810 = vadd.f32 %v1570, %v1762
        %v1811 = vadd.f32 %v1571, %v1763
        %v1812 = vadd.f32 %v1572, %v1764
        %v1813 = vadd.f32 %v1573, %v1765
        %v1814 = vadd.f32 %v1574, %v1766
        %v1815 = vadd.f32 %v1575, %v1767
        %v1816 = vadd.f32 %v1576, %v1768
        %v1817 = vadd.f32 %v1577, %v1769
        %v1818 = vadd.f32 %v1578, %v1770
        %v1819 = vadd.f32 %v1579, %v1771
        %v1820 = vadd.f32 %v1580, %v1772
        %v1821 = vadd.f32 %v1581, %v1773
        %v1822 = vadd.f32 %v1582, %v1774
        %v1823 = vadd.f32 %v1583, %v1775
        %v1824 = vadd.f32 %v1584, %v1776
        %v1825 = vadd.f32 %v1585, %v1777
        %v1826 = vadd.f32 %v1586, %v1778
        %v1827 = vadd.f32 %v1587, %v1779
        %v1828 = vadd.f32 %v1588, %v1780
        %v1829 = vadd.f32 %v1589, %v1781
        %v1830 = vadd.f32 %v1590, %v1782
        %v1831 = vadd.f32 %v1591, %v1783
        %v1832 = vadd.f32 %v1592, %v1784
        %v1833 = vadd.f32 %v1593, %v1785
        %v1834 = vadd.f32 %v1594, %v1786
        %v1835 = vadd.f32 %v1595, %v1787
        %v1836 = vadd.f32 %v1596, %v1788
        %v1837 = vadd.f32 %v1597, %v1789
        %v1838 = vadd.f32 %v1598, %v1790
        %v1839 = vadd.f32 %v1599, %v1791
        %v1840 = vadd.f32 %v1600, %v1792
        %v1841 = vadd.f32 %v1601, %v1793
        %v1842 = vadd.f32 %v1602, %v1794
        %v1843 = vadd.f32 %v1603, %v1795
        %v1844 = vadd.f32 %v1604, %v1796
        %v1845 = vadd.f32 %v1605, %v1797
        %v1846 = vadd.f32 %v1606, %v1798
        %v1847 = vadd.f32 %v1559, %v1321
        %v1848 = vadd.f32 %v1560, %v1324
        %v1849 = vadd.f32 %v1561, %v1329
        %v1850 = vadd.f32 %v1562, %v1332
        %v1851 = vadd.f32 %v1563, %v1337
        %v1852 = vadd.f32 %v1564, %v1340
        %v1853 = vadd.f32 %v1565, %v1345
        %v1854 = vadd.f32 %v1566, %v1348
        %v1855 = vadd.f32 %v1567, %v1353
        %v1856 = vadd.f32 %v1568, %v1356
        %v1857 = vadd.f32 %v1569, %v1361
        %v1858 = vadd.f32 %v1570, %v1364
        %v1859 = vadd.f32 %v1571, %v1369
        %v1860 = vadd.f32 %v1572, %v1372
        %v1861 = vadd.f32 %v1573, %v1377
        %v1862 = vadd.f32 %v1574, %v1380
        %v1863 = vadd.f32 %v1575, %v1385
        %v1864 = vadd.f32 %v1576, %v1388
        %v1865 = vadd.f32 %v1577, %v1393
        %v1866 = vadd.f32 %v1578, %v1396
        %v1867 = vadd.f32 %v1579, %v1401
        %v1868 = vadd.f32 %v1580, %v1404
        %v1869 = vadd.f32 %v1581, %v1409
        %v1870 = vadd.f32 %v1582, %v1412
        %v1871 = vadd.f32 %v1583, %v1417
        %v1872 = vadd.f32 %v1584, %v1420
        %v1873 = vadd.f32 %v1585, %v1425
        %v1874 = vadd.f32 %v1586, %v1428
        %v1875 = vadd.f32 %v1587, %v1433
        %v1876 = vadd.f32 %v1588, %v1436
        %v1877 = vadd.f32 %v1589, %v1441
        %v1878 = vadd.f32 %v1590, %v1444
        %v1879 = vadd.f32 %v1591, %v1449
        %v1880 = vadd.f32 %v1592, %v1452
        %v1881 = vadd.f32 %v1593, %v1457
        %v1882 = vadd.f32 %v1594, %v1460
        %v1883 = vadd.f32 %v1595, %v1465
        %v1884 = vadd.f32 %v1596, %v1468
        %v1885 = vadd.f32 %v1597, %v1473
        %v1886 = vadd.f32 %v1598, %v1476
        %v1887 = vadd.f32 %v1599, %v1481
        %v1888 = vadd.f32 %v1600, %v1484
        %v1889 = vadd.f32 %v1601, %v1489
        %v1890 = vadd.f32 %v1602, %v1492
        %v1891 = vadd.f32 %v1603, %v1497
        %v1892 = vadd.f32 %v1604, %v1500
        %v1893 = vadd.f32 %v1605, %v1505
        %v1894 = vadd.f32 %v1606, %v1508
        %v1895 = vmax.f32 %v1847, 0.0
        %v1896 = vmax.f32 %v1848, 0.0
        %v1897 = vmax.f32 %v1849, 0.0
        %v1898 = vmax.f32 %v1850, 0.0
        %v1899 = vmax.f32 %v1851, 0.0
        %v1900 = vmax.f32 %v1852, 0.0
        %v1901 = vmax.f32 %v1853, 0.0
        %v1902 = vmax.f32 %v1854, 0.0
        %v1903 = vmax.f32 %v1855, 0.0
        %v1904 = vmax.f32 %v1856, 0.0
        %v1905 = vmax.f32 %v1857, 0.0
        %v1906 = vmax.f32 %v1858, 0.0
        %v1907 = vmax.f32 %v1859, 0.0
        %v1908 = vmax.f32 %v1860, 0.0
        %v1909 = vmax.f32 %v1861, 0.0
        %v1910 = vmax.f32 %v1862, 0.0
        %v1911 = vmax.f32 %v1863, 0.0
        %v1912 = vmax.f32 %v1864, 0.0
        %v1913 = vmax.f32 %v1865, 0.0
        %v1914 = vmax.f32 %v1866, 0.0
        %v1915 = vmax.f32 %v1867, 0.0
        %v1916 = vmax.f32 %v1868, 0.0
        %v1917 = vmax.f32 %v1869, 0.0
        %v1918 = vmax.f32 %v1870, 0.0
        %v1919 = vmax.f32 %v1871, 0.0
        %v1920 = vmax.f32 %v1872, 0.0
        %v1921 = vmax.f32 %v1873, 0.0
        %v1922 = vmax.f32 %v1874, 0.0
        %v1923 = vmax.f32 %v1875, 0.0
        %v1924 = vmax.f32 %v1876, 0.0
        %v1925 = vmax.f32 %v1877, 0.0
        %v1926 = vmax.f32 %v1878, 0.0
        %v1927 = vmax.f32 %v1879, 0.0
        %v1928 = vmax.f32 %v1880, 0.0
        %v1929 = vmax.f32 %v1881, 0.0
        %v1930 = vmax.f32 %v1882, 0.0
        %v1931 = vmax.f32 %v1883, 0.0
        %v1932 = vmax.f32 %v1884, 0.0
        %v1933 = vmax.f32 %v1885, 0.0
        %v1934 = vmax.f32 %v1886, 0.0
        %v1935 = vmax.f32 %v1887, 0.0
        %v1936 = vmax.f32 %v1888, 0.0
        %v1937 = vmax.f32 %v1889, 0.0
        %v1938 = vmax.f32 %v1890, 0.0
        %v1939 = vmax.f32 %v1891, 0.0
        %v1940 = vmax.f32 %v1892, 0.0
        %v1941 = vmax.f32 %v1893, 0.0
        %v1942 = vmax.f32 %v1894, 0.0
        %v1943 = vadd.f32 %v1655, %v1895
        %v1944 = vadd.f32 %v1656, %v1896
        %v1945 = vadd.f32 %v1657, %v1897
        %v1946 = vadd.f32 %v1658, %v1898
        %v1947 = vadd.f32 %v1659, %v1899
        %v1948 = vadd.f32 %v1660, %v1900
        %v1949 = vadd.f32 %v1661, %v1901
        %v1950 = vadd.f32 %v1662, %v1902
        %v1951 = vadd.f32 %v1663, %v1903
        %v1952 = vadd.f32 %v1664, %v1904
        %v1953 = vadd.f32 %v1665, %v1905
        %v1954 = vadd.f32 %v1666, %v1906
        %v1955 = vadd.f32 %v1667, %v1907
        %v1956 = vadd.f32 %v1668, %v1908
        %v1957 = vadd.f32 %v1669, %v1909
        %v1958 = vadd.f32 %v1670, %v1910
        %v1959 = vadd.f32 %v1671, %v1911
        %v1960 = vadd.f32 %v1672, %v1912
        %v1961 = vadd.f32 %v1673, %v1913
        %v1962 = vadd.f32 %v1674, %v1914
        %v1963 = vadd.f32 %v1675, %v1915
        %v1964 = vadd.f32 %v1676, %v1916
        %v1965 = vadd.f32 %v1677, %v1917
        %v1966 = vadd.f32 %v1678, %v1918
        %v1967 = vadd.f32 %v1679, %v1919
        %v1968 = vadd.f32 %v1680, %v1920
        %v1969 = vadd.f32 %v1681, %v1921
        %v1970 = vadd.f32 %v1682, %v1922
        %v1971 = vadd.f32 %v1683, %v1923
        %v1972 = vadd.f32 %v1684, %v1924
        %v1973 = vadd.f32 %v1685, %v1925
        %v1974 = vadd.f32 %v1686, %v1926
        %v1975 = vadd.f32 %v1687, %v1927
        %v1976 = vadd.f32 %v1688, %v1928
        %v1977 = vadd.f32 %v1689, %v1929
        %v1978 = vadd.f32 %v1690, %v1930
        %v1979 = vadd.f32 %v1691, %v1931
        %v1980 = vadd.f32 %v1692, %v1932
        %v1981 = vadd.f32 %v1693, %v1933
        %v1982 = vadd.f32 %v1694, %v1934
        %v1983 = vadd.f32 %v1695, %v1935
        %v1984 = vadd.f32 %v1696, %v1936
        %v1985 = vadd.f32 %v1697, %v1937
        %v1986 = vadd.f32 %v1698, %v1938
        %v1987 = vadd.f32 %v1699, %v1939
        %v1988 = vadd.f32 %v1700, %v1940
        %v1989 = vadd.f32 %v1701, %v1941
        %v1990 = vadd.f32 %v1702, %v1942
        %v1991 = vpack.c.bf16 %v1800, %v1799
        %v1992 = vpack.c.bf16 %v1802, %v1801
        %v1993 = vpack.c.bf16 %v1804, %v1803
        %v1994 = vpack.c.bf16 %v1806, %v1805
        %v1995 = vpack.c.bf16 %v1808, %v1807
        %v1996 = vpack.c.bf16 %v1810, %v1809
        %v1997 = vpack.c.bf16 %v1812, %v1811
        %v1998 = vpack.c.bf16 %v1814, %v1813
        %v1999 = vpack.c.bf16 %v1816, %v1815
        %v2000 = vpack.c.bf16 %v1818, %v1817
        %v2001 = vpack.c.bf16 %v1820, %v1819
        %v2002 = vpack.c.bf16 %v1822, %v1821
        %v2003 = vpack.c.bf16 %v1824, %v1823
        %v2004 = vpack.c.bf16 %v1826, %v1825
        %v2005 = vpack.c.bf16 %v1828, %v1827
        %v2006 = vpack.c.bf16 %v1830, %v1829
        %v2007 = vpack.c.bf16 %v1832, %v1831
        %v2008 = vpack.c.bf16 %v1834, %v1833
        %v2009 = vpack.c.bf16 %v1836, %v1835
        %v2010 = vpack.c.bf16 %v1838, %v1837
        %v2011 = vpack.c.bf16 %v1840, %v1839
        %v2012 = vpack.c.bf16 %v1842, %v1841
        %v2013 = vpack.c.bf16 %v1844, %v1843
        %v2014 = vpack.c.bf16 %v1846, %v1845
        %v2015 = vpack.c.bf16 %v1944, %v1943
        %v2016 = vpack.c.bf16 %v1946, %v1945
        %v2017 = vpack.c.bf16 %v1948, %v1947
        %v2018 = vpack.c.bf16 %v1950, %v1949
        %v2019 = vpack.c.bf16 %v1952, %v1951
        %v2020 = vpack.c.bf16 %v1954, %v1953
        %v2021 = vpack.c.bf16 %v1956, %v1955
        %v2022 = vpack.c.bf16 %v1958, %v1957
        %v2023 = vpack.c.bf16 %v1960, %v1959
        %v2024 = vpack.c.bf16 %v1962, %v1961
        %v2025 = vpack.c.bf16 %v1964, %v1963
        %v2026 = vpack.c.bf16 %v1966, %v1965
        %v2027 = vpack.c.bf16 %v1968, %v1967
        %v2028 = vpack.c.bf16 %v1970, %v1969
        %v2029 = vpack.c.bf16 %v1972, %v1971
        %v2030 = vpack.c.bf16 %v1974, %v1973
        %v2031 = vpack.c.bf16 %v1976, %v1975
        %v2032 = vpack.c.bf16 %v1978, %v1977
        %v2033 = vpack.c.bf16 %v1980, %v1979
        %v2034 = vpack.c.bf16 %v1982, %v1981
        %v2035 = vpack.c.bf16 %v1984, %v1983
        %v2036 = vpack.c.bf16 %v1986, %v1985
        %v2037 = vpack.c.bf16 %v1988, %v1987
        %v2038 = vpack.c.bf16 %v1990, %v1989
        %v2039 = vld [vmem:[%s4 + $0x20] sm:$0xf]
        %v2040 = vld [vmem:[%s4 + $0x24] sm:$0xf]
        %v2041 = vld [vmem:[%s4 + $0x28] sm:$0xf]
        %v2042 = vld [vmem:[%s4 + $0x2c] sm:$0xf]
        %v2043 = vld [vmem:[%s5 + $0x8] sm:$0x1]
        %v2044 = vlaneseq
        %v2045 = vshrl.u32 %v2044, 7
        %v2046 = vsub.s32 0, %v2045
        %v2047 = vrot.slane %v2043, %v2046
        %v2052 = vunpack.c.l.b16 %v2039
        %v2053 = vunpack.c.l.b16 %v2040
        %v2054 = vunpack.c.l.b16 %v2041
        %v2055 = vunpack.c.l.b16 %v2042
        %v2056 = vpack.c.b16 %v2053, %v2052
        %v2057 = vpack.c.b16 %v2055, %v2054
        %vm2060 = vcmask 261120
        %v2062 = vsel %vm2060, %v1991, 0
        %v2065 = vsel %vm2060, %v1992, 0
        %v2068 = vsel %vm2060, %v1993, 0
        %v2071 = vsel %vm2060, %v1994, 0
        %v2074 = vsel %vm2060, %v1995, 0
        %v2077 = vsel %vm2060, %v1996, 0
        %v2080 = vsel %vm2060, %v1997, 0
        %v2083 = vsel %vm2060, %v1998, 0
        %v2086 = vsel %vm2060, %v1999, 0
        %v2089 = vsel %vm2060, %v2000, 0
        %v2092 = vsel %vm2060, %v2001, 0
        %v2095 = vsel %vm2060, %v2002, 0
        %v2098 = vsel %vm2060, %v2003, 0
        %v2101 = vsel %vm2060, %v2004, 0
        %v2104 = vsel %vm2060, %v2005, 0
        %v2107 = vsel %vm2060, %v2006, 0
        %v2110 = vsel %vm2060, %v2007, 0
        %v2113 = vsel %vm2060, %v2008, 0
        %v2116 = vsel %vm2060, %v2009, 0
        %v2119 = vsel %vm2060, %v2010, 0
        %v2122 = vsel %vm2060, %v2011, 0
        %v2125 = vsel %vm2060, %v2012, 0
        %v2128 = vsel %vm2060, %v2013, 0
        %v2131 = vsel %vm2060, %v2014, 0
        %v2134 = vsel %vm2060, %v2015, 0
        %v2137 = vsel %vm2060, %v2016, 0
        %v2140 = vsel %vm2060, %v2017, 0
        %v2143 = vsel %vm2060, %v2018, 0
        %v2146 = vsel %vm2060, %v2019, 0
        %v2149 = vsel %vm2060, %v2020, 0
        %v2152 = vsel %vm2060, %v2021, 0
        %v2155 = vsel %vm2060, %v2022, 0
        %v2158 = vsel %vm2060, %v2023, 0
        %v2161 = vsel %vm2060, %v2024, 0
        %v2164 = vsel %vm2060, %v2025, 0
        %v2167 = vsel %vm2060, %v2026, 0
        %v2170 = vsel %vm2060, %v2027, 0
        %v2173 = vsel %vm2060, %v2028, 0
        %v2176 = vsel %vm2060, %v2029, 0
        %v2179 = vsel %vm2060, %v2030, 0
        %v2182 = vsel %vm2060, %v2031, 0
        %v2185 = vsel %vm2060, %v2032, 0
        %v2188 = vsel %vm2060, %v2033, 0
        %v2191 = vsel %vm2060, %v2034, 0
        %v2194 = vsel %vm2060, %v2035, 0
        %v2197 = vsel %vm2060, %v2036, 0
        %v2200 = vsel %vm2060, %v2037, 0
        %v2203 = vsel %vm2060, %v2038, 0
        %2205 = vmatprep.subr.bf16.mxu0 0
        %2206 = vmatpush1.bf16.msra.mxu0 %v2056
        %2207 = vmatprep.subr.bf16.mxu0 0
        %2208 = vmatpush1.bf16.msra.mxu0 %v2057
        %2209 = vmatprep.subr.bf16.mxu0 0
        %2210 = vmatpush1.bf16.msra.mxu0 0
        %2211 = vmatprep.subr.bf16.mxu0 0
        %2212 = vmatpush1.bf16.msra.mxu0 0
        %2213 = vmatprep.subr.bf16.mxu0 0
        %2214 = vmatpush1.bf16.msra.mxu0 0
        %2215 = vmatprep.subr.bf16.mxu0 0
        %2216 = vmatpush1.bf16.msra.mxu0 0
        %2217 = vmatprep.subr.bf16.mxu0 0
        %2218 = vmatpush1.bf16.msra.mxu0 0
        %2219 = vmatprep.subr.bf16.mxu0 0
        %2220 = vmatpush1.bf16.msra.mxu0 0
        %2221 = vmatprep.subr.bf16.mxu0 0
        %2222 = vmatpush1.bf16.msra.mxu0 0
        %2223 = vmatprep.subr.bf16.mxu0 0
        %2224 = vmatpush1.bf16.msra.mxu0 0
        %2225 = vmatprep.subr.bf16.mxu0 0
        %2226 = vmatpush1.bf16.msra.mxu0 0
        %2227 = vmatprep.subr.bf16.mxu0 0
        %2228 = vmatpush1.bf16.msra.mxu0 0
        %2229 = vmatprep.subr.bf16.mxu0 0
        %2230 = vmatpush1.bf16.msra.mxu0 0
        %2231 = vmatprep.subr.bf16.mxu0 0
        %2232 = vmatpush1.bf16.msra.mxu0 0
        %2233 = vmatprep.subr.bf16.mxu0 0
        %2234 = vmatpush1.bf16.msra.mxu0 0
        %2235 = vmatprep.subr.bf16.mxu0 0
        %2236 = vmatpush1.bf16.msra.mxu0 0
        %2237 = vmatprep.mubr.bf16.mxu0 0
        %2238 = vmatmul.mubr.bf16.gmra.mrb[0].mxu0 %v2062
        %v2239 = vpop.f32.mrb[0].mxu0
        %v2240 = vadd.f32 %v2047, %v2239
        %v2241 = vpop.f32.mrb[0].mxu0
        %v2242 = vpop.f32.mrb[0].mxu0
        %v2243 = vadd.f32 %v2047, %v2242
        %v2244 = vpop.f32.mrb[0].mxu0
        %2245 = vmatprep.mubr.bf16.mxu0 0
        %2246 = vmatmul.mubr.bf16.gmra.mrb[0].mxu0 %v2065
        %v2247 = vpop.f32.mrb[0].mxu0
        %v2248 = vadd.f32 %v2047, %v2247
        %v2249 = vpop.f32.mrb[0].mxu0
        %v2250 = vpop.f32.mrb[0].mxu0
        %v2251 = vadd.f32 %v2047, %v2250
        %v2252 = vpop.f32.mrb[0].mxu0
        %2253 = vmatprep.mubr.bf16.mxu0 0
        %2254 = vmatmul.mubr.bf16.gmra.mrb[0].mxu0 %v2068
        %v2255 = vpop.f32.mrb[0].mxu0
        %v2256 = vadd.f32 %v2047, %v2255
        %v2257 = vpop.f32.mrb[0].mxu0
        %v2258 = vpop.f32.mrb[0].mxu0
        %v2259 = vadd.f32 %v2047, %v2258
        %v2260 = vpop.f32.mrb[0].mxu0
        %2261 = vmatprep.mubr.bf16.mxu0 0
        %2262 = vmatmul.mubr.bf16.gmra.mrb[0].mxu0 %v2071
        %v2263 = vpop.f32.mrb[0].mxu0
        %v2264 = vadd.f32 %v2047, %v2263
        %v2265 = vpop.f32.mrb[0].mxu0
        %v2266 = vpop.f32.mrb[0].mxu0
        %v2267 = vadd.f32 %v2047, %v2266
        %v2268 = vpop.f32.mrb[0].mxu0
        %2269 = vmatprep.mubr.bf16.mxu0 0
        %2270 = vmatmul.mubr.bf16.gmra.mrb[0].mxu0 %v2074
        %v2271 = vpop.f32.mrb[0].mxu0
        %v2272 = vadd.f32 %v2047, %v2271
        %v2273 = vpop.f32.mrb[0].mxu0
        %v2274 = vpop.f32.mrb[0].mxu0
        %v2275 = vadd.f32 %v2047, %v2274
        %v2276 = vpop.f32.mrb[0].mxu0
        %2277 = vmatprep.mubr.bf16.mxu0 0
        %2278 = vmatmul.mubr.bf16.gmra.mrb[0].mxu0 %v2077
        %v2279 = vpop.f32.mrb[0].mxu0
        %v2280 = vadd.f32 %v2047, %v2279
        %v2281 = vpop.f32.mrb[0].mxu0
        %v2282 = vpop.f32.mrb[0].mxu0
        %v2283 = vadd.f32 %v2047, %v2282
        %v2284 = vpop.f32.mrb[0].mxu0
        %2285 = vmatprep.mubr.bf16.mxu0 0
        %2286 = vmatmul.mubr.bf16.gmra.mrb[0].mxu0 %v2080
        %v2287 = vpop.f32.mrb[0].mxu0
        %v2288 = vadd.f32 %v2047, %v2287
        %v2289 = vpop.f32.mrb[0].mxu0
        %v2290 = vpop.f32.mrb[0].mxu0
        %v2291 = vadd.f32 %v2047, %v2290
        %v2292 = vpop.f32.mrb[0].mxu0
        %2293 = vmatprep.mubr.bf16.mxu0 0
        %2294 = vmatmul.mubr.bf16.gmra.mrb[0].mxu0 %v2083
        %v2295 = vpop.f32.mrb[0].mxu0
        %v2296 = vadd.f32 %v2047, %v2295
        %v2297 = vpop.f32.mrb[0].mxu0
        %v2298 = vpop.f32.mrb[0].mxu0
        %v2299 = vadd.f32 %v2047, %v2298
        %v2300 = vpop.f32.mrb[0].mxu0
        %2301 = vmatprep.mubr.bf16.mxu0 0
        %2302 = vmatmul.mubr.bf16.gmra.mrb[0].mxu0 %v2086
        %v2303 = vpop.f32.mrb[0].mxu0
        %v2304 = vadd.f32 %v2047, %v2303
        %v2305 = vpop.f32.mrb[0].mxu0
        %v2306 = vpop.f32.mrb[0].mxu0
        %v2307 = vadd.f32 %v2047, %v2306
        %v2308 = vpop.f32.mrb[0].mxu0
        %2309 = vmatprep.mubr.bf16.mxu0 0
        %2310 = vmatmul.mubr.bf16.gmra.mrb[0].mxu0 %v2089
        %v2311 = vpop.f32.mrb[0].mxu0
        %v2312 = vadd.f32 %v2047, %v2311
        %v2313 = vpop.f32.mrb[0].mxu0
        %v2314 = vpop.f32.mrb[0].mxu0
        %v2315 = vadd.f32 %v2047, %v2314
        %v2316 = vpop.f32.mrb[0].mxu0
        %2317 = vmatprep.mubr.bf16.mxu0 0
        %2318 = vmatmul.mubr.bf16.gmra.mrb[0].mxu0 %v2092
        %v2319 = vpop.f32.mrb[0].mxu0
        %v2320 = vadd.f32 %v2047, %v2319
        %v2321 = vpop.f32.mrb[0].mxu0
        %v2322 = vpop.f32.mrb[0].mxu0
        %v2323 = vadd.f32 %v2047, %v2322
        %v2324 = vpop.f32.mrb[0].mxu0
        %2325 = vmatprep.mubr.bf16.mxu0 0
        %2326 = vmatmul.mubr.bf16.gmra.mrb[0].mxu0 %v2095
        %v2327 = vpop.f32.mrb[0].mxu0
        %v2328 = vadd.f32 %v2047, %v2327
        %v2329 = vpop.f32.mrb[0].mxu0
        %v2330 = vpop.f32.mrb[0].mxu0
        %v2331 = vadd.f32 %v2047, %v2330
        %v2332 = vpop.f32.mrb[0].mxu0
        %2333 = vmatprep.mubr.bf16.mxu0 0
        %2334 = vmatmul.mubr.bf16.gmra.mrb[0].mxu0 %v2098
        %v2335 = vpop.f32.mrb[0].mxu0
        %v2336 = vadd.f32 %v2047, %v2335
        %v2337 = vpop.f32.mrb[0].mxu0
        %v2338 = vpop.f32.mrb[0].mxu0
        %v2339 = vadd.f32 %v2047, %v2338
        %v2340 = vpop.f32.mrb[0].mxu0
        %2341 = vmatprep.mubr.bf16.mxu0 0
        %2342 = vmatmul.mubr.bf16.gmra.mrb[0].mxu0 %v2101
        %v2343 = vpop.f32.mrb[0].mxu0
        %v2344 = vadd.f32 %v2047, %v2343
        %v2345 = vpop.f32.mrb[0].mxu0
        %v2346 = vpop.f32.mrb[0].mxu0
        %v2347 = vadd.f32 %v2047, %v2346
        %v2348 = vpop.f32.mrb[0].mxu0
        %2349 = vmatprep.mubr.bf16.mxu0 0
        %2350 = vmatmul.mubr.bf16.gmra.mrb[0].mxu0 %v2104
        %v2351 = vpop.f32.mrb[0].mxu0
        %v2352 = vadd.f32 %v2047, %v2351
        %v2353 = vpop.f32.mrb[0].mxu0
        %v2354 = vpop.f32.mrb[0].mxu0
        %v2355 = vadd.f32 %v2047, %v2354
        %v2356 = vpop.f32.mrb[0].mxu0
        %2357 = vmatprep.mubr.bf16.mxu0 0
        %2358 = vmatmul.mubr.bf16.gmra.mrb[0].mxu0 %v2107
        %v2359 = vpop.f32.mrb[0].mxu0
        %v2360 = vadd.f32 %v2047, %v2359
        %v2361 = vpop.f32.mrb[0].mxu0
        %v2362 = vpop.f32.mrb[0].mxu0
        %v2363 = vadd.f32 %v2047, %v2362
        %v2364 = vpop.f32.mrb[0].mxu0
        %2365 = vmatprep.mubr.bf16.mxu0 0
        %2366 = vmatmul.mubr.bf16.gmra.mrb[0].mxu0 %v2110
        %v2367 = vpop.f32.mrb[0].mxu0
        %v2368 = vadd.f32 %v2047, %v2367
        %v2369 = vpop.f32.mrb[0].mxu0
        %v2370 = vpop.f32.mrb[0].mxu0
        %v2371 = vadd.f32 %v2047, %v2370
        %v2372 = vpop.f32.mrb[0].mxu0
        %2373 = vmatprep.mubr.bf16.mxu0 0
        %2374 = vmatmul.mubr.bf16.gmra.mrb[0].mxu0 %v2113
        %v2375 = vpop.f32.mrb[0].mxu0
        %v2376 = vadd.f32 %v2047, %v2375
        %v2377 = vpop.f32.mrb[0].mxu0
        %v2378 = vpop.f32.mrb[0].mxu0
        %v2379 = vadd.f32 %v2047, %v2378
        %v2380 = vpop.f32.mrb[0].mxu0
        %2381 = vmatprep.mubr.bf16.mxu0 0
        %2382 = vmatmul.mubr.bf16.gmra.mrb[0].mxu0 %v2116
        %v2383 = vpop.f32.mrb[0].mxu0
        %v2384 = vadd.f32 %v2047, %v2383
        %v2385 = vpop.f32.mrb[0].mxu0
        %v2386 = vpop.f32.mrb[0].mxu0
        %v2387 = vadd.f32 %v2047, %v2386
        %v2388 = vpop.f32.mrb[0].mxu0
        %2389 = vmatprep.mubr.bf16.mxu0 0
        %2390 = vmatmul.mubr.bf16.gmra.mrb[0].mxu0 %v2119
        %v2391 = vpop.f32.mrb[0].mxu0
        %v2392 = vadd.f32 %v2047, %v2391
        %v2393 = vpop.f32.mrb[0].mxu0
        %v2394 = vpop.f32.mrb[0].mxu0
        %v2395 = vadd.f32 %v2047, %v2394
        %v2396 = vpop.f32.mrb[0].mxu0
        %2397 = vmatprep.mubr.bf16.mxu0 0
        %2398 = vmatmul.mubr.bf16.gmra.mrb[0].mxu0 %v2122
        %v2399 = vpop.f32.mrb[0].mxu0
        %v2400 = vadd.f32 %v2047, %v2399
        %v2401 = vpop.f32.mrb[0].mxu0
        %v2402 = vpop.f32.mrb[0].mxu0
        %v2403 = vadd.f32 %v2047, %v2402
        %v2404 = vpop.f32.mrb[0].mxu0
        %2405 = vmatprep.mubr.bf16.mxu0 0
        %2406 = vmatmul.mubr.bf16.gmra.mrb[0].mxu0 %v2125
        %v2407 = vpop.f32.mrb[0].mxu0
        %v2408 = vadd.f32 %v2047, %v2407
        %v2409 = vpop.f32.mrb[0].mxu0
        %v2410 = vpop.f32.mrb[0].mxu0
        %v2411 = vadd.f32 %v2047, %v2410
        %v2412 = vpop.f32.mrb[0].mxu0
        %2413 = vmatprep.mubr.bf16.mxu0 0
        %2414 = vmatmul.mubr.bf16.gmra.mrb[0].mxu0 %v2128
        %v2415 = vpop.f32.mrb[0].mxu0
        %v2416 = vadd.f32 %v2047, %v2415
        %v2417 = vpop.f32.mrb[0].mxu0
        %v2418 = vpop.f32.mrb[0].mxu0
        %v2419 = vadd.f32 %v2047, %v2418
        %v2420 = vpop.f32.mrb[0].mxu0
        %2421 = vmatprep.mubr.bf16.mxu0 0
        %2422 = vmatmul.mubr.bf16.gmra.mrb[0].mxu0 %v2131
        %v2423 = vpop.f32.mrb[0].mxu0
        %v2424 = vadd.f32 %v2047, %v2423
        %v2425 = vpop.f32.mrb[0].mxu0
        %v2426 = vpop.f32.mrb[0].mxu0
        %v2427 = vadd.f32 %v2047, %v2426
        %v2428 = vpop.f32.mrb[0].mxu0
        %2429 = vmatprep.mubr.bf16.mxu0 0
        %2430 = vmatmul.mubr.bf16.gmra.mrb[0].mxu0 %v2134
        %v2431 = vpop.f32.mrb[0].mxu0
        %v2432 = vadd.f32 %v2047, %v2431
        %v2433 = vpop.f32.mrb[0].mxu0
        %v2434 = vpop.f32.mrb[0].mxu0
        %v2435 = vadd.f32 %v2047, %v2434
        %v2436 = vpop.f32.mrb[0].mxu0
        %2437 = vmatprep.mubr.bf16.mxu0 0
        %2438 = vmatmul.mubr.bf16.gmra.mrb[0].mxu0 %v2137
        %v2439 = vpop.f32.mrb[0].mxu0
        %v2440 = vadd.f32 %v2047, %v2439
        %v2441 = vpop.f32.mrb[0].mxu0
        %v2442 = vpop.f32.mrb[0].mxu0
        %v2443 = vadd.f32 %v2047, %v2442
        %v2444 = vpop.f32.mrb[0].mxu0
        %2445 = vmatprep.mubr.bf16.mxu0 0
        %2446 = vmatmul.mubr.bf16.gmra.mrb[0].mxu0 %v2140
        %v2447 = vpop.f32.mrb[0].mxu0
        %v2448 = vadd.f32 %v2047, %v2447
        %v2449 = vpop.f32.mrb[0].mxu0
        %v2450 = vpop.f32.mrb[0].mxu0
        %v2451 = vadd.f32 %v2047, %v2450
        %v2452 = vpop.f32.mrb[0].mxu0
        %2453 = vmatprep.mubr.bf16.mxu0 0
        %2454 = vmatmul.mubr.bf16.gmra.mrb[0].mxu0 %v2143
        %v2455 = vpop.f32.mrb[0].mxu0
        %v2456 = vadd.f32 %v2047, %v2455
        %v2457 = vpop.f32.mrb[0].mxu0
        %v2458 = vpop.f32.mrb[0].mxu0
        %v2459 = vadd.f32 %v2047, %v2458
        %v2460 = vpop.f32.mrb[0].mxu0
        %2461 = vmatprep.mubr.bf16.mxu0 0
        %2462 = vmatmul.mubr.bf16.gmra.mrb[0].mxu0 %v2146
        %v2463 = vpop.f32.mrb[0].mxu0
        %v2464 = vadd.f32 %v2047, %v2463
        %v2465 = vpop.f32.mrb[0].mxu0
        %v2466 = vpop.f32.mrb[0].mxu0
        %v2467 = vadd.f32 %v2047, %v2466
        %v2468 = vpop.f32.mrb[0].mxu0
        %2469 = vmatprep.mubr.bf16.mxu0 0
        %2470 = vmatmul.mubr.bf16.gmra.mrb[0].mxu0 %v2149
        %v2471 = vpop.f32.mrb[0].mxu0
        %v2472 = vadd.f32 %v2047, %v2471
        %v2473 = vpop.f32.mrb[0].mxu0
        %v2474 = vpop.f32.mrb[0].mxu0
        %v2475 = vadd.f32 %v2047, %v2474
        %v2476 = vpop.f32.mrb[0].mxu0
        %2477 = vmatprep.mubr.bf16.mxu0 0
        %2478 = vmatmul.mubr.bf16.gmra.mrb[0].mxu0 %v2152
        %v2479 = vpop.f32.mrb[0].mxu0
        %v2480 = vadd.f32 %v2047, %v2479
        %v2481 = vpop.f32.mrb[0].mxu0
        %v2482 = vpop.f32.mrb[0].mxu0
        %v2483 = vadd.f32 %v2047, %v2482
        %v2484 = vpop.f32.mrb[0].mxu0
        %2485 = vmatprep.mubr.bf16.mxu0 0
        %2486 = vmatmul.mubr.bf16.gmra.mrb[0].mxu0 %v2155
        %v2487 = vpop.f32.mrb[0].mxu0
        %v2488 = vadd.f32 %v2047, %v2487
        %v2489 = vpop.f32.mrb[0].mxu0
        %v2490 = vpop.f32.mrb[0].mxu0
        %v2491 = vadd.f32 %v2047, %v2490
        %v2492 = vpop.f32.mrb[0].mxu0
        %2493 = vmatprep.mubr.bf16.mxu0 0
        %2494 = vmatmul.mubr.bf16.gmra.mrb[0].mxu0 %v2158
        %v2495 = vpop.f32.mrb[0].mxu0
        %v2496 = vadd.f32 %v2047, %v2495
        %v2497 = vpop.f32.mrb[0].mxu0
        %v2498 = vpop.f32.mrb[0].mxu0
        %v2499 = vadd.f32 %v2047, %v2498
        %v2500 = vpop.f32.mrb[0].mxu0
        %2501 = vmatprep.mubr.bf16.mxu0 0
        %2502 = vmatmul.mubr.bf16.gmra.mrb[0].mxu0 %v2161
        %v2503 = vpop.f32.mrb[0].mxu0
        %v2504 = vadd.f32 %v2047, %v2503
        %v2505 = vpop.f32.mrb[0].mxu0
        %v2506 = vpop.f32.mrb[0].mxu0
        %v2507 = vadd.f32 %v2047, %v2506
        %v2508 = vpop.f32.mrb[0].mxu0
        %2509 = vmatprep.mubr.bf16.mxu0 0
        %2510 = vmatmul.mubr.bf16.gmra.mrb[0].mxu0 %v2164
        %v2511 = vpop.f32.mrb[0].mxu0
        %v2512 = vadd.f32 %v2047, %v2511
        %v2513 = vpop.f32.mrb[0].mxu0
        %v2514 = vpop.f32.mrb[0].mxu0
        %v2515 = vadd.f32 %v2047, %v2514
        %v2516 = vpop.f32.mrb[0].mxu0
        %2517 = vmatprep.mubr.bf16.mxu0 0
        %2518 = vmatmul.mubr.bf16.gmra.mrb[0].mxu0 %v2167
        %v2519 = vpop.f32.mrb[0].mxu0
        %v2520 = vadd.f32 %v2047, %v2519
        %v2521 = vpop.f32.mrb[0].mxu0
        %v2522 = vpop.f32.mrb[0].mxu0
        %v2523 = vadd.f32 %v2047, %v2522
        %v2524 = vpop.f32.mrb[0].mxu0
        %2525 = vmatprep.mubr.bf16.mxu0 0
        %2526 = vmatmul.mubr.bf16.gmra.mrb[0].mxu0 %v2170
        %v2527 = vpop.f32.mrb[0].mxu0
        %v2528 = vadd.f32 %v2047, %v2527
        %v2529 = vpop.f32.mrb[0].mxu0
        %v2530 = vpop.f32.mrb[0].mxu0
        %v2531 = vadd.f32 %v2047, %v2530
        %v2532 = vpop.f32.mrb[0].mxu0
        %2533 = vmatprep.mubr.bf16.mxu0 0
        %2534 = vmatmul.mubr.bf16.gmra.mrb[0].mxu0 %v2173
        %v2535 = vpop.f32.mrb[0].mxu0
        %v2536 = vadd.f32 %v2047, %v2535
        %v2537 = vpop.f32.mrb[0].mxu0
        %v2538 = vpop.f32.mrb[0].mxu0
        %v2539 = vadd.f32 %v2047, %v2538
        %v2540 = vpop.f32.mrb[0].mxu0
        %2541 = vmatprep.mubr.bf16.mxu0 0
        %2542 = vmatmul.mubr.bf16.gmra.mrb[0].mxu0 %v2176
        %v2543 = vpop.f32.mrb[0].mxu0
        %v2544 = vadd.f32 %v2047, %v2543
        %v2545 = vpop.f32.mrb[0].mxu0
        %v2546 = vpop.f32.mrb[0].mxu0
        %v2547 = vadd.f32 %v2047, %v2546
        %v2548 = vpop.f32.mrb[0].mxu0
        %2549 = vmatprep.mubr.bf16.mxu0 0
        %2550 = vmatmul.mubr.bf16.gmra.mrb[0].mxu0 %v2179
        %v2551 = vpop.f32.mrb[0].mxu0
        %v2552 = vadd.f32 %v2047, %v2551
        %v2553 = vpop.f32.mrb[0].mxu0
        %v2554 = vpop.f32.mrb[0].mxu0
        %v2555 = vadd.f32 %v2047, %v2554
        %v2556 = vpop.f32.mrb[0].mxu0
        %2557 = vmatprep.mubr.bf16.mxu0 0
        %2558 = vmatmul.mubr.bf16.gmra.mrb[0].mxu0 %v2182
        %v2559 = vpop.f32.mrb[0].mxu0
        %v2560 = vadd.f32 %v2047, %v2559
        %v2561 = vpop.f32.mrb[0].mxu0
        %v2562 = vpop.f32.mrb[0].mxu0
        %v2563 = vadd.f32 %v2047, %v2562
        %v2564 = vpop.f32.mrb[0].mxu0
        %2565 = vmatprep.mubr.bf16.mxu0 0
        %2566 = vmatmul.mubr.bf16.gmra.mrb[0].mxu0 %v2185
        %v2567 = vpop.f32.mrb[0].mxu0
        %v2568 = vadd.f32 %v2047, %v2567
        %v2569 = vpop.f32.mrb[0].mxu0
        %v2570 = vpop.f32.mrb[0].mxu0
        %v2571 = vadd.f32 %v2047, %v2570
        %v2572 = vpop.f32.mrb[0].mxu0
        %2573 = vmatprep.mubr.bf16.mxu0 0
        %2574 = vmatmul.mubr.bf16.gmra.mrb[0].mxu0 %v2188
        %v2575 = vpop.f32.mrb[0].mxu0
        %v2576 = vadd.f32 %v2047, %v2575
        %v2577 = vpop.f32.mrb[0].mxu0
        %v2578 = vpop.f32.mrb[0].mxu0
        %v2579 = vadd.f32 %v2047, %v2578
        %v2580 = vpop.f32.mrb[0].mxu0
        %2581 = vmatprep.mubr.bf16.mxu0 0
        %2582 = vmatmul.mubr.bf16.gmra.mrb[0].mxu0 %v2191
        %v2583 = vpop.f32.mrb[0].mxu0
        %v2584 = vadd.f32 %v2047, %v2583
        %v2585 = vpop.f32.mrb[0].mxu0
        %v2586 = vpop.f32.mrb[0].mxu0
        %v2587 = vadd.f32 %v2047, %v2586
        %v2588 = vpop.f32.mrb[0].mxu0
        %2589 = vmatprep.mubr.bf16.mxu0 0
        %2590 = vmatmul.mubr.bf16.gmra.mrb[0].mxu0 %v2194
        %v2591 = vpop.f32.mrb[0].mxu0
        %v2592 = vadd.f32 %v2047, %v2591
        %v2593 = vpop.f32.mrb[0].mxu0
        %v2594 = vpop.f32.mrb[0].mxu0
        %v2595 = vadd.f32 %v2047, %v2594
        %v2596 = vpop.f32.mrb[0].mxu0
        %2597 = vmatprep.mubr.bf16.mxu0 0
        %2598 = vmatmul.mubr.bf16.gmra.mrb[0].mxu0 %v2197
        %v2599 = vpop.f32.mrb[0].mxu0
        %v2600 = vadd.f32 %v2047, %v2599
        %v2601 = vpop.f32.mrb[0].mxu0
        %v2602 = vpop.f32.mrb[0].mxu0
        %v2603 = vadd.f32 %v2047, %v2602
        %v2604 = vpop.f32.mrb[0].mxu0
        %2605 = vmatprep.mubr.bf16.mxu0 0
        %2606 = vmatmul.mubr.bf16.gmra.mrb[0].mxu0 %v2200
        %v2607 = vpop.f32.mrb[0].mxu0
        %v2608 = vadd.f32 %v2047, %v2607
        %v2609 = vpop.f32.mrb[0].mxu0
        %v2610 = vpop.f32.mrb[0].mxu0
        %v2611 = vadd.f32 %v2047, %v2610
        %v2612 = vpop.f32.mrb[0].mxu0
        %2613 = vmatprep.mubr.bf16.mxu0 0
        %2614 = vmatmul.mubr.bf16.gmra.mrb[0].mxu0 %v2203
        %v2615 = vpop.f32.mrb[0].mxu0
        %v2616 = vadd.f32 %v2047, %v2615
        %v2617 = vpop.f32.mrb[0].mxu0
        %v2618 = vpop.f32.mrb[0].mxu0
        %v2619 = vadd.f32 %v2047, %v2618
        %v2620 = vpop.f32.mrb[0].mxu0
        %2621 = vdwg.mxu0
        %v2622 = vmax.f32 %v2240, 0.0
        %v2623 = vmax.f32 %v2243, 0.0
        %v2624 = vmax.f32 %v2248, 0.0
        %v2625 = vmax.f32 %v2251, 0.0
        %v2626 = vmax.f32 %v2256, 0.0
        %v2627 = vmax.f32 %v2259, 0.0
        %v2628 = vmax.f32 %v2264, 0.0
        %v2629 = vmax.f32 %v2267, 0.0
        %v2630 = vmax.f32 %v2272, 0.0
        %v2631 = vmax.f32 %v2275, 0.0
        %v2632 = vmax.f32 %v2280, 0.0
        %v2633 = vmax.f32 %v2283, 0.0
        %v2634 = vmax.f32 %v2288, 0.0
        %v2635 = vmax.f32 %v2291, 0.0
        %v2636 = vmax.f32 %v2296, 0.0
        %v2637 = vmax.f32 %v2299, 0.0
        %v2638 = vmax.f32 %v2304, 0.0
        %v2639 = vmax.f32 %v2307, 0.0
        %v2640 = vmax.f32 %v2312, 0.0
        %v2641 = vmax.f32 %v2315, 0.0
        %v2642 = vmax.f32 %v2320, 0.0
        %v2643 = vmax.f32 %v2323, 0.0
        %v2644 = vmax.f32 %v2328, 0.0
        %v2645 = vmax.f32 %v2331, 0.0
        %v2646 = vmax.f32 %v2336, 0.0
        %v2647 = vmax.f32 %v2339, 0.0
        %v2648 = vmax.f32 %v2344, 0.0
        %v2649 = vmax.f32 %v2347, 0.0
        %v2650 = vmax.f32 %v2352, 0.0
        %v2651 = vmax.f32 %v2355, 0.0
        %v2652 = vmax.f32 %v2360, 0.0
        %v2653 = vmax.f32 %v2363, 0.0
        %v2654 = vmax.f32 %v2368, 0.0
        %v2655 = vmax.f32 %v2371, 0.0
        %v2656 = vmax.f32 %v2376, 0.0
        %v2657 = vmax.f32 %v2379, 0.0
        %v2658 = vmax.f32 %v2384, 0.0
        %v2659 = vmax.f32 %v2387, 0.0
        %v2660 = vmax.f32 %v2392, 0.0
        %v2661 = vmax.f32 %v2395, 0.0
        %v2662 = vmax.f32 %v2400, 0.0
        %v2663 = vmax.f32 %v2403, 0.0
        %v2664 = vmax.f32 %v2408, 0.0
        %v2665 = vmax.f32 %v2411, 0.0
        %v2666 = vmax.f32 %v2416, 0.0
        %v2667 = vmax.f32 %v2419, 0.0
        %v2668 = vmax.f32 %v2424, 0.0
        %v2669 = vmax.f32 %v2427, 0.0
        %v2670 = vmax.f32 %v2432, 0.0
        %v2671 = vmax.f32 %v2435, 0.0
        %v2672 = vmax.f32 %v2440, 0.0
        %v2673 = vmax.f32 %v2443, 0.0
        %v2674 = vmax.f32 %v2448, 0.0
        %v2675 = vmax.f32 %v2451, 0.0
        %v2676 = vmax.f32 %v2456, 0.0
        %v2677 = vmax.f32 %v2459, 0.0
        %v2678 = vmax.f32 %v2464, 0.0
        %v2679 = vmax.f32 %v2467, 0.0
        %v2680 = vmax.f32 %v2472, 0.0
        %v2681 = vmax.f32 %v2475, 0.0
        %v2682 = vmax.f32 %v2480, 0.0
        %v2683 = vmax.f32 %v2483, 0.0
        %v2684 = vmax.f32 %v2488, 0.0
        %v2685 = vmax.f32 %v2491, 0.0
        %v2686 = vmax.f32 %v2496, 0.0
        %v2687 = vmax.f32 %v2499, 0.0
        %v2688 = vmax.f32 %v2504, 0.0
        %v2689 = vmax.f32 %v2507, 0.0
        %v2690 = vmax.f32 %v2512, 0.0
        %v2691 = vmax.f32 %v2515, 0.0
        %v2692 = vmax.f32 %v2520, 0.0
        %v2693 = vmax.f32 %v2523, 0.0
        %v2694 = vmax.f32 %v2528, 0.0
        %v2695 = vmax.f32 %v2531, 0.0
        %v2696 = vmax.f32 %v2536, 0.0
        %v2697 = vmax.f32 %v2539, 0.0
        %v2698 = vmax.f32 %v2544, 0.0
        %v2699 = vmax.f32 %v2547, 0.0
        %v2700 = vmax.f32 %v2552, 0.0
        %v2701 = vmax.f32 %v2555, 0.0
        %v2702 = vmax.f32 %v2560, 0.0
        %v2703 = vmax.f32 %v2563, 0.0
        %v2704 = vmax.f32 %v2568, 0.0
        %v2705 = vmax.f32 %v2571, 0.0
        %v2706 = vmax.f32 %v2576, 0.0
        %v2707 = vmax.f32 %v2579, 0.0
        %v2708 = vmax.f32 %v2584, 0.0
        %v2709 = vmax.f32 %v2587, 0.0
        %v2710 = vmax.f32 %v2592, 0.0
        %v2711 = vmax.f32 %v2595, 0.0
        %v2712 = vmax.f32 %v2600, 0.0
        %v2713 = vmax.f32 %v2603, 0.0
        %v2714 = vmax.f32 %v2608, 0.0
        %v2715 = vmax.f32 %v2611, 0.0
        %v2716 = vmax.f32 %v2616, 0.0
        %v2717 = vmax.f32 %v2619, 0.0
        %v2718 = vpack.c.bf16 %v2623, %v2622
        %v2719 = vpack.c.bf16 %v2625, %v2624
        %v2720 = vpack.c.bf16 %v2627, %v2626
        %v2721 = vpack.c.bf16 %v2629, %v2628
        %v2722 = vpack.c.bf16 %v2631, %v2630
        %v2723 = vpack.c.bf16 %v2633, %v2632
        %v2724 = vpack.c.bf16 %v2635, %v2634
        %v2725 = vpack.c.bf16 %v2637, %v2636
        %v2726 = vpack.c.bf16 %v2639, %v2638
        %v2727 = vpack.c.bf16 %v2641, %v2640
        %v2728 = vpack.c.bf16 %v2643, %v2642
        %v2729 = vpack.c.bf16 %v2645, %v2644
        %v2730 = vpack.c.bf16 %v2647, %v2646
        %v2731 = vpack.c.bf16 %v2649, %v2648
        %v2732 = vpack.c.bf16 %v2651, %v2650
        %v2733 = vpack.c.bf16 %v2653, %v2652
        %v2734 = vpack.c.bf16 %v2655, %v2654
        %v2735 = vpack.c.bf16 %v2657, %v2656
        %v2736 = vpack.c.bf16 %v2659, %v2658
        %v2737 = vpack.c.bf16 %v2661, %v2660
        %v2738 = vpack.c.bf16 %v2663, %v2662
        %v2739 = vpack.c.bf16 %v2665, %v2664
        %v2740 = vpack.c.bf16 %v2667, %v2666
        %v2741 = vpack.c.bf16 %v2669, %v2668
        %v2742 = vpack.c.bf16 %v2671, %v2670
        %v2743 = vpack.c.bf16 %v2673, %v2672
        %v2744 = vpack.c.bf16 %v2675, %v2674
        %v2745 = vpack.c.bf16 %v2677, %v2676
        %v2746 = vpack.c.bf16 %v2679, %v2678
        %v2747 = vpack.c.bf16 %v2681, %v2680
        %v2748 = vpack.c.bf16 %v2683, %v2682
        %v2749 = vpack.c.bf16 %v2685, %v2684
        %v2750 = vpack.c.bf16 %v2687, %v2686
        %v2751 = vpack.c.bf16 %v2689, %v2688
        %v2752 = vpack.c.bf16 %v2691, %v2690
        %v2753 = vpack.c.bf16 %v2693, %v2692
        %v2754 = vpack.c.bf16 %v2695, %v2694
        %v2755 = vpack.c.bf16 %v2697, %v2696
        %v2756 = vpack.c.bf16 %v2699, %v2698
        %v2757 = vpack.c.bf16 %v2701, %v2700
        %v2758 = vpack.c.bf16 %v2703, %v2702
        %v2759 = vpack.c.bf16 %v2705, %v2704
        %v2760 = vpack.c.bf16 %v2707, %v2706
        %v2761 = vpack.c.bf16 %v2709, %v2708
        %v2762 = vpack.c.bf16 %v2711, %v2710
        %v2763 = vpack.c.bf16 %v2713, %v2712
        %v2764 = vpack.c.bf16 %v2715, %v2714
        %v2765 = vpack.c.bf16 %v2717, %v2716
        %v2766 = vld [vmem:[%s4 + $0x30] sm:$0xf]
        %v2767 = vld [vmem:[%s4 + $0x34] sm:$0xf]
        %v2768 = vld [vmem:[%s4 + $0x38] sm:$0xf]
        %v2769 = vld [vmem:[%s4 + $0x3c] sm:$0xf]
        %v2770 = vld [vmem:[%s5 + $0x10] sm:$0x1]
        %v2771 = vlaneseq
        %v2772 = vshrl.u32 %v2771, 7
        %v2773 = vsub.s32 0, %v2772
        %v2774 = vrot.slane %v2770, %v2773
        %v2779 = vunpack.c.l.b16 %v2766
        %v2780 = vunpack.c.l.b16 %v2767
        %v2781 = vunpack.c.l.b16 %v2768
        %v2782 = vunpack.c.l.b16 %v2769
        %v2783 = vpack.c.b16 %v2780, %v2779
        %v2784 = vpack.c.b16 %v2782, %v2781
        %v2788 = vsel %vm2060, %v2718, 0
        %v2791 = vsel %vm2060, %v2719, 0
        %v2794 = vsel %vm2060, %v2720, 0
        %v2797 = vsel %vm2060, %v2721, 0
        %v2800 = vsel %vm2060, %v2722, 0
        %v2803 = vsel %vm2060, %v2723, 0
        %v2806 = vsel %vm2060, %v2724, 0
        %v2809 = vsel %vm2060, %v2725, 0
        %v2812 = vsel %vm2060, %v2726, 0
        %v2815 = vsel %vm2060, %v2727, 0
        %v2818 = vsel %vm2060, %v2728, 0
        %v2821 = vsel %vm2060, %v2729, 0
        %v2824 = vsel %vm2060, %v2730, 0
        %v2827 = vsel %vm2060, %v2731, 0
        %v2830 = vsel %vm2060, %v2732, 0
        %v2833 = vsel %vm2060, %v2733, 0
        %v2836 = vsel %vm2060, %v2734, 0
        %v2839 = vsel %vm2060, %v2735, 0
        %v2842 = vsel %vm2060, %v2736, 0
        %v2845 = vsel %vm2060, %v2737, 0
        %v2848 = vsel %vm2060, %v2738, 0
        %v2851 = vsel %vm2060, %v2739, 0
        %v2854 = vsel %vm2060, %v2740, 0
        %v2857 = vsel %vm2060, %v2741, 0
        %v2860 = vsel %vm2060, %v2742, 0
        %v2863 = vsel %vm2060, %v2743, 0
        %v2866 = vsel %vm2060, %v2744, 0
        %v2869 = vsel %vm2060, %v2745, 0
        %v2872 = vsel %vm2060, %v2746, 0
        %v2875 = vsel %vm2060, %v2747, 0
        %v2878 = vsel %vm2060, %v2748, 0
        %v2881 = vsel %vm2060, %v2749, 0
        %v2884 = vsel %vm2060, %v2750, 0
        %v2887 = vsel %vm2060, %v2751, 0
        %v2890 = vsel %vm2060, %v2752, 0
        %v2893 = vsel %vm2060, %v2753, 0
        %v2896 = vsel %vm2060, %v2754, 0
        %v2899 = vsel %vm2060, %v2755, 0
        %v2902 = vsel %vm2060, %v2756, 0
        %v2905 = vsel %vm2060, %v2757, 0
        %v2908 = vsel %vm2060, %v2758, 0
        %v2911 = vsel %vm2060, %v2759, 0
        %v2914 = vsel %vm2060, %v2760, 0
        %v2917 = vsel %vm2060, %v2761, 0
        %v2920 = vsel %vm2060, %v2762, 0
        %v2923 = vsel %vm2060, %v2763, 0
        %v2926 = vsel %vm2060, %v2764, 0
        %v2929 = vsel %vm2060, %v2765, 0
        %2931 = vmatprep.subr.bf16.mxu0 0
        %2932 = vmatpush1.bf16.msra.mxu0 %v2783
        %2933 = vmatprep.subr.bf16.mxu0 0
        %2934 = vmatpush1.bf16.msra.mxu0 %v2784
        %2935 = vmatprep.subr.bf16.mxu0 0
        %2936 = vmatpush1.bf16.msra.mxu0 0
        %2937 = vmatprep.subr.bf16.mxu0 0
        %2938 = vmatpush1.bf16.msra.mxu0 0
        %2939 = vmatprep.subr.bf16.mxu0 0
        %2940 = vmatpush1.bf16.msra.mxu0 0
        %2941 = vmatprep.subr.bf16.mxu0 0
        %2942 = vmatpush1.bf16.msra.mxu0 0
        %2943 = vmatprep.subr.bf16.mxu0 0
        %2944 = vmatpush1.bf16.msra.mxu0 0
        %2945 = vmatprep.subr.bf16.mxu0 0
        %2946 = vmatpush1.bf16.msra.mxu0 0
        %2947 = vmatprep.subr.bf16.mxu0 0
        %2948 = vmatpush1.bf16.msra.mxu0 0
        %2949 = vmatprep.subr.bf16.mxu0 0
        %2950 = vmatpush1.bf16.msra.mxu0 0
        %2951 = vmatprep.subr.bf16.mxu0 0
        %2952 = vmatpush1.bf16.msra.mxu0 0
        %2953 = vmatprep.subr.bf16.mxu0 0
        %2954 = vmatpush1.bf16.msra.mxu0 0
        %2955 = vmatprep.subr.bf16.mxu0 0
        %2956 = vmatpush1.bf16.msra.mxu0 0
        %2957 = vmatprep.subr.bf16.mxu0 0
        %2958 = vmatpush1.bf16.msra.mxu0 0
        %2959 = vmatprep.subr.bf16.mxu0 0
        %2960 = vmatpush1.bf16.msra.mxu0 0
        %2961 = vmatprep.subr.bf16.mxu0 0
        %2962 = vmatpush1.bf16.msra.mxu0 0
        %2963 = vmatprep.mubr.bf16.mxu0 0
        %2964 = vmatmul.mubr.bf16.gmra.mrb[0].mxu0 %v2788
        %v2965 = vpop.f32.mrb[0].mxu0
        %v2966 = vadd.f32 %v2774, %v2965
        %v2967 = vpop.f32.mrb[0].mxu0
        %v2968 = vpop.f32.mrb[0].mxu0
        %v2969 = vadd.f32 %v2774, %v2968
        %v2970 = vpop.f32.mrb[0].mxu0
        %2971 = vmatprep.mubr.bf16.mxu0 0
        %2972 = vmatmul.mubr.bf16.gmra.mrb[0].mxu0 %v2791
        %v2973 = vpop.f32.mrb[0].mxu0
        %v2974 = vadd.f32 %v2774, %v2973
        %v2975 = vpop.f32.mrb[0].mxu0
        %v2976 = vpop.f32.mrb[0].mxu0
        %v2977 = vadd.f32 %v2774, %v2976
        %v2978 = vpop.f32.mrb[0].mxu0
        %2979 = vmatprep.mubr.bf16.mxu0 0
        %2980 = vmatmul.mubr.bf16.gmra.mrb[0].mxu0 %v2794
        %v2981 = vpop.f32.mrb[0].mxu0
        %v2982 = vadd.f32 %v2774, %v2981
        %v2983 = vpop.f32.mrb[0].mxu0
        %v2984 = vpop.f32.mrb[0].mxu0
        %v2985 = vadd.f32 %v2774, %v2984
        %v2986 = vpop.f32.mrb[0].mxu0
        %2987 = vmatprep.mubr.bf16.mxu0 0
        %2988 = vmatmul.mubr.bf16.gmra.mrb[0].mxu0 %v2797
        %v2989 = vpop.f32.mrb[0].mxu0
        %v2990 = vadd.f32 %v2774, %v2989
        %v2991 = vpop.f32.mrb[0].mxu0
        %v2992 = vpop.f32.mrb[0].mxu0
        %v2993 = vadd.f32 %v2774, %v2992
        %v2994 = vpop.f32.mrb[0].mxu0
        %2995 = vmatprep.mubr.bf16.mxu0 0
        %2996 = vmatmul.mubr.bf16.gmra.mrb[0].mxu0 %v2800
        %v2997 = vpop.f32.mrb[0].mxu0
        %v2998 = vadd.f32 %v2774, %v2997
        %v2999 = vpop.f32.mrb[0].mxu0
        %v3000 = vpop.f32.mrb[0].mxu0
        %v3001 = vadd.f32 %v2774, %v3000
        %v3002 = vpop.f32.mrb[0].mxu0
        %3003 = vmatprep.mubr.bf16.mxu0 0
        %3004 = vmatmul.mubr.bf16.gmra.mrb[0].mxu0 %v2803
        %v3005 = vpop.f32.mrb[0].mxu0
        %v3006 = vadd.f32 %v2774, %v3005
        %v3007 = vpop.f32.mrb[0].mxu0
        %v3008 = vpop.f32.mrb[0].mxu0
        %v3009 = vadd.f32 %v2774, %v3008
        %v3010 = vpop.f32.mrb[0].mxu0
        %3011 = vmatprep.mubr.bf16.mxu0 0
        %3012 = vmatmul.mubr.bf16.gmra.mrb[0].mxu0 %v2806
        %v3013 = vpop.f32.mrb[0].mxu0
        %v3014 = vadd.f32 %v2774, %v3013
        %v3015 = vpop.f32.mrb[0].mxu0
        %v3016 = vpop.f32.mrb[0].mxu0
        %v3017 = vadd.f32 %v2774, %v3016
        %v3018 = vpop.f32.mrb[0].mxu0
        %3019 = vmatprep.mubr.bf16.mxu0 0
        %3020 = vmatmul.mubr.bf16.gmra.mrb[0].mxu0 %v2809
        %v3021 = vpop.f32.mrb[0].mxu0
        %v3022 = vadd.f32 %v2774, %v3021
        %v3023 = vpop.f32.mrb[0].mxu0
        %v3024 = vpop.f32.mrb[0].mxu0
        %v3025 = vadd.f32 %v2774, %v3024
        %v3026 = vpop.f32.mrb[0].mxu0
        %3027 = vmatprep.mubr.bf16.mxu0 0
        %3028 = vmatmul.mubr.bf16.gmra.mrb[0].mxu0 %v2812
        %v3029 = vpop.f32.mrb[0].mxu0
        %v3030 = vadd.f32 %v2774, %v3029
        %v3031 = vpop.f32.mrb[0].mxu0
        %v3032 = vpop.f32.mrb[0].mxu0
        %v3033 = vadd.f32 %v2774, %v3032
        %v3034 = vpop.f32.mrb[0].mxu0
        %3035 = vmatprep.mubr.bf16.mxu0 0
        %3036 = vmatmul.mubr.bf16.gmra.mrb[0].mxu0 %v2815
        %v3037 = vpop.f32.mrb[0].mxu0
        %v3038 = vadd.f32 %v2774, %v3037
        %v3039 = vpop.f32.mrb[0].mxu0
        %v3040 = vpop.f32.mrb[0].mxu0
        %v3041 = vadd.f32 %v2774, %v3040
        %v3042 = vpop.f32.mrb[0].mxu0
        %3043 = vmatprep.mubr.bf16.mxu0 0
        %3044 = vmatmul.mubr.bf16.gmra.mrb[0].mxu0 %v2818
        %v3045 = vpop.f32.mrb[0].mxu0
        %v3046 = vadd.f32 %v2774, %v3045
        %v3047 = vpop.f32.mrb[0].mxu0
        %v3048 = vpop.f32.mrb[0].mxu0
        %v3049 = vadd.f32 %v2774, %v3048
        %v3050 = vpop.f32.mrb[0].mxu0
        %3051 = vmatprep.mubr.bf16.mxu0 0
        %3052 = vmatmul.mubr.bf16.gmra.mrb[0].mxu0 %v2821
        %v3053 = vpop.f32.mrb[0].mxu0
        %v3054 = vadd.f32 %v2774, %v3053
        %v3055 = vpop.f32.mrb[0].mxu0
        %v3056 = vpop.f32.mrb[0].mxu0
        %v3057 = vadd.f32 %v2774, %v3056
        %v3058 = vpop.f32.mrb[0].mxu0
        %3059 = vmatprep.mubr.bf16.mxu0 0
        %3060 = vmatmul.mubr.bf16.gmra.mrb[0].mxu0 %v2824
        %v3061 = vpop.f32.mrb[0].mxu0
        %v3062 = vadd.f32 %v2774, %v3061
        %v3063 = vpop.f32.mrb[0].mxu0
        %v3064 = vpop.f32.mrb[0].mxu0
        %v3065 = vadd.f32 %v2774, %v3064
        %v3066 = vpop.f32.mrb[0].mxu0
        %3067 = vmatprep.mubr.bf16.mxu0 0
        %3068 = vmatmul.mubr.bf16.gmra.mrb[0].mxu0 %v2827
        %v3069 = vpop.f32.mrb[0].mxu0
        %v3070 = vadd.f32 %v2774, %v3069
        %v3071 = vpop.f32.mrb[0].mxu0
        %v3072 = vpop.f32.mrb[0].mxu0
        %v3073 = vadd.f32 %v2774, %v3072
        %v3074 = vpop.f32.mrb[0].mxu0
        %3075 = vmatprep.mubr.bf16.mxu0 0
        %3076 = vmatmul.mubr.bf16.gmra.mrb[0].mxu0 %v2830
        %v3077 = vpop.f32.mrb[0].mxu0
        %v3078 = vadd.f32 %v2774, %v3077
        %v3079 = vpop.f32.mrb[0].mxu0
        %v3080 = vpop.f32.mrb[0].mxu0
        %v3081 = vadd.f32 %v2774, %v3080
        %v3082 = vpop.f32.mrb[0].mxu0
        %3083 = vmatprep.mubr.bf16.mxu0 0
        %3084 = vmatmul.mubr.bf16.gmra.mrb[0].mxu0 %v2833
        %v3085 = vpop.f32.mrb[0].mxu0
        %v3086 = vadd.f32 %v2774, %v3085
        %v3087 = vpop.f32.mrb[0].mxu0
        %v3088 = vpop.f32.mrb[0].mxu0
        %v3089 = vadd.f32 %v2774, %v3088
        %v3090 = vpop.f32.mrb[0].mxu0
        %3091 = vmatprep.mubr.bf16.mxu0 0
        %3092 = vmatmul.mubr.bf16.gmra.mrb[0].mxu0 %v2836
        %v3093 = vpop.f32.mrb[0].mxu0
        %v3094 = vadd.f32 %v2774, %v3093
        %v3095 = vpop.f32.mrb[0].mxu0
        %v3096 = vpop.f32.mrb[0].mxu0
        %v3097 = vadd.f32 %v2774, %v3096
        %v3098 = vpop.f32.mrb[0].mxu0
        %3099 = vmatprep.mubr.bf16.mxu0 0
        %3100 = vmatmul.mubr.bf16.gmra.mrb[0].mxu0 %v2839
        %v3101 = vpop.f32.mrb[0].mxu0
        %v3102 = vadd.f32 %v2774, %v3101
        %v3103 = vpop.f32.mrb[0].mxu0
        %v3104 = vpop.f32.mrb[0].mxu0
        %v3105 = vadd.f32 %v2774, %v3104
        %v3106 = vpop.f32.mrb[0].mxu0
        %3107 = vmatprep.mubr.bf16.mxu0 0
        %3108 = vmatmul.mubr.bf16.gmra.mrb[0].mxu0 %v2842
        %v3109 = vpop.f32.mrb[0].mxu0
        %v3110 = vadd.f32 %v2774, %v3109
        %v3111 = vpop.f32.mrb[0].mxu0
        %v3112 = vpop.f32.mrb[0].mxu0
        %v3113 = vadd.f32 %v2774, %v3112
        %v3114 = vpop.f32.mrb[0].mxu0
        %3115 = vmatprep.mubr.bf16.mxu0 0
        %3116 = vmatmul.mubr.bf16.gmra.mrb[0].mxu0 %v2845
        %v3117 = vpop.f32.mrb[0].mxu0
        %v3118 = vadd.f32 %v2774, %v3117
        %v3119 = vpop.f32.mrb[0].mxu0
        %v3120 = vpop.f32.mrb[0].mxu0
        %v3121 = vadd.f32 %v2774, %v3120
        %v3122 = vpop.f32.mrb[0].mxu0
        %3123 = vmatprep.mubr.bf16.mxu0 0
        %3124 = vmatmul.mubr.bf16.gmra.mrb[0].mxu0 %v2848
        %v3125 = vpop.f32.mrb[0].mxu0
        %v3126 = vadd.f32 %v2774, %v3125
        %v3127 = vpop.f32.mrb[0].mxu0
        %v3128 = vpop.f32.mrb[0].mxu0
        %v3129 = vadd.f32 %v2774, %v3128
        %v3130 = vpop.f32.mrb[0].mxu0
        %3131 = vmatprep.mubr.bf16.mxu0 0
        %3132 = vmatmul.mubr.bf16.gmra.mrb[0].mxu0 %v2851
        %v3133 = vpop.f32.mrb[0].mxu0
        %v3134 = vadd.f32 %v2774, %v3133
        %v3135 = vpop.f32.mrb[0].mxu0
        %v3136 = vpop.f32.mrb[0].mxu0
        %v3137 = vadd.f32 %v2774, %v3136
        %v3138 = vpop.f32.mrb[0].mxu0
        %3139 = vmatprep.mubr.bf16.mxu0 0
        %3140 = vmatmul.mubr.bf16.gmra.mrb[0].mxu0 %v2854
        %v3141 = vpop.f32.mrb[0].mxu0
        %v3142 = vadd.f32 %v2774, %v3141
        %v3143 = vpop.f32.mrb[0].mxu0
        %v3144 = vpop.f32.mrb[0].mxu0
        %v3145 = vadd.f32 %v2774, %v3144
        %v3146 = vpop.f32.mrb[0].mxu0
        %3147 = vmatprep.mubr.bf16.mxu0 0
        %3148 = vmatmul.mubr.bf16.gmra.mrb[0].mxu0 %v2857
        %v3149 = vpop.f32.mrb[0].mxu0
        %v3150 = vadd.f32 %v2774, %v3149
        %v3151 = vpop.f32.mrb[0].mxu0
        %v3152 = vpop.f32.mrb[0].mxu0
        %v3153 = vadd.f32 %v2774, %v3152
        %v3154 = vpop.f32.mrb[0].mxu0
        %3155 = vmatprep.mubr.bf16.mxu0 0
        %3156 = vmatmul.mubr.bf16.gmra.mrb[0].mxu0 %v2860
        %v3157 = vpop.f32.mrb[0].mxu0
        %v3158 = vadd.f32 %v2774, %v3157
        %v3159 = vpop.f32.mrb[0].mxu0
        %v3160 = vpop.f32.mrb[0].mxu0
        %v3161 = vadd.f32 %v2774, %v3160
        %v3162 = vpop.f32.mrb[0].mxu0
        %3163 = vmatprep.mubr.bf16.mxu0 0
        %3164 = vmatmul.mubr.bf16.gmra.mrb[0].mxu0 %v2863
        %v3165 = vpop.f32.mrb[0].mxu0
        %v3166 = vadd.f32 %v2774, %v3165
        %v3167 = vpop.f32.mrb[0].mxu0
        %v3168 = vpop.f32.mrb[0].mxu0
        %v3169 = vadd.f32 %v2774, %v3168
        %v3170 = vpop.f32.mrb[0].mxu0
        %3171 = vmatprep.mubr.bf16.mxu0 0
        %3172 = vmatmul.mubr.bf16.gmra.mrb[0].mxu0 %v2866
        %v3173 = vpop.f32.mrb[0].mxu0
        %v3174 = vadd.f32 %v2774, %v3173
        %v3175 = vpop.f32.mrb[0].mxu0
        %v3176 = vpop.f32.mrb[0].mxu0
        %v3177 = vadd.f32 %v2774, %v3176
        %v3178 = vpop.f32.mrb[0].mxu0
        %3179 = vmatprep.mubr.bf16.mxu0 0
        %3180 = vmatmul.mubr.bf16.gmra.mrb[0].mxu0 %v2869
        %v3181 = vpop.f32.mrb[0].mxu0
        %v3182 = vadd.f32 %v2774, %v3181
        %v3183 = vpop.f32.mrb[0].mxu0
        %v3184 = vpop.f32.mrb[0].mxu0
        %v3185 = vadd.f32 %v2774, %v3184
        %v3186 = vpop.f32.mrb[0].mxu0
        %3187 = vmatprep.mubr.bf16.mxu0 0
        %3188 = vmatmul.mubr.bf16.gmra.mrb[0].mxu0 %v2872
        %v3189 = vpop.f32.mrb[0].mxu0
        %v3190 = vadd.f32 %v2774, %v3189
        %v3191 = vpop.f32.mrb[0].mxu0
        %v3192 = vpop.f32.mrb[0].mxu0
        %v3193 = vadd.f32 %v2774, %v3192
        %v3194 = vpop.f32.mrb[0].mxu0
        %3195 = vmatprep.mubr.bf16.mxu0 0
        %3196 = vmatmul.mubr.bf16.gmra.mrb[0].mxu0 %v2875
        %v3197 = vpop.f32.mrb[0].mxu0
        %v3198 = vadd.f32 %v2774, %v3197
        %v3199 = vpop.f32.mrb[0].mxu0
        %v3200 = vpop.f32.mrb[0].mxu0
        %v3201 = vadd.f32 %v2774, %v3200
        %v3202 = vpop.f32.mrb[0].mxu0
        %3203 = vmatprep.mubr.bf16.mxu0 0
        %3204 = vmatmul.mubr.bf16.gmra.mrb[0].mxu0 %v2878
        %v3205 = vpop.f32.mrb[0].mxu0
        %v3206 = vadd.f32 %v2774, %v3205
        %v3207 = vpop.f32.mrb[0].mxu0
        %v3208 = vpop.f32.mrb[0].mxu0
        %v3209 = vadd.f32 %v2774, %v3208
        %v3210 = vpop.f32.mrb[0].mxu0
        %3211 = vmatprep.mubr.bf16.mxu0 0
        %3212 = vmatmul.mubr.bf16.gmra.mrb[0].mxu0 %v2881
        %v3213 = vpop.f32.mrb[0].mxu0
        %v3214 = vadd.f32 %v2774, %v3213
        %v3215 = vpop.f32.mrb[0].mxu0
        %v3216 = vpop.f32.mrb[0].mxu0
        %v3217 = vadd.f32 %v2774, %v3216
        %v3218 = vpop.f32.mrb[0].mxu0
        %3219 = vmatprep.mubr.bf16.mxu0 0
        %3220 = vmatmul.mubr.bf16.gmra.mrb[0].mxu0 %v2884
        %v3221 = vpop.f32.mrb[0].mxu0
        %v3222 = vadd.f32 %v2774, %v3221
        %v3223 = vpop.f32.mrb[0].mxu0
        %v3224 = vpop.f32.mrb[0].mxu0
        %v3225 = vadd.f32 %v2774, %v3224
        %v3226 = vpop.f32.mrb[0].mxu0
        %3227 = vmatprep.mubr.bf16.mxu0 0
        %3228 = vmatmul.mubr.bf16.gmra.mrb[0].mxu0 %v2887
        %v3229 = vpop.f32.mrb[0].mxu0
        %v3230 = vadd.f32 %v2774, %v3229
        %v3231 = vpop.f32.mrb[0].mxu0
        %v3232 = vpop.f32.mrb[0].mxu0
        %v3233 = vadd.f32 %v2774, %v3232
        %v3234 = vpop.f32.mrb[0].mxu0
        %3235 = vmatprep.mubr.bf16.mxu0 0
        %3236 = vmatmul.mubr.bf16.gmra.mrb[0].mxu0 %v2890
        %v3237 = vpop.f32.mrb[0].mxu0
        %v3238 = vadd.f32 %v2774, %v3237
        %v3239 = vpop.f32.mrb[0].mxu0
        %v3240 = vpop.f32.mrb[0].mxu0
        %v3241 = vadd.f32 %v2774, %v3240
        %v3242 = vpop.f32.mrb[0].mxu0
        %3243 = vmatprep.mubr.bf16.mxu0 0
        %3244 = vmatmul.mubr.bf16.gmra.mrb[0].mxu0 %v2893
        %v3245 = vpop.f32.mrb[0].mxu0
        %v3246 = vadd.f32 %v2774, %v3245
        %v3247 = vpop.f32.mrb[0].mxu0
        %v3248 = vpop.f32.mrb[0].mxu0
        %v3249 = vadd.f32 %v2774, %v3248
        %v3250 = vpop.f32.mrb[0].mxu0
        %3251 = vmatprep.mubr.bf16.mxu0 0
        %3252 = vmatmul.mubr.bf16.gmra.mrb[0].mxu0 %v2896
        %v3253 = vpop.f32.mrb[0].mxu0
        %v3254 = vadd.f32 %v2774, %v3253
        %v3255 = vpop.f32.mrb[0].mxu0
        %v3256 = vpop.f32.mrb[0].mxu0
        %v3257 = vadd.f32 %v2774, %v3256
        %v3258 = vpop.f32.mrb[0].mxu0
        %3259 = vmatprep.mubr.bf16.mxu0 0
        %3260 = vmatmul.mubr.bf16.gmra.mrb[0].mxu0 %v2899
        %v3261 = vpop.f32.mrb[0].mxu0
        %v3262 = vadd.f32 %v2774, %v3261
        %v3263 = vpop.f32.mrb[0].mxu0
        %v3264 = vpop.f32.mrb[0].mxu0
        %v3265 = vadd.f32 %v2774, %v3264
        %v3266 = vpop.f32.mrb[0].mxu0
        %3267 = vmatprep.mubr.bf16.mxu0 0
        %3268 = vmatmul.mubr.bf16.gmra.mrb[0].mxu0 %v2902
        %v3269 = vpop.f32.mrb[0].mxu0
        %v3270 = vadd.f32 %v2774, %v3269
        %v3271 = vpop.f32.mrb[0].mxu0
        %v3272 = vpop.f32.mrb[0].mxu0
        %v3273 = vadd.f32 %v2774, %v3272
        %v3274 = vpop.f32.mrb[0].mxu0
        %3275 = vmatprep.mubr.bf16.mxu0 0
        %3276 = vmatmul.mubr.bf16.gmra.mrb[0].mxu0 %v2905
        %v3277 = vpop.f32.mrb[0].mxu0
        %v3278 = vadd.f32 %v2774, %v3277
        %v3279 = vpop.f32.mrb[0].mxu0
        %v3280 = vpop.f32.mrb[0].mxu0
        %v3281 = vadd.f32 %v2774, %v3280
        %v3282 = vpop.f32.mrb[0].mxu0
        %3283 = vmatprep.mubr.bf16.mxu0 0
        %3284 = vmatmul.mubr.bf16.gmra.mrb[0].mxu0 %v2908
        %v3285 = vpop.f32.mrb[0].mxu0
        %v3286 = vadd.f32 %v2774, %v3285
        %v3287 = vpop.f32.mrb[0].mxu0
        %v3288 = vpop.f32.mrb[0].mxu0
        %v3289 = vadd.f32 %v2774, %v3288
        %v3290 = vpop.f32.mrb[0].mxu0
        %3291 = vmatprep.mubr.bf16.mxu0 0
        %3292 = vmatmul.mubr.bf16.gmra.mrb[0].mxu0 %v2911
        %v3293 = vpop.f32.mrb[0].mxu0
        %v3294 = vadd.f32 %v2774, %v3293
        %v3295 = vpop.f32.mrb[0].mxu0
        %v3296 = vpop.f32.mrb[0].mxu0
        %v3297 = vadd.f32 %v2774, %v3296
        %v3298 = vpop.f32.mrb[0].mxu0
        %3299 = vmatprep.mubr.bf16.mxu0 0
        %3300 = vmatmul.mubr.bf16.gmra.mrb[0].mxu0 %v2914
        %v3301 = vpop.f32.mrb[0].mxu0
        %v3302 = vadd.f32 %v2774, %v3301
        %v3303 = vpop.f32.mrb[0].mxu0
        %v3304 = vpop.f32.mrb[0].mxu0
        %v3305 = vadd.f32 %v2774, %v3304
        %v3306 = vpop.f32.mrb[0].mxu0
        %3307 = vmatprep.mubr.bf16.mxu0 0
        %3308 = vmatmul.mubr.bf16.gmra.mrb[0].mxu0 %v2917
        %v3309 = vpop.f32.mrb[0].mxu0
        %v3310 = vadd.f32 %v2774, %v3309
        %v3311 = vpop.f32.mrb[0].mxu0
        %v3312 = vpop.f32.mrb[0].mxu0
        %v3313 = vadd.f32 %v2774, %v3312
        %v3314 = vpop.f32.mrb[0].mxu0
        %3315 = vmatprep.mubr.bf16.mxu0 0
        %3316 = vmatmul.mubr.bf16.gmra.mrb[0].mxu0 %v2920
        %v3317 = vpop.f32.mrb[0].mxu0
        %v3318 = vadd.f32 %v2774, %v3317
        %v3319 = vpop.f32.mrb[0].mxu0
        %v3320 = vpop.f32.mrb[0].mxu0
        %v3321 = vadd.f32 %v2774, %v3320
        %v3322 = vpop.f32.mrb[0].mxu0
        %3323 = vmatprep.mubr.bf16.mxu0 0
        %3324 = vmatmul.mubr.bf16.gmra.mrb[0].mxu0 %v2923
        %v3325 = vpop.f32.mrb[0].mxu0
        %v3326 = vadd.f32 %v2774, %v3325
        %v3327 = vpop.f32.mrb[0].mxu0
        %v3328 = vpop.f32.mrb[0].mxu0
        %v3329 = vadd.f32 %v2774, %v3328
        %v3330 = vpop.f32.mrb[0].mxu0
        %3331 = vmatprep.mubr.bf16.mxu0 0
        %3332 = vmatmul.mubr.bf16.gmra.mrb[0].mxu0 %v2926
        %v3333 = vpop.f32.mrb[0].mxu0
        %v3334 = vadd.f32 %v2774, %v3333
        %v3335 = vpop.f32.mrb[0].mxu0
        %v3336 = vpop.f32.mrb[0].mxu0
        %v3337 = vadd.f32 %v2774, %v3336
        %v3338 = vpop.f32.mrb[0].mxu0
        %3339 = vmatprep.mubr.bf16.mxu0 0
        %3340 = vmatmul.mubr.bf16.gmra.mrb[0].mxu0 %v2929
        %v3341 = vpop.f32.mrb[0].mxu0
        %v3342 = vadd.f32 %v2774, %v3341
        %v3343 = vpop.f32.mrb[0].mxu0
        %v3344 = vpop.f32.mrb[0].mxu0
        %v3345 = vadd.f32 %v2774, %v3344
        %v3346 = vpop.f32.mrb[0].mxu0
        %3347 = vdwg.mxu0
        %v3348 = vpack.c.bf16 %v2969, %v2966
        %v3349 = vpack.c.bf16 %v2977, %v2974
        %v3350 = vpack.c.bf16 %v2985, %v2982
        %v3351 = vpack.c.bf16 %v2993, %v2990
        %v3352 = vpack.c.bf16 %v3001, %v2998
        %v3353 = vpack.c.bf16 %v3009, %v3006
        %v3354 = vpack.c.bf16 %v3017, %v3014
        %v3355 = vpack.c.bf16 %v3025, %v3022
        %v3356 = vpack.c.bf16 %v3033, %v3030
        %v3357 = vpack.c.bf16 %v3041, %v3038
        %v3358 = vpack.c.bf16 %v3049, %v3046
        %v3359 = vpack.c.bf16 %v3057, %v3054
        %v3360 = vpack.c.bf16 %v3065, %v3062
        %v3361 = vpack.c.bf16 %v3073, %v3070
        %v3362 = vpack.c.bf16 %v3081, %v3078
        %v3363 = vpack.c.bf16 %v3089, %v3086
        %v3364 = vpack.c.bf16 %v3097, %v3094
        %v3365 = vpack.c.bf16 %v3105, %v3102
        %v3366 = vpack.c.bf16 %v3113, %v3110
        %v3367 = vpack.c.bf16 %v3121, %v3118
        %v3368 = vpack.c.bf16 %v3129, %v3126
        %v3369 = vpack.c.bf16 %v3137, %v3134
        %v3370 = vpack.c.bf16 %v3145, %v3142
        %v3371 = vpack.c.bf16 %v3153, %v3150
        %v3372 = vpack.c.bf16 %v3161, %v3158
        %v3373 = vpack.c.bf16 %v3169, %v3166
        %v3374 = vpack.c.bf16 %v3177, %v3174
        %v3375 = vpack.c.bf16 %v3185, %v3182
        %v3376 = vpack.c.bf16 %v3193, %v3190
        %v3377 = vpack.c.bf16 %v3201, %v3198
        %v3378 = vpack.c.bf16 %v3209, %v3206
        %v3379 = vpack.c.bf16 %v3217, %v3214
        %v3380 = vpack.c.bf16 %v3225, %v3222
        %v3381 = vpack.c.bf16 %v3233, %v3230
        %v3382 = vpack.c.bf16 %v3241, %v3238
        %v3383 = vpack.c.bf16 %v3249, %v3246
        %v3384 = vpack.c.bf16 %v3257, %v3254
        %v3385 = vpack.c.bf16 %v3265, %v3262
        %v3386 = vpack.c.bf16 %v3273, %v3270
        %v3387 = vpack.c.bf16 %v3281, %v3278
        %v3388 = vpack.c.bf16 %v3289, %v3286
        %v3389 = vpack.c.bf16 %v3297, %v3294
        %v3390 = vpack.c.bf16 %v3305, %v3302
        %v3391 = vpack.c.bf16 %v3313, %v3310
        %v3392 = vpack.c.bf16 %v3321, %v3318
        %v3393 = vpack.c.bf16 %v3329, %v3326
        %v3394 = vpack.c.bf16 %v3337, %v3334
        %v3395 = vpack.c.bf16 %v3345, %v3342
        %3420 = vrot.lane.b32.xlu0 %v3372, 32
        %v3421 = vpop.permute.xlu0 %3420
        %3422 = vrot.lane.b32.xlu0 %v3373, 32
        %v3423 = vpop.permute.xlu0 %3422
        %3424 = vrot.lane.b32.xlu0 %v3374, 32
        %v3425 = vpop.permute.xlu0 %3424
        %3426 = vrot.lane.b32.xlu0 %v3375, 32
        %v3427 = vpop.permute.xlu0 %3426
        %3428 = vrot.lane.b32.xlu0 %v3376, 32
        %v3429 = vpop.permute.xlu0 %3428
        %3430 = vrot.lane.b32.xlu0 %v3377, 32
        %v3431 = vpop.permute.xlu0 %3430
        %3432 = vrot.lane.b32.xlu0 %v3378, 32
        %v3433 = vpop.permute.xlu0 %3432
        %3434 = vrot.lane.b32.xlu0 %v3379, 32
        %v3435 = vpop.permute.xlu0 %3434
        %3436 = vrot.lane.b32.xlu0 %v3380, 32
        %v3437 = vpop.permute.xlu0 %3436
        %3438 = vrot.lane.b32.xlu0 %v3381, 32
        %v3439 = vpop.permute.xlu0 %3438
        %3440 = vrot.lane.b32.xlu0 %v3382, 32
        %v3441 = vpop.permute.xlu0 %3440
        %3442 = vrot.lane.b32.xlu0 %v3383, 32
        %v3443 = vpop.permute.xlu0 %3442
        %3444 = vrot.lane.b32.xlu0 %v3384, 32
        %v3445 = vpop.permute.xlu0 %3444
        %3446 = vrot.lane.b32.xlu0 %v3385, 32
        %v3447 = vpop.permute.xlu0 %3446
        %3448 = vrot.lane.b32.xlu0 %v3386, 32
        %v3449 = vpop.permute.xlu0 %3448
        %3450 = vrot.lane.b32.xlu0 %v3387, 32
        %v3451 = vpop.permute.xlu0 %3450
        %3452 = vrot.lane.b32.xlu0 %v3388, 32
        %v3453 = vpop.permute.xlu0 %3452
        %3454 = vrot.lane.b32.xlu0 %v3389, 32
        %v3455 = vpop.permute.xlu0 %3454
        %3456 = vrot.lane.b32.xlu0 %v3390, 32
        %v3457 = vpop.permute.xlu0 %3456
        %3458 = vrot.lane.b32.xlu0 %v3391, 32
        %v3459 = vpop.permute.xlu0 %3458
        %3460 = vrot.lane.b32.xlu0 %v3392, 32
        %v3461 = vpop.permute.xlu0 %3460
        %3462 = vrot.lane.b32.xlu0 %v3393, 32
        %v3463 = vpop.permute.xlu0 %3462
        %3464 = vrot.lane.b32.xlu0 %v3394, 32
        %v3465 = vpop.permute.xlu0 %3464
        %3466 = vrot.lane.b32.xlu0 %v3395, 32
        %v3467 = vpop.permute.xlu0 %3466
        %v3470 = vsel %vm2060, %v3348, %v3421
        %v3473 = vsel %vm2060, %v3349, %v3423
        %v3476 = vsel %vm2060, %v3350, %v3425
        %v3479 = vsel %vm2060, %v3351, %v3427
        %v3482 = vsel %vm2060, %v3352, %v3429
        %v3485 = vsel %vm2060, %v3353, %v3431
        %v3488 = vsel %vm2060, %v3354, %v3433
        %v3491 = vsel %vm2060, %v3355, %v3435
        %v3494 = vsel %vm2060, %v3356, %v3437
        %v3497 = vsel %vm2060, %v3357, %v3439
        %v3500 = vsel %vm2060, %v3358, %v3441
        %v3503 = vsel %vm2060, %v3359, %v3443
        %v3506 = vsel %vm2060, %v3360, %v3445
        %v3509 = vsel %vm2060, %v3361, %v3447
        %v3512 = vsel %vm2060, %v3362, %v3449
        %v3515 = vsel %vm2060, %v3363, %v3451
        %v3518 = vsel %vm2060, %v3364, %v3453
        %v3522 = vsel %vm2060, %v3365, %v3455
        %v3526 = vsel %vm2060, %v3366, %v3457
        %v3530 = vsel %vm2060, %v3367, %v3459
        %v3534 = vsel %vm2060, %v3368, %v3461
        %v3538 = vsel %vm2060, %v3369, %v3463
        %v3542 = vsel %vm2060, %v3370, %v3465
        %v3546 = vsel %vm2060, %v3371, %v3467
        %v3548 = vld [vmem:[%s4 + $0x40] sm:$0xf]
        %v3549 = vld [vmem:[%s4 + $0x44] sm:$0xf]
        %v3550 = vld [vmem:[%s4 + $0x48] sm:$0xf]
        %v3551 = vld [vmem:[%s4 + $0x4c] sm:$0xf]
        %v3552 = vld [vmem:[%s4 + $0x50] sm:$0xf]
        %v3553 = vld [vmem:[%s4 + $0x54] sm:$0xf]
        %v3554 = vld [vmem:[%s4 + $0x58] sm:$0xf]
        %v3555 = vld [vmem:[%s4 + $0x5c] sm:$0xf]
        %v3556 = vld [vmem:[%s5 + $0x18] sm:$0x1]
        %v3557 = vlaneseq
        %v3558 = vshrl.u32 %v3557, 7
        %v3559 = vsub.s32 0, %v3558
        %v3560 = vrot.slane %v3556, %v3559
        %v3569 = vunpack.c.l.b16 %v3548
        %v3570 = vunpack.c.l.b16 %v3549
        %v3571 = vunpack.c.l.b16 %v3550
        %v3572 = vunpack.c.l.b16 %v3551
        %v3573 = vunpack.c.l.b16 %v3552
        %v3574 = vunpack.c.l.b16 %v3553
        %v3575 = vunpack.c.l.b16 %v3554
        %v3576 = vunpack.c.l.b16 %v3555
        %v3577 = vpack.c.b16 %v3570, %v3569
        %v3578 = vpack.c.b16 %v3572, %v3571
        %v3579 = vpack.c.b16 %v3574, %v3573
        %v3580 = vpack.c.b16 %v3576, %v3575
        %vm3585 = vcmask 523264
        %v3586 = vsel %vm3585, %v3470, 0
        %v3588 = vsel %vm3585, %v3473, 0
        %v3590 = vsel %vm3585, %v3476, 0
        %v3592 = vsel %vm3585, %v3479, 0
        %v3594 = vsel %vm3585, %v3482, 0
        %v3596 = vsel %vm3585, %v3485, 0
        %v3598 = vsel %vm3585, %v3488, 0
        %v3600 = vsel %vm3585, %v3491, 0
        %v3602 = vsel %vm3585, %v3494, 0
        %v3604 = vsel %vm3585, %v3497, 0
        %v3606 = vsel %vm3585, %v3500, 0
        %v3608 = vsel %vm3585, %v3503, 0
        %v3610 = vsel %vm3585, %v3506, 0
        %v3612 = vsel %vm3585, %v3509, 0
        %v3614 = vsel %vm3585, %v3512, 0
        %v3616 = vsel %vm3585, %v3515, 0
        %v3618 = vsel %vm3585, %v3518, 0
        %v3620 = vsel %vm3585, %v3522, 0
        %v3622 = vsel %vm3585, %v3526, 0
        %v3624 = vsel %vm3585, %v3530, 0
        %v3626 = vsel %vm3585, %v3534, 0
        %v3628 = vsel %vm3585, %v3538, 0
        %v3630 = vsel %vm3585, %v3542, 0
        %v3632 = vsel %vm3585, %v3546, 0
        %3634 = vmatprep.subr.bf16.mxu0 0
        %3635 = vmatpush1.bf16.msra.mxu0 %v3577
        %3636 = vmatprep.subr.bf16.mxu0 0
        %3637 = vmatpush1.bf16.msra.mxu0 %v3578
        %3638 = vmatprep.subr.bf16.mxu0 0
        %3639 = vmatpush1.bf16.msra.mxu0 %v3579
        %3640 = vmatprep.subr.bf16.mxu0 0
        %3641 = vmatpush1.bf16.msra.mxu0 %v3580
        %3642 = vmatprep.subr.bf16.mxu0 0
        %3643 = vmatpush1.bf16.msra.mxu0 0
        %3644 = vmatprep.subr.bf16.mxu0 0
        %3645 = vmatpush1.bf16.msra.mxu0 0
        %3646 = vmatprep.subr.bf16.mxu0 0
        %3647 = vmatpush1.bf16.msra.mxu0 0
        %3648 = vmatprep.subr.bf16.mxu0 0
        %3649 = vmatpush1.bf16.msra.mxu0 0
        %3650 = vmatprep.subr.bf16.mxu0 0
        %3651 = vmatpush1.bf16.msra.mxu0 0
        %3652 = vmatprep.subr.bf16.mxu0 0
        %3653 = vmatpush1.bf16.msra.mxu0 0
        %3654 = vmatprep.subr.bf16.mxu0 0
        %3655 = vmatpush1.bf16.msra.mxu0 0
        %3656 = vmatprep.subr.bf16.mxu0 0
        %3657 = vmatpush1.bf16.msra.mxu0 0
        %3658 = vmatprep.subr.bf16.mxu0 0
        %3659 = vmatpush1.bf16.msra.mxu0 0
        %3660 = vmatprep.subr.bf16.mxu0 0
        %3661 = vmatpush1.bf16.msra.mxu0 0
        %3662 = vmatprep.subr.bf16.mxu0 0
        %3663 = vmatpush1.bf16.msra.mxu0 0
        %3664 = vmatprep.subr.bf16.mxu0 0
        %3665 = vmatpush1.bf16.msra.mxu0 0
        %3666 = vmatprep.mubr.bf16.mxu0 0
        %3667 = vmatmul.mubr.bf16.gmra.mrb[0].mxu0 %v3586
        %v3668 = vpop.f32.mrb[0].mxu0
        %v3669 = vadd.f32 %v3560, %v3668
        %v3670 = vpop.f32.mrb[0].mxu0
        %v3671 = vpop.f32.mrb[0].mxu0
        %v3672 = vadd.f32 %v3560, %v3671
        %v3673 = vpop.f32.mrb[0].mxu0
        %3674 = vmatprep.mubr.bf16.mxu0 0
        %3675 = vmatmul.mubr.bf16.gmra.mrb[0].mxu0 %v3588
        %v3676 = vpop.f32.mrb[0].mxu0
        %v3677 = vadd.f32 %v3560, %v3676
        %v3678 = vpop.f32.mrb[0].mxu0
        %v3679 = vpop.f32.mrb[0].mxu0
        %v3680 = vadd.f32 %v3560, %v3679
        %v3681 = vpop.f32.mrb[0].mxu0
        %3682 = vmatprep.mubr.bf16.mxu0 0
        %3683 = vmatmul.mubr.bf16.gmra.mrb[0].mxu0 %v3590
        %v3684 = vpop.f32.mrb[0].mxu0
        %v3685 = vadd.f32 %v3560, %v3684
        %v3686 = vpop.f32.mrb[0].mxu0
        %v3687 = vpop.f32.mrb[0].mxu0
        %v3688 = vadd.f32 %v3560, %v3687
        %v3689 = vpop.f32.mrb[0].mxu0
        %3690 = vmatprep.mubr.bf16.mxu0 0
        %3691 = vmatmul.mubr.bf16.gmra.mrb[0].mxu0 %v3592
        %v3692 = vpop.f32.mrb[0].mxu0
        %v3693 = vadd.f32 %v3560, %v3692
        %v3694 = vpop.f32.mrb[0].mxu0
        %v3695 = vpop.f32.mrb[0].mxu0
        %v3696 = vadd.f32 %v3560, %v3695
        %v3697 = vpop.f32.mrb[0].mxu0
        %3698 = vmatprep.mubr.bf16.mxu0 0
        %3699 = vmatmul.mubr.bf16.gmra.mrb[0].mxu0 %v3594
        %v3700 = vpop.f32.mrb[0].mxu0
        %v3701 = vadd.f32 %v3560, %v3700
        %v3702 = vpop.f32.mrb[0].mxu0
        %v3703 = vpop.f32.mrb[0].mxu0
        %v3704 = vadd.f32 %v3560, %v3703
        %v3705 = vpop.f32.mrb[0].mxu0
        %3706 = vmatprep.mubr.bf16.mxu0 0
        %3707 = vmatmul.mubr.bf16.gmra.mrb[0].mxu0 %v3596
        %v3708 = vpop.f32.mrb[0].mxu0
        %v3709 = vadd.f32 %v3560, %v3708
        %v3710 = vpop.f32.mrb[0].mxu0
        %v3711 = vpop.f32.mrb[0].mxu0
        %v3712 = vadd.f32 %v3560, %v3711
        %v3713 = vpop.f32.mrb[0].mxu0
        %3714 = vmatprep.mubr.bf16.mxu0 0
        %3715 = vmatmul.mubr.bf16.gmra.mrb[0].mxu0 %v3598
        %v3716 = vpop.f32.mrb[0].mxu0
        %v3717 = vadd.f32 %v3560, %v3716
        %v3718 = vpop.f32.mrb[0].mxu0
        %v3719 = vpop.f32.mrb[0].mxu0
        %v3720 = vadd.f32 %v3560, %v3719
        %v3721 = vpop.f32.mrb[0].mxu0
        %3722 = vmatprep.mubr.bf16.mxu0 0
        %3723 = vmatmul.mubr.bf16.gmra.mrb[0].mxu0 %v3600
        %v3724 = vpop.f32.mrb[0].mxu0
        %v3725 = vadd.f32 %v3560, %v3724
        %v3726 = vpop.f32.mrb[0].mxu0
        %v3727 = vpop.f32.mrb[0].mxu0
        %v3728 = vadd.f32 %v3560, %v3727
        %v3729 = vpop.f32.mrb[0].mxu0
        %3730 = vmatprep.mubr.bf16.mxu0 0
        %3731 = vmatmul.mubr.bf16.gmra.mrb[0].mxu0 %v3602
        %v3732 = vpop.f32.mrb[0].mxu0
        %v3733 = vadd.f32 %v3560, %v3732
        %v3734 = vpop.f32.mrb[0].mxu0
        %v3735 = vpop.f32.mrb[0].mxu0
        %v3736 = vadd.f32 %v3560, %v3735
        %v3737 = vpop.f32.mrb[0].mxu0
        %3738 = vmatprep.mubr.bf16.mxu0 0
        %3739 = vmatmul.mubr.bf16.gmra.mrb[0].mxu0 %v3604
        %v3740 = vpop.f32.mrb[0].mxu0
        %v3741 = vadd.f32 %v3560, %v3740
        %v3742 = vpop.f32.mrb[0].mxu0
        %v3743 = vpop.f32.mrb[0].mxu0
        %v3744 = vadd.f32 %v3560, %v3743
        %v3745 = vpop.f32.mrb[0].mxu0
        %3746 = vmatprep.mubr.bf16.mxu0 0
        %3747 = vmatmul.mubr.bf16.gmra.mrb[0].mxu0 %v3606
        %v3748 = vpop.f32.mrb[0].mxu0
        %v3749 = vadd.f32 %v3560, %v3748
        %v3750 = vpop.f32.mrb[0].mxu0
        %v3751 = vpop.f32.mrb[0].mxu0
        %v3752 = vadd.f32 %v3560, %v3751
        %v3753 = vpop.f32.mrb[0].mxu0
        %3754 = vmatprep.mubr.bf16.mxu0 0
        %3755 = vmatmul.mubr.bf16.gmra.mrb[0].mxu0 %v3608
        %v3756 = vpop.f32.mrb[0].mxu0
        %v3757 = vadd.f32 %v3560, %v3756
        %v3758 = vpop.f32.mrb[0].mxu0
        %v3759 = vpop.f32.mrb[0].mxu0
        %v3760 = vadd.f32 %v3560, %v3759
        %v3761 = vpop.f32.mrb[0].mxu0
        %3762 = vmatprep.mubr.bf16.mxu0 0
        %3763 = vmatmul.mubr.bf16.gmra.mrb[0].mxu0 %v3610
        %v3764 = vpop.f32.mrb[0].mxu0
        %v3765 = vadd.f32 %v3560, %v3764
        %v3766 = vpop.f32.mrb[0].mxu0
        %v3767 = vpop.f32.mrb[0].mxu0
        %v3768 = vadd.f32 %v3560, %v3767
        %v3769 = vpop.f32.mrb[0].mxu0
        %3770 = vmatprep.mubr.bf16.mxu0 0
        %3771 = vmatmul.mubr.bf16.gmra.mrb[0].mxu0 %v3612
        %v3772 = vpop.f32.mrb[0].mxu0
        %v3773 = vadd.f32 %v3560, %v3772
        %v3774 = vpop.f32.mrb[0].mxu0
        %v3775 = vpop.f32.mrb[0].mxu0
        %v3776 = vadd.f32 %v3560, %v3775
        %v3777 = vpop.f32.mrb[0].mxu0
        %3778 = vmatprep.mubr.bf16.mxu0 0
        %3779 = vmatmul.mubr.bf16.gmra.mrb[0].mxu0 %v3614
        %v3780 = vpop.f32.mrb[0].mxu0
        %v3781 = vadd.f32 %v3560, %v3780
        %v3782 = vpop.f32.mrb[0].mxu0
        %v3783 = vpop.f32.mrb[0].mxu0
        %v3784 = vadd.f32 %v3560, %v3783
        %v3785 = vpop.f32.mrb[0].mxu0
        %3786 = vmatprep.mubr.bf16.mxu0 0
        %3787 = vmatmul.mubr.bf16.gmra.mrb[0].mxu0 %v3616
        %v3788 = vpop.f32.mrb[0].mxu0
        %v3789 = vadd.f32 %v3560, %v3788
        %v3790 = vpop.f32.mrb[0].mxu0
        %v3791 = vpop.f32.mrb[0].mxu0
        %v3792 = vadd.f32 %v3560, %v3791
        %v3793 = vpop.f32.mrb[0].mxu0
        %3794 = vmatprep.mubr.bf16.mxu0 0
        %3795 = vmatmul.mubr.bf16.gmra.mrb[0].mxu0 %v3618
        %v3796 = vpop.f32.mrb[0].mxu0
        %v3797 = vadd.f32 %v3560, %v3796
        %v3798 = vpop.f32.mrb[0].mxu0
        %v3799 = vpop.f32.mrb[0].mxu0
        %v3800 = vadd.f32 %v3560, %v3799
        %v3801 = vpop.f32.mrb[0].mxu0
        %3802 = vmatprep.mubr.bf16.mxu0 0
        %3803 = vmatmul.mubr.bf16.gmra.mrb[0].mxu0 %v3620
        %v3804 = vpop.f32.mrb[0].mxu0
        %v3805 = vadd.f32 %v3560, %v3804
        %v3806 = vpop.f32.mrb[0].mxu0
        %v3807 = vpop.f32.mrb[0].mxu0
        %v3808 = vadd.f32 %v3560, %v3807
        %v3809 = vpop.f32.mrb[0].mxu0
        %3810 = vmatprep.mubr.bf16.mxu0 0
        %3811 = vmatmul.mubr.bf16.gmra.mrb[0].mxu0 %v3622
        %v3812 = vpop.f32.mrb[0].mxu0
        %v3813 = vadd.f32 %v3560, %v3812
        %v3814 = vpop.f32.mrb[0].mxu0
        %v3815 = vpop.f32.mrb[0].mxu0
        %v3816 = vadd.f32 %v3560, %v3815
        %v3817 = vpop.f32.mrb[0].mxu0
        %3818 = vmatprep.mubr.bf16.mxu0 0
        %3819 = vmatmul.mubr.bf16.gmra.mrb[0].mxu0 %v3624
        %v3820 = vpop.f32.mrb[0].mxu0
        %v3821 = vadd.f32 %v3560, %v3820
        %v3822 = vpop.f32.mrb[0].mxu0
        %v3823 = vpop.f32.mrb[0].mxu0
        %v3824 = vadd.f32 %v3560, %v3823
        %v3825 = vpop.f32.mrb[0].mxu0
        %3826 = vmatprep.mubr.bf16.mxu0 0
        %3827 = vmatmul.mubr.bf16.gmra.mrb[0].mxu0 %v3626
        %v3828 = vpop.f32.mrb[0].mxu0
        %v3829 = vadd.f32 %v3560, %v3828
        %v3830 = vpop.f32.mrb[0].mxu0
        %v3831 = vpop.f32.mrb[0].mxu0
        %v3832 = vadd.f32 %v3560, %v3831
        %v3833 = vpop.f32.mrb[0].mxu0
        %3834 = vmatprep.mubr.bf16.mxu0 0
        %3835 = vmatmul.mubr.bf16.gmra.mrb[0].mxu0 %v3628
        %v3836 = vpop.f32.mrb[0].mxu0
        %v3837 = vadd.f32 %v3560, %v3836
        %v3838 = vpop.f32.mrb[0].mxu0
        %v3839 = vpop.f32.mrb[0].mxu0
        %v3840 = vadd.f32 %v3560, %v3839
        %v3841 = vpop.f32.mrb[0].mxu0
        %3842 = vmatprep.mubr.bf16.mxu0 0
        %3843 = vmatmul.mubr.bf16.gmra.mrb[0].mxu0 %v3630
        %v3844 = vpop.f32.mrb[0].mxu0
        %v3845 = vadd.f32 %v3560, %v3844
        %v3846 = vpop.f32.mrb[0].mxu0
        %v3847 = vpop.f32.mrb[0].mxu0
        %v3848 = vadd.f32 %v3560, %v3847
        %v3849 = vpop.f32.mrb[0].mxu0
        %3850 = vmatprep.mubr.bf16.mxu0 0
        %3851 = vmatmul.mubr.bf16.gmra.mrb[0].mxu0 %v3632
        %v3852 = vpop.f32.mrb[0].mxu0
        %v3853 = vadd.f32 %v3560, %v3852
        %v3854 = vpop.f32.mrb[0].mxu0
        %v3855 = vpop.f32.mrb[0].mxu0
        %v3856 = vadd.f32 %v3560, %v3855
        %v3857 = vpop.f32.mrb[0].mxu0
        %3858 = vdwg.mxu0
        %3875 = vrot.lane.b32.xlu0 %v3669, 64
        %v3876 = vpop.permute.xlu0 %3875
        %3877 = vrot.lane.b32.xlu0 %v3672, 64
        %v3878 = vpop.permute.xlu0 %3877
        %3879 = vrot.lane.b32.xlu0 %v3677, 64
        %v3880 = vpop.permute.xlu0 %3879
        %3881 = vrot.lane.b32.xlu0 %v3680, 64
        %v3882 = vpop.permute.xlu0 %3881
        %3883 = vrot.lane.b32.xlu0 %v3685, 64
        %v3884 = vpop.permute.xlu0 %3883
        %3885 = vrot.lane.b32.xlu0 %v3688, 64
        %v3886 = vpop.permute.xlu0 %3885
        %3887 = vrot.lane.b32.xlu0 %v3693, 64
        %v3888 = vpop.permute.xlu0 %3887
        %3889 = vrot.lane.b32.xlu0 %v3696, 64
        %v3890 = vpop.permute.xlu0 %3889
        %3891 = vrot.lane.b32.xlu0 %v3701, 64
        %v3892 = vpop.permute.xlu0 %3891
        %3893 = vrot.lane.b32.xlu0 %v3704, 64
        %v3894 = vpop.permute.xlu0 %3893
        %3895 = vrot.lane.b32.xlu0 %v3709, 64
        %v3896 = vpop.permute.xlu0 %3895
        %3897 = vrot.lane.b32.xlu0 %v3712, 64
        %v3898 = vpop.permute.xlu0 %3897
        %3899 = vrot.lane.b32.xlu0 %v3717, 64
        %v3900 = vpop.permute.xlu0 %3899
        %3901 = vrot.lane.b32.xlu0 %v3720, 64
        %v3902 = vpop.permute.xlu0 %3901
        %3903 = vrot.lane.b32.xlu0 %v3725, 64
        %v3904 = vpop.permute.xlu0 %3903
        %3905 = vrot.lane.b32.xlu0 %v3728, 64
        %v3906 = vpop.permute.xlu0 %3905
        %v3923 = vmul.f32 %v3797, %v3876
        %v3924 = vmul.f32 %v3800, %v3878
        %v3925 = vmul.f32 %v3805, %v3880
        %v3926 = vmul.f32 %v3808, %v3882
        %v3927 = vmul.f32 %v3813, %v3884
        %v3928 = vmul.f32 %v3816, %v3886
        %v3929 = vmul.f32 %v3821, %v3888
        %v3930 = vmul.f32 %v3824, %v3890
        %v3931 = vmul.f32 %v3829, %v3892
        %v3932 = vmul.f32 %v3832, %v3894
        %v3933 = vmul.f32 %v3837, %v3896
        %v3934 = vmul.f32 %v3840, %v3898
        %v3935 = vmul.f32 %v3845, %v3900
        %v3936 = vmul.f32 %v3848, %v3902
        %v3937 = vmul.f32 %v3853, %v3904
        %v3938 = vmul.f32 %v3856, %v3906
        %v3939 = vsel %vm3585, %v3923, 0.0
        %3940 = vadd.xlane.f32.xlu0 %v3939
        %v3941 = vpop.xlane.xlu0 %3940
        %v3942 = vsel %vm3585, %v3924, 0.0
        %3943 = vadd.xlane.f32.xlu0 %v3942
        %v3944 = vpop.xlane.xlu0 %3943
        %v3945 = vsel %vm3585, %v3925, 0.0
        %3946 = vadd.xlane.f32.xlu0 %v3945
        %v3947 = vpop.xlane.xlu0 %3946
        %v3948 = vsel %vm3585, %v3926, 0.0
        %3949 = vadd.xlane.f32.xlu0 %v3948
        %v3950 = vpop.xlane.xlu0 %3949
        %v3951 = vsel %vm3585, %v3927, 0.0
        %3952 = vadd.xlane.f32.xlu0 %v3951
        %v3953 = vpop.xlane.xlu0 %3952
        %v3954 = vsel %vm3585, %v3928, 0.0
        %3955 = vadd.xlane.f32.xlu0 %v3954
        %v3956 = vpop.xlane.xlu0 %3955
        %v3957 = vsel %vm3585, %v3929, 0.0
        %3958 = vadd.xlane.f32.xlu0 %v3957
        %v3959 = vpop.xlane.xlu0 %3958
        %v3960 = vsel %vm3585, %v3930, 0.0
        %3961 = vadd.xlane.f32.xlu0 %v3960
        %v3962 = vpop.xlane.xlu0 %3961
        %v3963 = vsel %vm3585, %v3931, 0.0
        %3964 = vadd.xlane.f32.xlu0 %v3963
        %v3965 = vpop.xlane.xlu0 %3964
        %v3966 = vsel %vm3585, %v3932, 0.0
        %3967 = vadd.xlane.f32.xlu0 %v3966
        %v3968 = vpop.xlane.xlu0 %3967
        %v3969 = vsel %vm3585, %v3933, 0.0
        %3970 = vadd.xlane.f32.xlu0 %v3969
        %v3971 = vpop.xlane.xlu0 %3970
        %v3972 = vsel %vm3585, %v3934, 0.0
        %3973 = vadd.xlane.f32.xlu0 %v3972
        %v3974 = vpop.xlane.xlu0 %3973
        %v3975 = vsel %vm3585, %v3935, 0.0
        %3976 = vadd.xlane.f32.xlu0 %v3975
        %v3977 = vpop.xlane.xlu0 %3976
        %v3978 = vsel %vm3585, %v3936, 0.0
        %3979 = vadd.xlane.f32.xlu0 %v3978
        %v3980 = vpop.xlane.xlu0 %3979
        %v3981 = vsel %vm3585, %v3937, 0.0
        %3982 = vadd.xlane.f32.xlu0 %v3981
        %v3983 = vpop.xlane.xlu0 %3982
        %v3984 = vsel %vm3585, %v3938, 0.0
        %3985 = vadd.xlane.f32.xlu0 %v3984
        %v3986 = vpop.xlane.xlu0 %3985
        %4003 = vrot.lane.b32.xlu0 %v3733, 64
        %v4004 = vpop.permute.xlu0 %4003
        %4005 = vrot.lane.b32.xlu0 %v3736, 64
        %v4006 = vpop.permute.xlu0 %4005
        %4007 = vrot.lane.b32.xlu0 %v3741, 64
        %v4008 = vpop.permute.xlu0 %4007
        %4009 = vrot.lane.b32.xlu0 %v3744, 64
        %v4010 = vpop.permute.xlu0 %4009
        %4011 = vrot.lane.b32.xlu0 %v3749, 64
        %v4012 = vpop.permute.xlu0 %4011
        %4013 = vrot.lane.b32.xlu0 %v3752, 64
        %v4014 = vpop.permute.xlu0 %4013
        %4015 = vrot.lane.b32.xlu0 %v3757, 64
        %v4016 = vpop.permute.xlu0 %4015
        %4017 = vrot.lane.b32.xlu0 %v3760, 64
        %v4018 = vpop.permute.xlu0 %4017
        %4019 = vrot.lane.b32.xlu0 %v3765, 64
        %v4020 = vpop.permute.xlu0 %4019
        %4021 = vrot.lane.b32.xlu0 %v3768, 64
        %v4022 = vpop.permute.xlu0 %4021
        %4023 = vrot.lane.b32.xlu0 %v3773, 64
        %v4024 = vpop.permute.xlu0 %4023
        %4025 = vrot.lane.b32.xlu0 %v3776, 64
        %v4026 = vpop.permute.xlu0 %4025
        %4027 = vrot.lane.b32.xlu0 %v3781, 64
        %v4028 = vpop.permute.xlu0 %4027
        %4029 = vrot.lane.b32.xlu0 %v3784, 64
        %v4030 = vpop.permute.xlu0 %4029
        %4031 = vrot.lane.b32.xlu0 %v3789, 64
        %v4032 = vpop.permute.xlu0 %4031
        %4033 = vrot.lane.b32.xlu0 %v3792, 64
        %v4034 = vpop.permute.xlu0 %4033
        %v4051 = vmul.f32 %v3797, %v4004
        %v4052 = vmul.f32 %v3800, %v4006
        %v4053 = vmul.f32 %v3805, %v4008
        %v4054 = vmul.f32 %v3808, %v4010
        %v4055 = vmul.f32 %v3813, %v4012
        %v4056 = vmul.f32 %v3816, %v4014
        %v4057 = vmul.f32 %v3821, %v4016
        %v4058 = vmul.f32 %v3824, %v4018
        %v4059 = vmul.f32 %v3829, %v4020
        %v4060 = vmul.f32 %v3832, %v4022
        %v4061 = vmul.f32 %v3837, %v4024
        %v4062 = vmul.f32 %v3840, %v4026
        %v4063 = vmul.f32 %v3845, %v4028
        %v4064 = vmul.f32 %v3848, %v4030
        %v4065 = vmul.f32 %v3853, %v4032
        %v4066 = vmul.f32 %v3856, %v4034
        %v4067 = vsel %vm3585, %v4051, 0.0
        %4068 = vadd.xlane.f32.xlu0 %v4067
        %v4069 = vpop.xlane.xlu0 %4068
        %v4070 = vsel %vm3585, %v4052, 0.0
        %4071 = vadd.xlane.f32.xlu0 %v4070
        %v4072 = vpop.xlane.xlu0 %4071
        %v4073 = vsel %vm3585, %v4053, 0.0
        %4074 = vadd.xlane.f32.xlu0 %v4073
        %v4075 = vpop.xlane.xlu0 %4074
        %v4076 = vsel %vm3585, %v4054, 0.0
        %4077 = vadd.xlane.f32.xlu0 %v4076
        %v4078 = vpop.xlane.xlu0 %4077
        %v4079 = vsel %vm3585, %v4055, 0.0
        %4080 = vadd.xlane.f32.xlu0 %v4079
        %v4081 = vpop.xlane.xlu0 %4080
        %v4082 = vsel %vm3585, %v4056, 0.0
        %4083 = vadd.xlane.f32.xlu0 %v4082
        %v4084 = vpop.xlane.xlu0 %4083
        %v4085 = vsel %vm3585, %v4057, 0.0
        %4086 = vadd.xlane.f32.xlu0 %v4085
        %v4087 = vpop.xlane.xlu0 %4086
        %v4088 = vsel %vm3585, %v4058, 0.0
        %4089 = vadd.xlane.f32.xlu0 %v4088
        %v4090 = vpop.xlane.xlu0 %4089
        %v4091 = vsel %vm3585, %v4059, 0.0
        %4092 = vadd.xlane.f32.xlu0 %v4091
        %v4093 = vpop.xlane.xlu0 %4092
        %v4094 = vsel %vm3585, %v4060, 0.0
        %4095 = vadd.xlane.f32.xlu0 %v4094
        %v4096 = vpop.xlane.xlu0 %4095
        %v4097 = vsel %vm3585, %v4061, 0.0
        %4098 = vadd.xlane.f32.xlu0 %v4097
        %v4099 = vpop.xlane.xlu0 %4098
        %v4100 = vsel %vm3585, %v4062, 0.0
        %4101 = vadd.xlane.f32.xlu0 %v4100
        %v4102 = vpop.xlane.xlu0 %4101
        %v4103 = vsel %vm3585, %v4063, 0.0
        %4104 = vadd.xlane.f32.xlu0 %v4103
        %v4105 = vpop.xlane.xlu0 %4104
        %v4106 = vsel %vm3585, %v4064, 0.0
        %4107 = vadd.xlane.f32.xlu0 %v4106
        %v4108 = vpop.xlane.xlu0 %4107
        %v4109 = vsel %vm3585, %v4065, 0.0
        %4110 = vadd.xlane.f32.xlu0 %v4109
        %v4111 = vpop.xlane.xlu0 %4110
        %v4112 = vsel %vm3585, %v4066, 0.0
        %4113 = vadd.xlane.f32.xlu0 %v4112
        %v4114 = vpop.xlane.xlu0 %4113
        %v4115 = vmax.f32 %v3941, %v4069
        %v4116 = vmax.f32 %v3944, %v4072
        %v4117 = vmax.f32 %v3947, %v4075
        %v4118 = vmax.f32 %v3950, %v4078
        %v4119 = vmax.f32 %v3953, %v4081
        %v4120 = vmax.f32 %v3956, %v4084
        %v4121 = vmax.f32 %v3959, %v4087
        %v4122 = vmax.f32 %v3962, %v4090
        %v4123 = vmax.f32 %v3965, %v4093
        %v4124 = vmax.f32 %v3968, %v4096
        %v4125 = vmax.f32 %v3971, %v4099
        %v4126 = vmax.f32 %v3974, %v4102
        %v4127 = vmax.f32 %v3977, %v4105
        %v4128 = vmax.f32 %v3980, %v4108
        %v4129 = vmax.f32 %v3983, %v4111
        %v4130 = vmax.f32 %v3986, %v4114
        %v4131 = vsub.f32 %v3941, %v4115
        %v4132 = vsub.f32 %v3944, %v4116
        %v4133 = vsub.f32 %v3947, %v4117
        %v4134 = vsub.f32 %v3950, %v4118
        %v4135 = vsub.f32 %v3953, %v4119
        %v4136 = vsub.f32 %v3956, %v4120
        %v4137 = vsub.f32 %v3959, %v4121
        %v4138 = vsub.f32 %v3962, %v4122
        %v4139 = vsub.f32 %v3965, %v4123
        %v4140 = vsub.f32 %v3968, %v4124
        %v4141 = vsub.f32 %v3971, %v4125
        %v4142 = vsub.f32 %v3974, %v4126
        %v4143 = vsub.f32 %v3977, %v4127
        %v4144 = vsub.f32 %v3980, %v4128
        %v4145 = vsub.f32 %v3983, %v4129
        %v4146 = vsub.f32 %v3986, %v4130
        %v4147 = vmul.f32 %v4131, 1.442695
        %v4148 = vpow.pop %v4147
        %v4149 = vmul.f32 %v4132, 1.442695
        %v4150 = vpow.pop %v4149
        %v4151 = vmul.f32 %v4133, 1.442695
        %v4152 = vpow.pop %v4151
        %v4153 = vmul.f32 %v4134, 1.442695
        %v4154 = vpow.pop %v4153
        %v4155 = vmul.f32 %v4135, 1.442695
        %v4156 = vpow.pop %v4155
        %v4157 = vmul.f32 %v4136, 1.442695
        %v4158 = vpow.pop %v4157
        %v4159 = vmul.f32 %v4137, 1.442695
        %v4160 = vpow.pop %v4159
        %v4161 = vmul.f32 %v4138, 1.442695
        %v4162 = vpow.pop %v4161
        %v4163 = vmul.f32 %v4139, 1.442695
        %v4164 = vpow.pop %v4163
        %v4165 = vmul.f32 %v4140, 1.442695
        %v4166 = vpow.pop %v4165
        %v4167 = vmul.f32 %v4141, 1.442695
        %v4168 = vpow.pop %v4167
        %v4169 = vmul.f32 %v4142, 1.442695
        %v4170 = vpow.pop %v4169
        %v4171 = vmul.f32 %v4143, 1.442695
        %v4172 = vpow.pop %v4171
        %v4173 = vmul.f32 %v4144, 1.442695
        %v4174 = vpow.pop %v4173
        %v4175 = vmul.f32 %v4145, 1.442695
        %v4176 = vpow.pop %v4175
        %v4177 = vmul.f32 %v4146, 1.442695
        %v4178 = vpow.pop %v4177
        %v4179 = vsub.f32 %v4069, %v4115
        %v4180 = vsub.f32 %v4072, %v4116
        %v4181 = vsub.f32 %v4075, %v4117
        %v4182 = vsub.f32 %v4078, %v4118
        %v4183 = vsub.f32 %v4081, %v4119
        %v4184 = vsub.f32 %v4084, %v4120
        %v4185 = vsub.f32 %v4087, %v4121
        %v4186 = vsub.f32 %v4090, %v4122
        %v4187 = vsub.f32 %v4093, %v4123
        %v4188 = vsub.f32 %v4096, %v4124
        %v4189 = vsub.f32 %v4099, %v4125
        %v4190 = vsub.f32 %v4102, %v4126
        %v4191 = vsub.f32 %v4105, %v4127
        %v4192 = vsub.f32 %v4108, %v4128
        %v4193 = vsub.f32 %v4111, %v4129
        %v4194 = vsub.f32 %v4114, %v4130
        %v4195 = vmul.f32 %v4179, 1.442695
        %v4196 = vpow.pop %v4195
        %v4197 = vmul.f32 %v4180, 1.442695
        %v4198 = vpow.pop %v4197
        %v4199 = vmul.f32 %v4181, 1.442695
        %v4200 = vpow.pop %v4199
        %v4201 = vmul.f32 %v4182, 1.442695
        %v4202 = vpow.pop %v4201
        %v4203 = vmul.f32 %v4183, 1.442695
        %v4204 = vpow.pop %v4203
        %v4205 = vmul.f32 %v4184, 1.442695
        %v4206 = vpow.pop %v4205
        %v4207 = vmul.f32 %v4185, 1.442695
        %v4208 = vpow.pop %v4207
        %v4209 = vmul.f32 %v4186, 1.442695
        %v4210 = vpow.pop %v4209
        %v4211 = vmul.f32 %v4187, 1.442695
        %v4212 = vpow.pop %v4211
        %v4213 = vmul.f32 %v4188, 1.442695
        %v4214 = vpow.pop %v4213
        %v4215 = vmul.f32 %v4189, 1.442695
        %v4216 = vpow.pop %v4215
        %v4217 = vmul.f32 %v4190, 1.442695
        %v4218 = vpow.pop %v4217
        %v4219 = vmul.f32 %v4191, 1.442695
        %v4220 = vpow.pop %v4219
        %v4221 = vmul.f32 %v4192, 1.442695
        %v4222 = vpow.pop %v4221
        %v4223 = vmul.f32 %v4193, 1.442695
        %v4224 = vpow.pop %v4223
        %v4225 = vmul.f32 %v4194, 1.442695
        %v4226 = vpow.pop %v4225
        %v4227 = vadd.f32 %v4148, %v4196
        %v4228 = vadd.f32 %v4150, %v4198
        %v4229 = vadd.f32 %v4152, %v4200
        %v4230 = vadd.f32 %v4154, %v4202
        %v4231 = vadd.f32 %v4156, %v4204
        %v4232 = vadd.f32 %v4158, %v4206
        %v4233 = vadd.f32 %v4160, %v4208
        %v4234 = vadd.f32 %v4162, %v4210
        %v4235 = vadd.f32 %v4164, %v4212
        %v4236 = vadd.f32 %v4166, %v4214
        %v4237 = vadd.f32 %v4168, %v4216
        %v4238 = vadd.f32 %v4170, %v4218
        %v4239 = vadd.f32 %v4172, %v4220
        %v4240 = vadd.f32 %v4174, %v4222
        %v4241 = vadd.f32 %v4176, %v4224
        %v4242 = vadd.f32 %v4178, %v4226
        %v4243 = vrcp.pop %v4227
        %v4244 = vmul.f32 1.0, %v4243
        %v4245 = vrcp.pop %v4228
        %v4246 = vmul.f32 1.0, %v4245
        %v4247 = vrcp.pop %v4229
        %v4248 = vmul.f32 1.0, %v4247
        %v4249 = vrcp.pop %v4230
        %v4250 = vmul.f32 1.0, %v4249
        %v4251 = vrcp.pop %v4231
        %v4252 = vmul.f32 1.0, %v4251
        %v4253 = vrcp.pop %v4232
        %v4254 = vmul.f32 1.0, %v4253
        %v4255 = vrcp.pop %v4233
        %v4256 = vmul.f32 1.0, %v4255
        %v4257 = vrcp.pop %v4234
        %v4258 = vmul.f32 1.0, %v4257
        %v4259 = vrcp.pop %v4235
        %v4260 = vmul.f32 1.0, %v4259
        %v4261 = vrcp.pop %v4236
        %v4262 = vmul.f32 1.0, %v4261
        %v4263 = vrcp.pop %v4237
        %v4264 = vmul.f32 1.0, %v4263
        %v4265 = vrcp.pop %v4238
        %v4266 = vmul.f32 1.0, %v4265
        %v4267 = vrcp.pop %v4239
        %v4268 = vmul.f32 1.0, %v4267
        %v4269 = vrcp.pop %v4240
        %v4270 = vmul.f32 1.0, %v4269
        %v4271 = vrcp.pop %v4241
        %v4272 = vmul.f32 1.0, %v4271
        %v4273 = vrcp.pop %v4242
        %v4274 = vmul.f32 1.0, %v4273
        %v4275 = vmul.f32 %v4148, %v4244
        %v4276 = vmul.f32 %v4150, %v4246
        %v4277 = vmul.f32 %v4152, %v4248
        %v4278 = vmul.f32 %v4154, %v4250
        %v4279 = vmul.f32 %v4156, %v4252
        %v4280 = vmul.f32 %v4158, %v4254
        %v4281 = vmul.f32 %v4160, %v4256
        %v4282 = vmul.f32 %v4162, %v4258
        %v4283 = vmul.f32 %v4164, %v4260
        %v4284 = vmul.f32 %v4166, %v4262
        %v4285 = vmul.f32 %v4168, %v4264
        %v4286 = vmul.f32 %v4170, %v4266
        %v4287 = vmul.f32 %v4172, %v4268
        %v4288 = vmul.f32 %v4174, %v4270
        %v4289 = vmul.f32 %v4176, %v4272
        %v4290 = vmul.f32 %v4178, %v4274
        %v4291 = vmul.f32 %v4275, %v3669
        %v4292 = vmul.f32 %v4276, %v3672
        %v4293 = vmul.f32 %v4277, %v3677
        %v4294 = vmul.f32 %v4278, %v3680
        %v4295 = vmul.f32 %v4279, %v3685
        %v4296 = vmul.f32 %v4280, %v3688
        %v4297 = vmul.f32 %v4281, %v3693
        %v4298 = vmul.f32 %v4282, %v3696
        %v4299 = vmul.f32 %v4283, %v3701
        %v4300 = vmul.f32 %v4284, %v3704
        %v4301 = vmul.f32 %v4285, %v3709
        %v4302 = vmul.f32 %v4286, %v3712
        %v4303 = vmul.f32 %v4287, %v3717
        %v4304 = vmul.f32 %v4288, %v3720
        %v4305 = vmul.f32 %v4289, %v3725
        %v4306 = vmul.f32 %v4290, %v3728
        %v4307 = vmul.f32 %v4196, %v4244
        %v4308 = vmul.f32 %v4198, %v4246
        %v4309 = vmul.f32 %v4200, %v4248
        %v4310 = vmul.f32 %v4202, %v4250
        %v4311 = vmul.f32 %v4204, %v4252
        %v4312 = vmul.f32 %v4206, %v4254
        %v4313 = vmul.f32 %v4208, %v4256
        %v4314 = vmul.f32 %v4210, %v4258
        %v4315 = vmul.f32 %v4212, %v4260
        %v4316 = vmul.f32 %v4214, %v4262
        %v4317 = vmul.f32 %v4216, %v4264
        %v4318 = vmul.f32 %v4218, %v4266
        %v4319 = vmul.f32 %v4220, %v4268
        %v4320 = vmul.f32 %v4222, %v4270
        %v4321 = vmul.f32 %v4224, %v4272
        %v4322 = vmul.f32 %v4226, %v4274
        %v4323 = vmul.f32 %v4307, %v3733
        %v4324 = vmul.f32 %v4308, %v3736
        %v4325 = vmul.f32 %v4309, %v3741
        %v4326 = vmul.f32 %v4310, %v3744
        %v4327 = vmul.f32 %v4311, %v3749
        %v4328 = vmul.f32 %v4312, %v3752
        %v4329 = vmul.f32 %v4313, %v3757
        %v4330 = vmul.f32 %v4314, %v3760
        %v4331 = vmul.f32 %v4315, %v3765
        %v4332 = vmul.f32 %v4316, %v3768
        %v4333 = vmul.f32 %v4317, %v3773
        %v4334 = vmul.f32 %v4318, %v3776
        %v4335 = vmul.f32 %v4319, %v3781
        %v4336 = vmul.f32 %v4320, %v3784
        %v4337 = vmul.f32 %v4321, %v3789
        %v4338 = vmul.f32 %v4322, %v3792
        %v4339 = vadd.f32 %v4291, %v4323
        %v4340 = vadd.f32 %v4292, %v4324
        %v4341 = vadd.f32 %v4293, %v4325
        %v4342 = vadd.f32 %v4294, %v4326
        %v4343 = vadd.f32 %v4295, %v4327
        %v4344 = vadd.f32 %v4296, %v4328
        %v4345 = vadd.f32 %v4297, %v4329
        %v4346 = vadd.f32 %v4298, %v4330
        %v4347 = vadd.f32 %v4299, %v4331
        %v4348 = vadd.f32 %v4300, %v4332
        %v4349 = vadd.f32 %v4301, %v4333
        %v4350 = vadd.f32 %v4302, %v4334
        %v4351 = vadd.f32 %v4303, %v4335
        %v4352 = vadd.f32 %v4304, %v4336
        %v4353 = vadd.f32 %v4305, %v4337
        %v4354 = vadd.f32 %v4306, %v4338
        %v4355 = vunpack.c.l.bf16 %v3518
        %v4356 = vunpack.c.h.bf16 %v3518
        %v4357 = vunpack.c.l.bf16 %v3522
        %v4358 = vunpack.c.h.bf16 %v3522
        %v4359 = vunpack.c.l.bf16 %v3526
        %v4360 = vunpack.c.h.bf16 %v3526
        %v4361 = vunpack.c.l.bf16 %v3530
        %v4362 = vunpack.c.h.bf16 %v3530
        %v4363 = vunpack.c.l.bf16 %v3534
        %v4364 = vunpack.c.h.bf16 %v3534
        %v4365 = vunpack.c.l.bf16 %v3538
        %v4366 = vunpack.c.h.bf16 %v3538
        %v4367 = vunpack.c.l.bf16 %v3542
        %v4368 = vunpack.c.h.bf16 %v3542
        %v4369 = vunpack.c.l.bf16 %v3546
        %v4370 = vunpack.c.h.bf16 %v3546
        %4387 = vrot.lane.b32.xlu0 %v4339, 64
        %v4388 = vpop.permute.xlu0 %4387
        %4389 = vrot.lane.b32.xlu0 %v4340, 64
        %v4390 = vpop.permute.xlu0 %4389
        %4391 = vrot.lane.b32.xlu0 %v4341, 64
        %v4392 = vpop.permute.xlu0 %4391
        %4393 = vrot.lane.b32.xlu0 %v4342, 64
        %v4394 = vpop.permute.xlu0 %4393
        %4395 = vrot.lane.b32.xlu0 %v4343, 64
        %v4396 = vpop.permute.xlu0 %4395
        %4397 = vrot.lane.b32.xlu0 %v4344, 64
        %v4398 = vpop.permute.xlu0 %4397
        %4399 = vrot.lane.b32.xlu0 %v4345, 64
        %v4400 = vpop.permute.xlu0 %4399
        %4401 = vrot.lane.b32.xlu0 %v4346, 64
        %v4402 = vpop.permute.xlu0 %4401
        %4403 = vrot.lane.b32.xlu0 %v4347, 64
        %v4404 = vpop.permute.xlu0 %4403
        %4405 = vrot.lane.b32.xlu0 %v4348, 64
        %v4406 = vpop.permute.xlu0 %4405
        %4407 = vrot.lane.b32.xlu0 %v4349, 64
        %v4408 = vpop.permute.xlu0 %4407
        %4409 = vrot.lane.b32.xlu0 %v4350, 64
        %v4410 = vpop.permute.xlu0 %4409
        %4411 = vrot.lane.b32.xlu0 %v4351, 64
        %v4412 = vpop.permute.xlu0 %4411
        %4413 = vrot.lane.b32.xlu0 %v4352, 64
        %v4414 = vpop.permute.xlu0 %4413
        %4415 = vrot.lane.b32.xlu0 %v4353, 64
        %v4416 = vpop.permute.xlu0 %4415
        %4417 = vrot.lane.b32.xlu0 %v4354, 64
        %v4418 = vpop.permute.xlu0 %4417
        %v4435 = vadd.f32 %v4355, %v4388
        %v4436 = vadd.f32 %v4356, %v4390
        %v4437 = vadd.f32 %v4357, %v4392
        %v4438 = vadd.f32 %v4358, %v4394
        %v4439 = vadd.f32 %v4359, %v4396
        %v4440 = vadd.f32 %v4360, %v4398
        %v4441 = vadd.f32 %v4361, %v4400
        %v4442 = vadd.f32 %v4362, %v4402
        %v4443 = vadd.f32 %v4363, %v4404
        %v4444 = vadd.f32 %v4364, %v4406
        %v4445 = vadd.f32 %v4365, %v4408
        %v4446 = vadd.f32 %v4366, %v4410
        %v4447 = vadd.f32 %v4367, %v4412
        %v4448 = vadd.f32 %v4368, %v4414
        %v4449 = vadd.f32 %v4369, %v4416
        %v4450 = vadd.f32 %v4370, %v4418
        %v4451 = vpack.c.bf16 %v4436, %v4435
        %v4452 = vpack.c.bf16 %v4438, %v4437
        %v4453 = vpack.c.bf16 %v4440, %v4439
        %v4454 = vpack.c.bf16 %v4442, %v4441
        %v4455 = vpack.c.bf16 %v4444, %v4443
        %v4456 = vpack.c.bf16 %v4446, %v4445
        %v4457 = vpack.c.bf16 %v4448, %v4447
        %v4458 = vpack.c.bf16 %v4450, %v4449
        %v4459 = vld [vmem:[%s4 + $0x60] sm:$0xf]
        %v4460 = vld [vmem:[%s4 + $0x64] sm:$0xf]
        %v4461 = vld [vmem:[%s4 + $0x68] sm:$0xf]
        %v4462 = vld [vmem:[%s4 + $0x6c] sm:$0xf]
        %v4463 = vld [vmem:[%s4 + $0x70] sm:$0xf]
        %v4464 = vld [vmem:[%s4 + $0x74] sm:$0xf]
        %v4465 = vld [vmem:[%s4 + $0x78] sm:$0xf]
        %v4466 = vld [vmem:[%s4 + $0x7c] sm:$0xf]
        %v4467 = vld [vmem:[%s5 + $0x20] sm:$0x1]
        %v4468 = vlaneseq
        %v4469 = vshrl.u32 %v4468, 7
        %v4470 = vsub.s32 0, %v4469
        %v4471 = vrot.slane %v4467, %v4470
        %v4480 = vunpack.c.l.b16 %v4459
        %v4481 = vunpack.c.l.b16 %v4460
        %v4482 = vunpack.c.l.b16 %v4461
        %v4483 = vunpack.c.l.b16 %v4462
        %v4484 = vunpack.c.l.b16 %v4463
        %v4485 = vunpack.c.l.b16 %v4464
        %v4486 = vunpack.c.l.b16 %v4465
        %v4487 = vunpack.c.l.b16 %v4466
        %v4488 = vpack.c.b16 %v4481, %v4480
        %v4489 = vpack.c.b16 %v4483, %v4482
        %v4490 = vpack.c.b16 %v4485, %v4484
        %v4491 = vpack.c.b16 %v4487, %v4486
        %v4497 = vsel %vm3585, %v4451, 0
        %v4500 = vsel %vm3585, %v4452, 0
        %v4503 = vsel %vm3585, %v4453, 0
        %v4506 = vsel %vm3585, %v4454, 0
        %v4509 = vsel %vm3585, %v4455, 0
        %v4512 = vsel %vm3585, %v4456, 0
        %v4515 = vsel %vm3585, %v4457, 0
        %v4518 = vsel %vm3585, %v4458, 0
        %4520 = vmatprep.subr.bf16.mxu0 0
        %4521 = vmatpush1.bf16.msra.mxu0 %v4488
        %4522 = vmatprep.subr.bf16.mxu0 0
        %4523 = vmatpush1.bf16.msra.mxu0 %v4489
        %4524 = vmatprep.subr.bf16.mxu0 0
        %4525 = vmatpush1.bf16.msra.mxu0 %v4490
        %4526 = vmatprep.subr.bf16.mxu0 0
        %4527 = vmatpush1.bf16.msra.mxu0 %v4491
        %4528 = vmatprep.subr.bf16.mxu0 0
        %4529 = vmatpush1.bf16.msra.mxu0 0
        %4530 = vmatprep.subr.bf16.mxu0 0
        %4531 = vmatpush1.bf16.msra.mxu0 0
        %4532 = vmatprep.subr.bf16.mxu0 0
        %4533 = vmatpush1.bf16.msra.mxu0 0
        %4534 = vmatprep.subr.bf16.mxu0 0
        %4535 = vmatpush1.bf16.msra.mxu0 0
        %4536 = vmatprep.subr.bf16.mxu0 0
        %4537 = vmatpush1.bf16.msra.mxu0 0
        %4538 = vmatprep.subr.bf16.mxu0 0
        %4539 = vmatpush1.bf16.msra.mxu0 0
        %4540 = vmatprep.subr.bf16.mxu0 0
        %4541 = vmatpush1.bf16.msra.mxu0 0
        %4542 = vmatprep.subr.bf16.mxu0 0
        %4543 = vmatpush1.bf16.msra.mxu0 0
        %4544 = vmatprep.subr.bf16.mxu0 0
        %4545 = vmatpush1.bf16.msra.mxu0 0
        %4546 = vmatprep.subr.bf16.mxu0 0
        %4547 = vmatpush1.bf16.msra.mxu0 0
        %4548 = vmatprep.subr.bf16.mxu0 0
        %4549 = vmatpush1.bf16.msra.mxu0 0
        %4550 = vmatprep.subr.bf16.mxu0 0
        %4551 = vmatpush1.bf16.msra.mxu0 0
        %4552 = vmatprep.mubr.bf16.mxu0 0
        %4553 = vmatmul.mubr.bf16.gmra.mrb[0].mxu0 %v4497
        %v4554 = vpop.f32.mrb[0].mxu0
        %v4555 = vadd.f32 %v4471, %v4554
        %v4556 = vpop.f32.mrb[0].mxu0
        %v4557 = vpop.f32.mrb[0].mxu0
        %v4558 = vadd.f32 %v4471, %v4557
        %v4559 = vpop.f32.mrb[0].mxu0
        %4560 = vmatprep.mubr.bf16.mxu0 0
        %4561 = vmatmul.mubr.bf16.gmra.mrb[0].mxu0 %v4500
        %v4562 = vpop.f32.mrb[0].mxu0
        %v4563 = vadd.f32 %v4471, %v4562
        %v4564 = vpop.f32.mrb[0].mxu0
        %v4565 = vpop.f32.mrb[0].mxu0
        %v4566 = vadd.f32 %v4471, %v4565
        %v4567 = vpop.f32.mrb[0].mxu0
        %4568 = vmatprep.mubr.bf16.mxu0 0
        %4569 = vmatmul.mubr.bf16.gmra.mrb[0].mxu0 %v4503
        %v4570 = vpop.f32.mrb[0].mxu0
        %v4571 = vadd.f32 %v4471, %v4570
        %v4572 = vpop.f32.mrb[0].mxu0
        %v4573 = vpop.f32.mrb[0].mxu0
        %v4574 = vadd.f32 %v4471, %v4573
        %v4575 = vpop.f32.mrb[0].mxu0
        %4576 = vmatprep.mubr.bf16.mxu0 0
        %4577 = vmatmul.mubr.bf16.gmra.mrb[0].mxu0 %v4506
        %v4578 = vpop.f32.mrb[0].mxu0
        %v4579 = vadd.f32 %v4471, %v4578
        %v4580 = vpop.f32.mrb[0].mxu0
        %v4581 = vpop.f32.mrb[0].mxu0
        %v4582 = vadd.f32 %v4471, %v4581
        %v4583 = vpop.f32.mrb[0].mxu0
        %4584 = vmatprep.mubr.bf16.mxu0 0
        %4585 = vmatmul.mubr.bf16.gmra.mrb[0].mxu0 %v4509
        %v4586 = vpop.f32.mrb[0].mxu0
        %v4587 = vadd.f32 %v4471, %v4586
        %v4588 = vpop.f32.mrb[0].mxu0
        %v4589 = vpop.f32.mrb[0].mxu0
        %v4590 = vadd.f32 %v4471, %v4589
        %v4591 = vpop.f32.mrb[0].mxu0
        %4592 = vmatprep.mubr.bf16.mxu0 0
        %4593 = vmatmul.mubr.bf16.gmra.mrb[0].mxu0 %v4512
        %v4594 = vpop.f32.mrb[0].mxu0
        %v4595 = vadd.f32 %v4471, %v4594
        %v4596 = vpop.f32.mrb[0].mxu0
        %v4597 = vpop.f32.mrb[0].mxu0
        %v4598 = vadd.f32 %v4471, %v4597
        %v4599 = vpop.f32.mrb[0].mxu0
        %4600 = vmatprep.mubr.bf16.mxu0 0
        %4601 = vmatmul.mubr.bf16.gmra.mrb[0].mxu0 %v4515
        %v4602 = vpop.f32.mrb[0].mxu0
        %v4603 = vadd.f32 %v4471, %v4602
        %v4604 = vpop.f32.mrb[0].mxu0
        %v4605 = vpop.f32.mrb[0].mxu0
        %v4606 = vadd.f32 %v4471, %v4605
        %v4607 = vpop.f32.mrb[0].mxu0
        %4608 = vmatprep.mubr.bf16.mxu0 0
        %4609 = vmatmul.mubr.bf16.gmra.mrb[0].mxu0 %v4518
        %v4610 = vpop.f32.mrb[0].mxu0
        %v4611 = vadd.f32 %v4471, %v4610
        %v4612 = vpop.f32.mrb[0].mxu0
        %v4613 = vpop.f32.mrb[0].mxu0
        %v4614 = vadd.f32 %v4471, %v4613
        %v4615 = vpop.f32.mrb[0].mxu0
        %4616 = vdwg.mxu0
        %v4617 = vmax.f32 %v4555, 0.0
        %v4618 = vmax.f32 %v4558, 0.0
        %v4619 = vmax.f32 %v4563, 0.0
        %v4620 = vmax.f32 %v4566, 0.0
        %v4621 = vmax.f32 %v4571, 0.0
        %v4622 = vmax.f32 %v4574, 0.0
        %v4623 = vmax.f32 %v4579, 0.0
        %v4624 = vmax.f32 %v4582, 0.0
        %v4625 = vmax.f32 %v4587, 0.0
        %v4626 = vmax.f32 %v4590, 0.0
        %v4627 = vmax.f32 %v4595, 0.0
        %v4628 = vmax.f32 %v4598, 0.0
        %v4629 = vmax.f32 %v4603, 0.0
        %v4630 = vmax.f32 %v4606, 0.0
        %v4631 = vmax.f32 %v4611, 0.0
        %v4632 = vmax.f32 %v4614, 0.0
        %v4633 = vpack.c.bf16 %v4618, %v4617
        %v4634 = vpack.c.bf16 %v4620, %v4619
        %v4635 = vpack.c.bf16 %v4622, %v4621
        %v4636 = vpack.c.bf16 %v4624, %v4623
        %v4637 = vpack.c.bf16 %v4626, %v4625
        %v4638 = vpack.c.bf16 %v4628, %v4627
        %v4639 = vpack.c.bf16 %v4630, %v4629
        %v4640 = vpack.c.bf16 %v4632, %v4631
        %v4641 = vld [vmem:[%s4 + $0x80] sm:$0xf]
        %v4642 = vld [vmem:[%s4 + $0x84] sm:$0xf]
        %v4643 = vld [vmem:[%s4 + $0x88] sm:$0xf]
        %v4644 = vld [vmem:[%s4 + $0x8c] sm:$0xf]
        %v4645 = vld [vmem:[%s5 + $0x28] sm:$0x1]
        %v4646 = vlaneseq
        %v4647 = vshrl.u32 %v4646, 7
        %v4648 = vsub.s32 0, %v4647
        %v4649 = vrot.slane %v4645, %v4648
        %v4654 = vunpack.c.l.b16 %v4641
        %v4655 = vunpack.c.l.b16 %v4642
        %v4656 = vunpack.c.l.b16 %v4643
        %v4657 = vunpack.c.l.b16 %v4644
        %v4658 = vpack.c.b16 %v4655, %v4654
        %v4659 = vpack.c.b16 %v4657, %v4656
        %v4663 = vsel %vm2060, %v4633, 0
        %v4666 = vsel %vm2060, %v4634, 0
        %v4669 = vsel %vm2060, %v4635, 0
        %v4672 = vsel %vm2060, %v4636, 0
        %v4675 = vsel %vm2060, %v4637, 0
        %v4678 = vsel %vm2060, %v4638, 0
        %v4681 = vsel %vm2060, %v4639, 0
        %v4684 = vsel %vm2060, %v4640, 0
        %4686 = vmatprep.subr.bf16.mxu0 0
        %4687 = vmatpush1.bf16.msra.mxu0 %v4658
        %4688 = vmatprep.subr.bf16.mxu0 0
        %4689 = vmatpush1.bf16.msra.mxu0 %v4659
        %4690 = vmatprep.subr.bf16.mxu0 0
        %4691 = vmatpush1.bf16.msra.mxu0 0
        %4692 = vmatprep.subr.bf16.mxu0 0
        %4693 = vmatpush1.bf16.msra.mxu0 0
        %4694 = vmatprep.subr.bf16.mxu0 0
        %4695 = vmatpush1.bf16.msra.mxu0 0
        %4696 = vmatprep.subr.bf16.mxu0 0
        %4697 = vmatpush1.bf16.msra.mxu0 0
        %4698 = vmatprep.subr.bf16.mxu0 0
        %4699 = vmatpush1.bf16.msra.mxu0 0
        %4700 = vmatprep.subr.bf16.mxu0 0
        %4701 = vmatpush1.bf16.msra.mxu0 0
        %4702 = vmatprep.subr.bf16.mxu0 0
        %4703 = vmatpush1.bf16.msra.mxu0 0
        %4704 = vmatprep.subr.bf16.mxu0 0
        %4705 = vmatpush1.bf16.msra.mxu0 0
        %4706 = vmatprep.subr.bf16.mxu0 0
        %4707 = vmatpush1.bf16.msra.mxu0 0
        %4708 = vmatprep.subr.bf16.mxu0 0
        %4709 = vmatpush1.bf16.msra.mxu0 0
        %4710 = vmatprep.subr.bf16.mxu0 0
        %4711 = vmatpush1.bf16.msra.mxu0 0
        %4712 = vmatprep.subr.bf16.mxu0 0
        %4713 = vmatpush1.bf16.msra.mxu0 0
        %4714 = vmatprep.subr.bf16.mxu0 0
        %4715 = vmatpush1.bf16.msra.mxu0 0
        %4716 = vmatprep.subr.bf16.mxu0 0
        %4717 = vmatpush1.bf16.msra.mxu0 0
        %4718 = vmatprep.mubr.bf16.mxu0 0
        %4719 = vmatmul.mubr.bf16.gmra.mrb[0].mxu0 %v4663
        %v4720 = vpop.f32.mrb[0].mxu0
        %v4721 = vadd.f32 %v4649, %v4720
        %v4722 = vpop.f32.mrb[0].mxu0
        %v4723 = vpop.f32.mrb[0].mxu0
        %v4724 = vadd.f32 %v4649, %v4723
        %v4725 = vpop.f32.mrb[0].mxu0
        %4726 = vmatprep.mubr.bf16.mxu0 0
        %4727 = vmatmul.mubr.bf16.gmra.mrb[0].mxu0 %v4666
        %v4728 = vpop.f32.mrb[0].mxu0
        %v4729 = vadd.f32 %v4649, %v4728
        %v4730 = vpop.f32.mrb[0].mxu0
        %v4731 = vpop.f32.mrb[0].mxu0
        %v4732 = vadd.f32 %v4649, %v4731
        %v4733 = vpop.f32.mrb[0].mxu0
        %4734 = vmatprep.mubr.bf16.mxu0 0
        %4735 = vmatmul.mubr.bf16.gmra.mrb[0].mxu0 %v4669
        %v4736 = vpop.f32.mrb[0].mxu0
        %v4737 = vadd.f32 %v4649, %v4736
        %v4738 = vpop.f32.mrb[0].mxu0
        %v4739 = vpop.f32.mrb[0].mxu0
        %v4740 = vadd.f32 %v4649, %v4739
        %v4741 = vpop.f32.mrb[0].mxu0
        %4742 = vmatprep.mubr.bf16.mxu0 0
        %4743 = vmatmul.mubr.bf16.gmra.mrb[0].mxu0 %v4672
        %v4744 = vpop.f32.mrb[0].mxu0
        %v4745 = vadd.f32 %v4649, %v4744
        %v4746 = vpop.f32.mrb[0].mxu0
        %v4747 = vpop.f32.mrb[0].mxu0
        %v4748 = vadd.f32 %v4649, %v4747
        %v4749 = vpop.f32.mrb[0].mxu0
        %4750 = vmatprep.mubr.bf16.mxu0 0
        %4751 = vmatmul.mubr.bf16.gmra.mrb[0].mxu0 %v4675
        %v4752 = vpop.f32.mrb[0].mxu0
        %v4753 = vadd.f32 %v4649, %v4752
        %v4754 = vpop.f32.mrb[0].mxu0
        %v4755 = vpop.f32.mrb[0].mxu0
        %v4756 = vadd.f32 %v4649, %v4755
        %v4757 = vpop.f32.mrb[0].mxu0
        %4758 = vmatprep.mubr.bf16.mxu0 0
        %4759 = vmatmul.mubr.bf16.gmra.mrb[0].mxu0 %v4678
        %v4760 = vpop.f32.mrb[0].mxu0
        %v4761 = vadd.f32 %v4649, %v4760
        %v4762 = vpop.f32.mrb[0].mxu0
        %v4763 = vpop.f32.mrb[0].mxu0
        %v4764 = vadd.f32 %v4649, %v4763
        %v4765 = vpop.f32.mrb[0].mxu0
        %4766 = vmatprep.mubr.bf16.mxu0 0
        %4767 = vmatmul.mubr.bf16.gmra.mrb[0].mxu0 %v4681
        %v4768 = vpop.f32.mrb[0].mxu0
        %v4769 = vadd.f32 %v4649, %v4768
        %v4770 = vpop.f32.mrb[0].mxu0
        %v4771 = vpop.f32.mrb[0].mxu0
        %v4772 = vadd.f32 %v4649, %v4771
        %v4773 = vpop.f32.mrb[0].mxu0
        %4774 = vmatprep.mubr.bf16.mxu0 0
        %4775 = vmatmul.mubr.bf16.gmra.mrb[0].mxu0 %v4684
        %v4776 = vpop.f32.mrb[0].mxu0
        %v4777 = vadd.f32 %v4649, %v4776
        %v4778 = vpop.f32.mrb[0].mxu0
        %v4779 = vpop.f32.mrb[0].mxu0
        %v4780 = vadd.f32 %v4649, %v4779
        %v4781 = vpop.f32.mrb[0].mxu0
        %4782 = vdwg.mxu0
        %v4783 = vpack.c.bf16 %v4724, %v4721
        %v4784 = vpack.c.bf16 %v4732, %v4729
        %v4785 = vpack.c.bf16 %v4740, %v4737
        %v4786 = vpack.c.bf16 %v4748, %v4745
        %v4787 = vpack.c.bf16 %v4756, %v4753
        %v4788 = vpack.c.bf16 %v4764, %v4761
        %v4789 = vpack.c.bf16 %v4772, %v4769
        %v4790 = vpack.c.bf16 %v4780, %v4777
        %v4791 = vld [vmem:[%s1002] sm:$0xf]
        %v4792 = vld [vmem:[%s1002 + $0x4] sm:$0xf]
        %v4793 = vld [vmem:[%s1002 + $0x8] sm:$0xf]
        %v4794 = vld [vmem:[%s1002 + $0xc] sm:$0xf]
        %v4795 = vld [vmem:[%s1002 + $0x10] sm:$0xf]
        %v4796 = vld [vmem:[%s1002 + $0x14] sm:$0xf]
        %v4797 = vld [vmem:[%s1002 + $0x18] sm:$0xf]
        %v4798 = vld [vmem:[%s1002 + $0x1c] sm:$0xf]
        %v4799 = vld [vmem:[%s1002 + $0x20] sm:$0xf]
        %v4800 = vld [vmem:[%s1002 + $0x24] sm:$0xf]
        %v4801 = vld [vmem:[%s1002 + $0x28] sm:$0xf]
        %v4802 = vld [vmem:[%s1002 + $0x2c] sm:$0xf]
        %v4803 = vld [vmem:[%s1002 + $0x30] sm:$0xf]
        %v4804 = vld [vmem:[%s1002 + $0x34] sm:$0xf]
        %v4805 = vld [vmem:[%s1002 + $0x38] sm:$0xf]
        %v4806 = vld [vmem:[%s1002 + $0x3c] sm:$0xf]
        %v4823 = vunpack.c.l.b16 %v4791
        %v4824 = vunpack.c.l.b16 %v4792
        %v4825 = vunpack.c.l.b16 %v4793
        %v4826 = vunpack.c.l.b16 %v4794
        %v4827 = vunpack.c.l.b16 %v4795
        %v4828 = vunpack.c.l.b16 %v4796
        %v4829 = vunpack.c.l.b16 %v4797
        %v4830 = vunpack.c.l.b16 %v4798
        %v4831 = vunpack.c.l.b16 %v4799
        %v4832 = vunpack.c.l.b16 %v4800
        %v4833 = vunpack.c.l.b16 %v4801
        %v4834 = vunpack.c.l.b16 %v4802
        %v4835 = vunpack.c.l.b16 %v4803
        %v4836 = vunpack.c.l.b16 %v4804
        %v4837 = vunpack.c.l.b16 %v4805
        %v4838 = vunpack.c.l.b16 %v4806
        %v4839 = vpack.c.b16 %v4824, %v4823
        %v4840 = vpack.c.b16 %v4826, %v4825
        %v4841 = vpack.c.b16 %v4828, %v4827
        %v4842 = vpack.c.b16 %v4830, %v4829
        %v4843 = vpack.c.b16 %v4832, %v4831
        %v4844 = vpack.c.b16 %v4834, %v4833
        %v4845 = vpack.c.b16 %v4836, %v4835
        %v4846 = vpack.c.b16 %v4838, %v4837
        %4847 = vrot.lane.b32.xlu0 %v4839, 32
        %v4848 = vpop.permute.xlu0 %4847
        %4849 = vrot.lane.b32.xlu0 %v4840, 32
        %v4850 = vpop.permute.xlu0 %4849
        %4851 = vrot.lane.b32.xlu0 %v4841, 32
        %v4852 = vpop.permute.xlu0 %4851
        %4853 = vrot.lane.b32.xlu0 %v4842, 32
        %v4854 = vpop.permute.xlu0 %4853
        %4855 = vrot.lane.b32.xlu0 %v4843, 32
        %v4856 = vpop.permute.xlu0 %4855
        %4857 = vrot.lane.b32.xlu0 %v4844, 32
        %v4858 = vpop.permute.xlu0 %4857
        %4859 = vrot.lane.b32.xlu0 %v4845, 32
        %v4860 = vpop.permute.xlu0 %4859
        %4861 = vrot.lane.b32.xlu0 %v4846, 32
        %v4862 = vpop.permute.xlu0 %4861
        %v4865 = vsel %vm2060, %v4783, %v4848
        %v4868 = vsel %vm2060, %v4784, %v4850
        %v4871 = vsel %vm2060, %v4785, %v4852
        %v4874 = vsel %vm2060, %v4786, %v4854
        %v4877 = vsel %vm2060, %v4787, %v4856
        %v4880 = vsel %vm2060, %v4788, %v4858
        %v4883 = vsel %vm2060, %v4789, %v4860
        %v4886 = vsel %vm2060, %v4790, %v4862
        %v4887 = vld [vmem:[%s4 + $0x90] sm:$0xf]
        %v4888 = vld [vmem:[%s4 + $0x94] sm:$0xf]
        %v4889 = vld [vmem:[%s4 + $0x98] sm:$0xf]
        %v4890 = vld [vmem:[%s4 + $0x9c] sm:$0xf]
        %v4891 = vld [vmem:[%s4 + $0xa0] sm:$0xf]
        %v4892 = vld [vmem:[%s4 + $0xa4] sm:$0x3]
        %v4893 = vld [vmem:[%s5 + $0x30] sm:$0x1]
        %v4894 = vlaneseq
        %v4895 = vshrl.u32 %v4894, 7
        %v4896 = vsub.s32 0, %v4895
        %v4897 = vrot.slane %v4893, %v4896
        %v4904 = vunpack.c.l.b16 %v4887
        %v4905 = vunpack.c.l.b16 %v4888
        %v4906 = vunpack.c.l.b16 %v4889
        %v4907 = vunpack.c.l.b16 %v4890
        %v4908 = vunpack.c.l.b16 %v4891
        %v4909 = vunpack.c.l.b16 %v4892
        %v4910 = vpack.c.b16 %v4905, %v4904
        %v4911 = vpack.c.b16 %v4907, %v4906
        %v4912 = vpack.c.b16 %v4909, %v4908
        %vm4915 = vcmask 359424
        %v4916 = vsel %vm4915, %v4865, 0
        %v4918 = vsel %vm4915, %v4868, 0
        %v4920 = vsel %vm4915, %v4871, 0
        %v4922 = vsel %vm4915, %v4874, 0
        %v4924 = vsel %vm4915, %v4877, 0
        %v4926 = vsel %vm4915, %v4880, 0
        %v4928 = vsel %vm4915, %v4883, 0
        %v4930 = vsel %vm4915, %v4886, 0
        %vm4932 = vcmask 1045504
        %v4934 = vsel %vm4932, %v4912, 0
        %4936 = vmatprep.subr.bf16.mxu0 0
        %4937 = vmatpush1.bf16.msra.mxu0 %v4910
        %4938 = vmatprep.subr.bf16.mxu0 0
        %4939 = vmatpush1.bf16.msra.mxu0 %v4911
        %4940 = vmatprep.subr.bf16.mxu0 0
        %4941 = vmatpush1.bf16.msra.mxu0 %v4934
        %4942 = vmatprep.subr.bf16.mxu0 0
        %4943 = vmatpush1.bf16.msra.mxu0 0
        %4944 = vmatprep.subr.bf16.mxu0 0
        %4945 = vmatpush1.bf16.msra.mxu0 0
        %4946 = vmatprep.subr.bf16.mxu0 0
        %4947 = vmatpush1.bf16.msra.mxu0 0
        %4948 = vmatprep.subr.bf16.mxu0 0
        %4949 = vmatpush1.bf16.msra.mxu0 0
        %4950 = vmatprep.subr.bf16.mxu0 0
        %4951 = vmatpush1.bf16.msra.mxu0 0
        %4952 = vmatprep.subr.bf16.mxu0 0
        %4953 = vmatpush1.bf16.msra.mxu0 0
        %4954 = vmatprep.subr.bf16.mxu0 0
        %4955 = vmatpush1.bf16.msra.mxu0 0
        %4956 = vmatprep.subr.bf16.mxu0 0
        %4957 = vmatpush1.bf16.msra.mxu0 0
        %4958 = vmatprep.subr.bf16.mxu0 0
        %4959 = vmatpush1.bf16.msra.mxu0 0
        %4960 = vmatprep.subr.bf16.mxu0 0
        %4961 = vmatpush1.bf16.msra.mxu0 0
        %4962 = vmatprep.subr.bf16.mxu0 0
        %4963 = vmatpush1.bf16.msra.mxu0 0
        %4964 = vmatprep.subr.bf16.mxu0 0
        %4965 = vmatpush1.bf16.msra.mxu0 0
        %4966 = vmatprep.subr.bf16.mxu0 0
        %4967 = vmatpush1.bf16.msra.mxu0 0
        %4968 = vmatprep.mubr.bf16.mxu0 0
        %4969 = vmatmul.mubr.bf16.gmra.mrb[0].mxu0 %v4916
        %v4970 = vpop.f32.mrb[0].mxu0
        %v4971 = vadd.f32 %v4897, %v4970
        %v4972 = vpop.f32.mrb[0].mxu0
        %v4973 = vpop.f32.mrb[0].mxu0
        %v4974 = vadd.f32 %v4897, %v4973
        %v4975 = vpop.f32.mrb[0].mxu0
        %4976 = vmatprep.mubr.bf16.mxu0 0
        %4977 = vmatmul.mubr.bf16.gmra.mrb[0].mxu0 %v4918
        %v4978 = vpop.f32.mrb[0].mxu0
        %v4979 = vadd.f32 %v4897, %v4978
        %v4980 = vpop.f32.mrb[0].mxu0
        %v4981 = vpop.f32.mrb[0].mxu0
        %v4982 = vadd.f32 %v4897, %v4981
        %v4983 = vpop.f32.mrb[0].mxu0
        %4984 = vmatprep.mubr.bf16.mxu0 0
        %4985 = vmatmul.mubr.bf16.gmra.mrb[0].mxu0 %v4920
        %v4986 = vpop.f32.mrb[0].mxu0
        %v4987 = vadd.f32 %v4897, %v4986
        %v4988 = vpop.f32.mrb[0].mxu0
        %v4989 = vpop.f32.mrb[0].mxu0
        %v4990 = vadd.f32 %v4897, %v4989
        %v4991 = vpop.f32.mrb[0].mxu0
        %4992 = vmatprep.mubr.bf16.mxu0 0
        %4993 = vmatmul.mubr.bf16.gmra.mrb[0].mxu0 %v4922
        %v4994 = vpop.f32.mrb[0].mxu0
        %v4995 = vadd.f32 %v4897, %v4994
        %v4996 = vpop.f32.mrb[0].mxu0
        %v4997 = vpop.f32.mrb[0].mxu0
        %v4998 = vadd.f32 %v4897, %v4997
        %v4999 = vpop.f32.mrb[0].mxu0
        %5000 = vmatprep.mubr.bf16.mxu0 0
        %5001 = vmatmul.mubr.bf16.gmra.mrb[0].mxu0 %v4924
        %v5002 = vpop.f32.mrb[0].mxu0
        %v5003 = vadd.f32 %v4897, %v5002
        %v5004 = vpop.f32.mrb[0].mxu0
        %v5005 = vpop.f32.mrb[0].mxu0
        %v5006 = vadd.f32 %v4897, %v5005
        %v5007 = vpop.f32.mrb[0].mxu0
        %5008 = vmatprep.mubr.bf16.mxu0 0
        %5009 = vmatmul.mubr.bf16.gmra.mrb[0].mxu0 %v4926
        %v5010 = vpop.f32.mrb[0].mxu0
        %v5011 = vadd.f32 %v4897, %v5010
        %v5012 = vpop.f32.mrb[0].mxu0
        %v5013 = vpop.f32.mrb[0].mxu0
        %v5014 = vadd.f32 %v4897, %v5013
        %v5015 = vpop.f32.mrb[0].mxu0
        %5016 = vmatprep.mubr.bf16.mxu0 0
        %5017 = vmatmul.mubr.bf16.gmra.mrb[0].mxu0 %v4928
        %v5018 = vpop.f32.mrb[0].mxu0
        %v5019 = vadd.f32 %v4897, %v5018
        %v5020 = vpop.f32.mrb[0].mxu0
        %v5021 = vpop.f32.mrb[0].mxu0
        %v5022 = vadd.f32 %v4897, %v5021
        %v5023 = vpop.f32.mrb[0].mxu0
        %5024 = vmatprep.mubr.bf16.mxu0 0
        %5025 = vmatmul.mubr.bf16.gmra.mrb[0].mxu0 %v4930
        %v5026 = vpop.f32.mrb[0].mxu0
        %v5027 = vadd.f32 %v4897, %v5026
        %v5028 = vpop.f32.mrb[0].mxu0
        %v5029 = vpop.f32.mrb[0].mxu0
        %v5030 = vadd.f32 %v4897, %v5029
        %v5031 = vpop.f32.mrb[0].mxu0
        %5032 = vdwg.mxu0
        %v5033 = vmax.f32 %v4971, 0.0
        %v5034 = vmax.f32 %v4974, 0.0
        %v5035 = vmax.f32 %v4979, 0.0
        %v5036 = vmax.f32 %v4982, 0.0
        %v5037 = vmax.f32 %v4987, 0.0
        %v5038 = vmax.f32 %v4990, 0.0
        %v5039 = vmax.f32 %v4995, 0.0
        %v5040 = vmax.f32 %v4998, 0.0
        %v5041 = vmax.f32 %v5003, 0.0
        %v5042 = vmax.f32 %v5006, 0.0
        %v5043 = vmax.f32 %v5011, 0.0
        %v5044 = vmax.f32 %v5014, 0.0
        %v5045 = vmax.f32 %v5019, 0.0
        %v5046 = vmax.f32 %v5022, 0.0
        %v5047 = vmax.f32 %v5027, 0.0
        %v5048 = vmax.f32 %v5030, 0.0
        %v5049 = vpack.c.bf16 %v5034, %v5033
        %v5050 = vpack.c.bf16 %v5036, %v5035
        %v5051 = vpack.c.bf16 %v5038, %v5037
        %v5052 = vpack.c.bf16 %v5040, %v5039
        %v5053 = vpack.c.bf16 %v5042, %v5041
        %v5054 = vpack.c.bf16 %v5044, %v5043
        %v5055 = vpack.c.bf16 %v5046, %v5045
        %v5056 = vpack.c.bf16 %v5048, %v5047
        %v5057 = vld [vmem:[%s4 + $0xa8] sm:$0xf]
        %v5058 = vld [vmem:[%s4 + $0xac] sm:$0xf]
        %v5059 = vld [vmem:[%s4 + $0xb0] sm:$0xf]
        %v5060 = vld [vmem:[%s4 + $0xb4] sm:$0xf]
        %v5061 = vld [vmem:[%s4 + $0xb8] sm:$0xf]
        %v5062 = vld [vmem:[%s4 + $0xbc] sm:$0x3]
        %v5063 = vld [vmem:[%s5 + $0x38] sm:$0x1]
        %v5064 = vlaneseq
        %v5065 = vshrl.u32 %v5064, 7
        %v5066 = vsub.s32 0, %v5065
        %v5067 = vrot.slane %v5063, %v5066
        %v5074 = vunpack.c.l.b16 %v5057
        %v5075 = vunpack.c.l.b16 %v5058
        %v5076 = vunpack.c.l.b16 %v5059
        %v5077 = vunpack.c.l.b16 %v5060
        %v5078 = vunpack.c.l.b16 %v5061
        %v5079 = vunpack.c.l.b16 %v5062
        %v5080 = vpack.c.b16 %v5075, %v5074
        %v5081 = vpack.c.b16 %v5077, %v5076
        %v5082 = vpack.c.b16 %v5079, %v5078
        %v5086 = vsel %vm4915, %v5049, 0
        %v5089 = vsel %vm4915, %v5050, 0
        %v5092 = vsel %vm4915, %v5051, 0
        %v5095 = vsel %vm4915, %v5052, 0
        %v5098 = vsel %vm4915, %v5053, 0
        %v5101 = vsel %vm4915, %v5054, 0
        %v5104 = vsel %vm4915, %v5055, 0
        %v5107 = vsel %vm4915, %v5056, 0
        %v5110 = vsel %vm4932, %v5082, 0
        %5112 = vmatprep.subr.bf16.mxu0 0
        %5113 = vmatpush1.bf16.msra.mxu0 %v5080
        %5114 = vmatprep.subr.bf16.mxu0 0
        %5115 = vmatpush1.bf16.msra.mxu0 %v5081
        %5116 = vmatprep.subr.bf16.mxu0 0
        %5117 = vmatpush1.bf16.msra.mxu0 %v5110
        %5118 = vmatprep.subr.bf16.mxu0 0
        %5119 = vmatpush1.bf16.msra.mxu0 0
        %5120 = vmatprep.subr.bf16.mxu0 0
        %5121 = vmatpush1.bf16.msra.mxu0 0
        %5122 = vmatprep.subr.bf16.mxu0 0
        %5123 = vmatpush1.bf16.msra.mxu0 0
        %5124 = vmatprep.subr.bf16.mxu0 0
        %5125 = vmatpush1.bf16.msra.mxu0 0
        %5126 = vmatprep.subr.bf16.mxu0 0
        %5127 = vmatpush1.bf16.msra.mxu0 0
        %5128 = vmatprep.subr.bf16.mxu0 0
        %5129 = vmatpush1.bf16.msra.mxu0 0
        %5130 = vmatprep.subr.bf16.mxu0 0
        %5131 = vmatpush1.bf16.msra.mxu0 0
        %5132 = vmatprep.subr.bf16.mxu0 0
        %5133 = vmatpush1.bf16.msra.mxu0 0
        %5134 = vmatprep.subr.bf16.mxu0 0
        %5135 = vmatpush1.bf16.msra.mxu0 0
        %5136 = vmatprep.subr.bf16.mxu0 0
        %5137 = vmatpush1.bf16.msra.mxu0 0
        %5138 = vmatprep.subr.bf16.mxu0 0
        %5139 = vmatpush1.bf16.msra.mxu0 0
        %5140 = vmatprep.subr.bf16.mxu0 0
        %5141 = vmatpush1.bf16.msra.mxu0 0
        %5142 = vmatprep.subr.bf16.mxu0 0
        %5143 = vmatpush1.bf16.msra.mxu0 0
        %5144 = vmatprep.mubr.bf16.mxu0 0
        %5145 = vmatmul.mubr.bf16.gmra.mrb[0].mxu0 %v5086
        %v5146 = vpop.f32.mrb[0].mxu0
        %v5147 = vadd.f32 %v5067, %v5146
        %v5148 = vpop.f32.mrb[0].mxu0
        %v5149 = vpop.f32.mrb[0].mxu0
        %v5150 = vadd.f32 %v5067, %v5149
        %v5151 = vpop.f32.mrb[0].mxu0
        %5152 = vmatprep.mubr.bf16.mxu0 0
        %5153 = vmatmul.mubr.bf16.gmra.mrb[0].mxu0 %v5089
        %v5154 = vpop.f32.mrb[0].mxu0
        %v5155 = vadd.f32 %v5067, %v5154
        %v5156 = vpop.f32.mrb[0].mxu0
        %v5157 = vpop.f32.mrb[0].mxu0
        %v5158 = vadd.f32 %v5067, %v5157
        %v5159 = vpop.f32.mrb[0].mxu0
        %5160 = vmatprep.mubr.bf16.mxu0 0
        %5161 = vmatmul.mubr.bf16.gmra.mrb[0].mxu0 %v5092
        %v5162 = vpop.f32.mrb[0].mxu0
        %v5163 = vadd.f32 %v5067, %v5162
        %v5164 = vpop.f32.mrb[0].mxu0
        %v5165 = vpop.f32.mrb[0].mxu0
        %v5166 = vadd.f32 %v5067, %v5165
        %v5167 = vpop.f32.mrb[0].mxu0
        %5168 = vmatprep.mubr.bf16.mxu0 0
        %5169 = vmatmul.mubr.bf16.gmra.mrb[0].mxu0 %v5095
        %v5170 = vpop.f32.mrb[0].mxu0
        %v5171 = vadd.f32 %v5067, %v5170
        %v5172 = vpop.f32.mrb[0].mxu0
        %v5173 = vpop.f32.mrb[0].mxu0
        %v5174 = vadd.f32 %v5067, %v5173
        %v5175 = vpop.f32.mrb[0].mxu0
        %5176 = vmatprep.mubr.bf16.mxu0 0
        %5177 = vmatmul.mubr.bf16.gmra.mrb[0].mxu0 %v5098
        %v5178 = vpop.f32.mrb[0].mxu0
        %v5179 = vadd.f32 %v5067, %v5178
        %v5180 = vpop.f32.mrb[0].mxu0
        %v5181 = vpop.f32.mrb[0].mxu0
        %v5182 = vadd.f32 %v5067, %v5181
        %v5183 = vpop.f32.mrb[0].mxu0
        %5184 = vmatprep.mubr.bf16.mxu0 0
        %5185 = vmatmul.mubr.bf16.gmra.mrb[0].mxu0 %v5101
        %v5186 = vpop.f32.mrb[0].mxu0
        %v5187 = vadd.f32 %v5067, %v5186
        %v5188 = vpop.f32.mrb[0].mxu0
        %v5189 = vpop.f32.mrb[0].mxu0
        %v5190 = vadd.f32 %v5067, %v5189
        %v5191 = vpop.f32.mrb[0].mxu0
        %5192 = vmatprep.mubr.bf16.mxu0 0
        %5193 = vmatmul.mubr.bf16.gmra.mrb[0].mxu0 %v5104
        %v5194 = vpop.f32.mrb[0].mxu0
        %v5195 = vadd.f32 %v5067, %v5194
        %v5196 = vpop.f32.mrb[0].mxu0
        %v5197 = vpop.f32.mrb[0].mxu0
        %v5198 = vadd.f32 %v5067, %v5197
        %v5199 = vpop.f32.mrb[0].mxu0
        %5200 = vmatprep.mubr.bf16.mxu0 0
        %5201 = vmatmul.mubr.bf16.gmra.mrb[0].mxu0 %v5107
        %v5202 = vpop.f32.mrb[0].mxu0
        %v5203 = vadd.f32 %v5067, %v5202
        %v5204 = vpop.f32.mrb[0].mxu0
        %v5205 = vpop.f32.mrb[0].mxu0
        %v5206 = vadd.f32 %v5067, %v5205
        %v5207 = vpop.f32.mrb[0].mxu0
        %5208 = vdwg.mxu0
        %v5209 = vmax.f32 %v5147, 0.0
        %v5210 = vmax.f32 %v5150, 0.0
        %v5211 = vmax.f32 %v5155, 0.0
        %v5212 = vmax.f32 %v5158, 0.0
        %v5213 = vmax.f32 %v5163, 0.0
        %v5214 = vmax.f32 %v5166, 0.0
        %v5215 = vmax.f32 %v5171, 0.0
        %v5216 = vmax.f32 %v5174, 0.0
        %v5217 = vmax.f32 %v5179, 0.0
        %v5218 = vmax.f32 %v5182, 0.0
        %v5219 = vmax.f32 %v5187, 0.0
        %v5220 = vmax.f32 %v5190, 0.0
        %v5221 = vmax.f32 %v5195, 0.0
        %v5222 = vmax.f32 %v5198, 0.0
        %v5223 = vmax.f32 %v5203, 0.0
        %v5224 = vmax.f32 %v5206, 0.0
        %v5225 = vld [vmem:[%s4 + $0xc0] sm:$0xf]
        %v5226 = vpack.c.bf16 %v5210, %v5209
        %v5227 = vpack.c.bf16 %v5212, %v5211
        %v5228 = vpack.c.bf16 %v5214, %v5213
        %v5229 = vpack.c.bf16 %v5216, %v5215
        %v5230 = vpack.c.bf16 %v5218, %v5217
        %v5231 = vpack.c.bf16 %v5220, %v5219
        %v5232 = vpack.c.bf16 %v5222, %v5221
        %v5233 = vpack.c.bf16 %v5224, %v5223
        %v5235 = vsel %vm2060, %v5225, 0
        %v5238 = vsel %vm2060, %v5226, 0
        %v5241 = vsel %vm2060, %v5227, 0
        %v5244 = vsel %vm2060, %v5228, 0
        %v5247 = vsel %vm2060, %v5229, 0
        %v5250 = vsel %vm2060, %v5230, 0
        %v5253 = vsel %vm2060, %v5231, 0
        %v5256 = vsel %vm2060, %v5232, 0
        %v5259 = vsel %vm2060, %v5233, 0
        %5261 = vmatprep.subr.bf16.mxu0 0
        %5262 = vmatpush1.bf16.xpose.msra.mxu0 %v5238
        %5263 = vmatprep.subr.bf16.mxu0 0
        %5264 = vmatpush1.bf16.xpose.msra.mxu0 %v5241
        %5265 = vmatprep.subr.bf16.mxu0 0
        %5266 = vmatpush1.bf16.xpose.msra.mxu0 %v5244
        %5267 = vmatprep.subr.bf16.mxu0 0
        %5268 = vmatpush1.bf16.xpose.msra.mxu0 %v5247
        %5269 = vmatprep.subr.bf16.mxu0 0
        %5270 = vmatpush1.bf16.xpose.msra.mxu0 %v5250
        %5271 = vmatprep.subr.bf16.mxu0 0
        %5272 = vmatpush1.bf16.xpose.msra.mxu0 %v5253
        %5273 = vmatprep.subr.bf16.mxu0 0
        %5274 = vmatpush1.bf16.xpose.msra.mxu0 %v5256
        %5275 = vmatprep.subr.bf16.mxu0 0
        %5276 = vmatpush1.bf16.xpose.msra.mxu0 %v5259
        %5277 = vmatprep.subr.bf16.mxu0 0
        %5278 = vmatpush1.bf16.xpose.msra.mxu0 0
        %5279 = vmatprep.subr.bf16.mxu0 0
        %5280 = vmatpush1.bf16.xpose.msra.mxu0 0
        %5281 = vmatprep.subr.bf16.mxu0 0
        %5282 = vmatpush1.bf16.xpose.msra.mxu0 0
        %5283 = vmatprep.subr.bf16.mxu0 0
        %5284 = vmatpush1.bf16.xpose.msra.mxu0 0
        %5285 = vmatprep.subr.bf16.mxu0 0
        %5286 = vmatpush1.bf16.xpose.msra.mxu0 0
        %5287 = vmatprep.subr.bf16.mxu0 0
        %5288 = vmatpush1.bf16.xpose.msra.mxu0 0
        %5289 = vmatprep.subr.bf16.mxu0 0
        %5290 = vmatpush1.bf16.xpose.msra.mxu0 0
        %5291 = vmatprep.subr.bf16.mxu0 0
        %5292 = vmatpush1.bf16.xpose.msra.mxu0 0
        %5293 = vmatprep.mubr.bf16.mxu0 0
        %5294 = vmatmul.mubr.bf16.gmra.mrb[0].mxu0 %v5235
        %v5295 = vpop.f32.mrb[0].mxu0
        %v5296 = vadd.f32 0.0, %v5295
        %v5297 = vpop.f32.mrb[0].mxu0
        %v5298 = vpop.f32.mrb[0].mxu0
        %v5299 = vpop.f32.mrb[0].mxu0
        %5300 = vdwg.mxu0
        %v5301 = vld [vmem:[%s5 + $0x40] sm:$0x1]
        %5303 = vset.pattern.permute.xlu0 0
        %5304 = vperm.xlu0 %5303, %v5301
        %v5305 = vpop.permute.xlu0 %5304
        %v5307 = vadd.f32 %v5296, %v5305
        %v5308 = vxor.u32 %v5307, 2147483648
        %v5309 = vmul.f32 %v5308, 1.442695
        %v5310 = vpow.pop %v5309
        %v5311 = vadd.f32 %v5310, 1.0
        %v5312 = vrcp.pop %v5311
        %v5313 = vmul.f32 1.0, %v5312
        %5314 = vst [vmem:[%s994] sm:$0x1] %v5313
        %s5315 = sand.u32 %s174, 1
        %s5316 = scalar_lea.sflag [#allocation6], %s5315
        %s5317 = sand.u32 %s174, 1
        %s5318 = scalar_lea.vmem [#allocation5], %s5317
        // Predicated region
        $region168: #{tpu_custom_call.1} parent=154 // pred_check
          %p5319 = pneg %p184
        $region169: #{tpu_custom_call.1} parent=154 // pred_check_branch
          %5321 = sbr.rel (%p5319) target = $region171
        $region170: #{tpu_custom_call.1} parent=154 // pred_region
          %s5323 = ssub.s32 16, 16
          %5324 = vsyncadd %s5316, %s5323
          %s5325 = smul.addr %s20, 16
          %s5326 = scalar_lea.hbm %s6, %s5325
          %s5328 = sshll.u32 %s5318, 4
          %s5329 = int_to_ptr.vmem [resolvable:$true] %s5328
          %5331 = dma.vmem_to_hbm [thread:$0]  %s5329, 16, %s5326, %s5316
        $region171: #{tpu_custom_call.1} parent=154 // pred_fallthru
          _
      $region155: #{tpu_custom_call.1} parent=5 // pred_fallthru
        _
      %p5332 = scmp.le.s32.totalorder 2, %s15
      // Predicated region
      $region172: #{tpu_custom_call.1} parent=5 // pred_check
        %p5333 = pneg %p5332
      $region173: #{tpu_custom_call.1} parent=5 // pred_check_branch
        %5335 = sbr.rel (%p5333) target = $region175
      $region174: #{tpu_custom_call.1} parent=5 // pred_region
        %s5336 = ssub.s32 %s15, 2
        // Predicated region
        $region176: #{tpu_custom_call.1} parent=174 // pred_check
          %p5337 = pneg %p190
        $region177: #{tpu_custom_call.1} parent=174 // pred_check_branch
          %5339 = sbr.rel (%p5337) target = $region179
        $region178: #{tpu_custom_call.1} parent=174 // pred_region
          %s5340 = sand.u32 %s175, 1
          %s5341 = scalar_lea.sflag [#allocation6], %s5340
          %s5342 = sand.u32 %s175, 1
          %s5343 = scalar_lea.vmem [#allocation5], %s5342
          %5344 = dma.done %s5341, 16
        $region179: #{tpu_custom_call.1} parent=174 // pred_fallthru
          _
      $region175: #{tpu_custom_call.1} parent=5 // pred_fallthru
        _
    $region6: #{tpu_custom_call.1} parent=1 // loop_footer
      %s19 = sadd.s32 1, %s15
    $region7: #{tpu_custom_call.1} parent=1 // loop_footer_branch
      %14 = sbr.rel target = $region3
    $region8: #{tpu_custom_call.1} parent=1 // loop_exit
      _
    %5345 = vsyncpa [#allocation6], 1
    %s5346 = scalar_lea.sflag [#allocation6], 1
    %5347 = vsyncpa %s5346, 1

</llo_original>
